<compile_context>
chip_gen: v6e
topology: v6e:2x2x1
jax: 0.10.0
libtpu: 0.0.40
codegen_flags: <defaults>
</compile_context>

<pallas_src>
import functools

import jax
import jax.numpy as jnp
from jax import lax
from jax.experimental import pallas as pl
from jax.experimental.pallas import tpu as pltpu


def _round_up(x, m):
    return ((x + m - 1) // m) * m


# ----------------------------------------------------------- shared body ----
def _conv_gate(xa, xb, w_ref, b_ref, *, taps, tm, co_p):
    """Both convolutions + LeakyReLU(0.2) * sigmoid gate for one lane tile.

    xa, xb : [Cin, TM] bf16   current flat-input tile and its right neighbour
    w_ref  : [KH*KW, 2*Cp, Cin] bf16  fused per-tap weights [conv | mask_conv]
    b_ref  : [2*Cp, 1] f32    fused biases
    returns: [Cp, TM] f32     gated activation y (pre-BatchNorm)
    """
    xcat = jnp.concatenate([xa, xb], axis=1)              # [Cin, 2*TM]
    acc = None
    for t, d in enumerate(taps):                          # static, unrolled taps
        xs = xcat[:, d:d + tm]                            # lane-shifted slice
        part = jnp.dot(w_ref[t], xs, preferred_element_type=jnp.float32)
        acc = part if acc is None else acc + part
    acc = acc + b_ref[...]                                # [2*Cp, TM] f32
    xact = acc[:co_p]
    gate = acc[co_p:]
    xact = jnp.where(xact >= 0.0, xact, 0.2 * xact)       # LeakyReLU(0.2)
    return xact * jax.nn.sigmoid(gate)                    # sigmoid gate (EUP)


# --------------------------------------------------------------- pass 1 -----
def _stats_kernel(xa_ref, xb_ref, mask_ref, w_ref, b_ref, sum_ref, ssq_ref, *,
                  taps, tm, co_p):
    """Conv + gate, accumulate masked per-channel sum / sum-of-squares."""
    @pl.when(pl.program_id(1) == 0)
    def _init():
        sum_ref[...] = jnp.zeros_like(sum_ref)
        ssq_ref[...] = jnp.zeros_like(ssq_ref)

    y = _conv_gate(xa_ref[...], xb_ref[...], w_ref, b_ref,
                   taps=taps, tm=tm, co_p=co_p)            # [Cp, TM]
    ym = y * mask_ref[...]                                 # zero invalid lanes
    sum_ref[...] += jnp.sum(ym, axis=1, keepdims=True)[None]
    ssq_ref[...] += jnp.sum(ym * ym, axis=1, keepdims=True)[None]


# --------------------------------------------------------------- pass 2 -----
def _apply_kernel(xa_ref, xb_ref, w_ref, b_ref, scale_ref, shift_ref, o_ref, *,
                  taps, tm, co_p):
    """Recompute conv + gate and apply BatchNorm scale/shift (no y reload)."""
    y = _conv_gate(xa_ref[...], xb_ref[...], w_ref, b_ref,
                   taps=taps, tm=tm, co_p=co_p)
    o_ref[...] = y * scale_ref[...] + shift_ref[...]


# --------------------------------------------------------------- wrapper ----
def gated_conv2d_with_activation(x, w, b, wm, bm, *, stride=1, padding=1,
                                 tm=512, eps=1e-5):
    """x: [N, Cin, H, W] NCHW.  w/wm: [Cout, Cin, KH, KW].  b/bm: [Cout]."""
    n, cin, h, wd = x.shape
    cout, cin_w, kh, kw = w.shape
    assert cin_w == cin, "groups != 1 not supported"
    hp, wp = h + 2 * padding, wd + 2 * padding
    oh = (hp - kh) // stride + 1
    ow = (wp - kw) // stride + 1
    assert oh >= 1 and ow >= 1

    co_p = _round_up(cout, 8)                        # channels on sublanes
    taps = tuple(i * wp + j for i in range(kh) for j in range(kw))
    halo = taps[-1]                                  # (KH-1)*Wp + (KW-1)

    tm = _round_up(max(tm, halo), 128)               # lane tile, halo must fit
    assert halo <= tm
    m_over = n * hp * wp                             # over-grid (padded) positions
    m_pad = _round_up(m_over, 2 * tm)                # even #tiles -> 2-core split
    nblocks = m_pad // tm
    nb2 = nblocks // 2

    # Flat bf16 input [Cin, N*Hp*Wp], plus one extra all-zero tile so the
    # "next block" halo read is always in-bounds.
    xp = jnp.pad(x.astype(jnp.bfloat16),
                 ((0, 0), (0, 0), (padding, padding), (padding, padding)))
    x_flat = xp.transpose(1, 0, 2, 3).reshape(cin, m_over)
    x_flat = jnp.pad(x_flat, ((0, 0), (0, m_pad + tm - m_over)))

    # Validity mask over the flattened padded grid: keeps only real, stride-
    # aligned output positions (also zeroes the M padding) so the BatchNorm
    # statistics stay exact despite the over-computed positions.
    yy = jnp.arange(hp)
    xx = jnp.arange(wp)
    vy = ((yy % stride) == 0) & (yy <= stride * (oh - 1))
    vx = ((xx % stride) == 0) & (xx <= stride * (ow - 1))
    mask2d = (vy[:, None] & vx[None, :]).astype(jnp.float32)
    mask = jnp.broadcast_to(mask2d[None], (n, hp, wp)).reshape(1, m_over)
    mask = jnp.pad(mask, ((0, 0), (0, m_pad - m_over)))

    # Fused per-tap weights [KH*KW, 2*Cp, Cin] bf16 and biases [2*Cp, 1] f32.
    def pad_rows(a):
        return jnp.pad(a, ((0, co_p - cout), (0, 0)))

    w_taps = [jnp.concatenate([pad_rows(w[:, :, i, j]),
                               pad_rows(wm[:, :, i, j])], axis=0)
              for i in range(kh) for j in range(kw)]
    w_fused = jnp.stack(w_taps, axis=0).astype(jnp.bfloat16)
    b_fused = jnp.concatenate([
        jnp.pad(b.astype(jnp.float32), (0, co_p - cout)),
        jnp.pad(bm.astype(jnp.float32), (0, co_p - cout)),
    ]).reshape(2 * co_p, 1)

    ntaps = kh * kw
    flops_tile = 2 * (2 * co_p) * cin * ntaps + 12 * co_p
    compiler_params = pltpu.CompilerParams(
        dimension_semantics=("parallel", "arbitrary"),   # core axis | M tiles
        vmem_limit_bytes=32 * 1024 * 1024)               # safe on v5e/v6e/v7x
    # TODO(synk): single-buffer the pinned w_fused/b_fused operands
    # (pipeline_mode=pl.Buffered(1)) if VMEM ever becomes the limiter.

    # --- pass 1: BN statistics only (no y written to HBM) --------------------
    kernel1 = functools.partial(_stats_kernel, taps=taps, tm=tm, co_p=co_p)
    ysum, yssq = pl.pallas_call(
        kernel1,
        out_shape=(jax.ShapeDtypeStruct((2, co_p, 1), jnp.float32),
                   jax.ShapeDtypeStruct((2, co_p, 1), jnp.float32)),
        grid_spec=pltpu.PrefetchScalarGridSpec(
            num_scalar_prefetch=0,
            grid=(2, nb2),
            in_specs=[
                pl.BlockSpec((cin, tm), lambda c, i: (0, c * nb2 + i)),       # tile
                pl.BlockSpec((cin, tm), lambda c, i: (0, c * nb2 + i + 1)),   # halo
                pl.BlockSpec((1, tm), lambda c, i: (0, c * nb2 + i)),         # mask
                pl.BlockSpec((ntaps, 2 * co_p, cin), lambda c, i: (0, 0, 0)),  # pinned
                pl.BlockSpec((2 * co_p, 1), lambda c, i: (0, 0)),              # pinned
            ],
            out_specs=[
                pl.BlockSpec((1, co_p, 1), lambda c, i: (c, 0, 0)),  # per-core sum
                pl.BlockSpec((1, co_p, 1), lambda c, i: (c, 0, 0)),  # per-core ssq
            ]),
        compiler_params=compiler_params,
        cost_estimate=pl.CostEstimate(
            flops=flops_tile * m_pad,
            transcendentals=co_p * m_pad,
            bytes_accessed=(2 * cin * m_pad * 2 + m_pad * 4
                            + ntaps * 2 * co_p * cin * 2 + 4 * co_p * 4)),
    )(x_flat, x_flat, mask, w_fused, b_fused)

    # --- per-channel scale/shift (tiny, plain JAX) ----------------------------
    count = n * oh * ow
    total_sum = jnp.sum(ysum, axis=0)                        # [Cp, 1]
    total_ssq = jnp.sum(yssq, axis=0)
    mean = total_sum / count
    var = jnp.maximum(total_ssq / count - mean * mean, 0.0)  # biased (training)
    scale = lax.rsqrt(var + eps)
    shift = -mean * scale

    # --- pass 2: recompute conv+gate, apply BatchNorm, single store -----------
    kernel2 = functools.partial(_apply_kernel, taps=taps, tm=tm, co_p=co_p)
    out_flat = pl.pallas_call(
        kernel2,
        out_shape=jax.ShapeDtypeStruct((co_p, m_pad), jnp.float32),
        grid_spec=pltpu.PrefetchScalarGridSpec(
            num_scalar_prefetch=0,
            grid=(nblocks,),
            in_specs=[
                pl.BlockSpec((cin, tm), lambda i: (0, i)),
                pl.BlockSpec((cin, tm), lambda i: (0, i + 1)),
                pl.BlockSpec((ntaps, 2 * co_p, cin), lambda i: (0, 0, 0)),
                pl.BlockSpec((2 * co_p, 1), lambda i: (0, 0)),
                pl.BlockSpec((co_p, 1), lambda i: (0, 0)),
                pl.BlockSpec((co_p, 1), lambda i: (0, 0)),
            ],
            out_specs=pl.BlockSpec((co_p, tm), lambda i: (0, i))),
        compiler_params=pltpu.CompilerParams(
            dimension_semantics=("parallel",),               # megacore-shardable
            vmem_limit_bytes=32 * 1024 * 1024),
        cost_estimate=pl.CostEstimate(
            flops=(flops_tile + 2 * co_p) * m_pad,
            transcendentals=co_p * m_pad,
            bytes_accessed=(2 * cin * m_pad * 2 + co_p * m_pad * 4
                            + ntaps * 2 * co_p * cin * 2 + 6 * co_p * 4)),
    )(x_flat, x_flat, w_fused, b_fused, scale, shift)

    # Cheap unpadded epilogue: [Cp, Mover] -> [Cout, N, OH, OW] -> NCHW.
    out_over = out_flat[:cout, :m_over].reshape(cout, n, hp, wp)
    out = out_over[:, :, :stride * (oh - 1) + 1:stride,
                         :stride * (ow - 1) + 1:stride]
    return out.transpose(1, 0, 2, 3)
    # TODO(synk): BatchNorm running_mean/var buffer updates (module state) are a
    # training side-effect, not part of the returned tensor, and are not emitted.
    # TODO(synk): dilation != 1 and groups != 1 are not supported.


def _reference(x, w, b, wm, bm, *, stride=1, padding=1):
    """Pure-JAX reference.  Inputs/weights are rounded to bf16 first so it
    matches what the MXU actually consumes (bias & epilogue stay f32)."""
    xr = x.astype(jnp.bfloat16).astype(jnp.float32)
    wr = w.astype(jnp.bfloat16).astype(jnp.float32)
    wmr = wm.astype(jnp.bfloat16).astype(jnp.float32)
    dn = lax.conv_dimension_numbers(xr.shape, wr.shape, ("NCHW", "OIHW", "NCHW"))
    conv = lambda wgt, bias: lax.conv_general_dilated(
        xr, wgt, (stride, stride), [(padding, padding), (padding, padding)],
        dimension_numbers=dn) + bias.reshape(1, -1, 1, 1)
    xo = conv(wr, b)
    mo = conv(wmr, bm)
    y = jnp.where(xo >= 0, xo, 0.2 * xo) * jax.nn.sigmoid(mo)
    mean = jnp.mean(y, axis=(0, 2, 3), keepdims=True)
    var = jnp.mean((y - mean) ** 2, axis=(0, 2, 3), keepdims=True)
    return (y - mean) * lax.rsqrt(var + 1e-5)


if __name__ == "__main__":
    key = jax.random.PRNGKey(0)
    k_x, k_w, k_b, k_wm, k_bm = jax.random.split(key, 5)

    N, Cin, H, W = 2, 4, 16, 16
    Cout, KH, KW = 8, 3, 3
    stride, padding = 1, 1

    x = jax.random.normal(k_x, (N, Cin, H, W), dtype=jnp.float32)

    # Deterministic kaiming-normal-ish init: std = sqrt(2 / fan_in)
    fan_in = Cin * KH * KW
    std = (2.0 / fan_in) ** 0.5
    w = jax.random.normal(k_w, (Cout, Cin, KH, KW), dtype=jnp.float32) * std
    wm = jax.random.normal(k_wm, (Cout, Cin, KH, KW), dtype=jnp.float32) * std
    bound = 1.0 / (fan_in ** 0.5)
    b = jax.random.uniform(k_b, (Cout,), minval=-bound, maxval=bound, dtype=jnp.float32)
    bm = jax.random.uniform(k_bm, (Cout,), minval=-bound, maxval=bound, dtype=jnp.float32)

    fwd = jax.jit(functools.partial(gated_conv2d_with_activation,
                                    stride=stride, padding=padding, tm=512))
    out = jax.block_until_ready(fwd(x, w, b, wm, bm))

    ref = _reference(x, w, b, wm, bm, stride=stride, padding=padding)
    assert out.shape == (N, Cout, H, W), out.shape
    max_err = float(jnp.max(jnp.abs(out - ref)))
    assert jnp.allclose(out, ref, atol=1e-3, rtol=1e-3), max_err

    print("KERNEL_OK")
</pallas_src>

<mosaic_0001>
module attributes {stable_mosaic.version = 11 : i64} {
  func.func @_stats_kernel(%arg0: i32, %arg1: i32, %arg2: memref<4x512xbf16, #tpu.memory_space<vmem>>, %arg3: memref<4x512xbf16, #tpu.memory_space<vmem>>, %arg4: memref<1x512xf32, #tpu.memory_space<vmem>>, %arg5: memref<9x16x4xbf16, #tpu.memory_space<vmem>>, %arg6: memref<16x1xf32, #tpu.memory_space<vmem>>, %arg7: memref<1x8x1xf32, #tpu.memory_space<vmem>>, %arg8: memref<1x8x1xf32, #tpu.memory_space<vmem>>) attributes {dimension_semantics = [#tpu.dimension_semantics<parallel>, #tpu.dimension_semantics<arbitrary>], iteration_bounds = array<i64: 2, 1>, scalar_prefetch = 0 : i64, scratch_operands = 0 : i64, tpu.core_type = #tpu.core_type<tc>, window_params = [{transform_indices = @transform_0, window_bounds = array<i64: 4, 512>}, {transform_indices = @transform_1, window_bounds = array<i64: 4, 512>}, {transform_indices = @transform_2, window_bounds = array<i64: 1, 512>}, {pipeline_mode = #tpu.pipeline_mode<synchronous>, transform_indices = @transform_3, window_bounds = array<i64: 9, 16, 4>}, {pipeline_mode = #tpu.pipeline_mode<synchronous>, transform_indices = @transform_4, window_bounds = array<i64: 16, 1>}, {transform_indices = @transform_5, window_bounds = array<i64: 1, 8, 1>}, {transform_indices = @transform_6, window_bounds = array<i64: 1, 8, 1>}]} {
    %c0_i32 = arith.constant 0 : i32
    %0 = arith.cmpi eq, %arg1, %c0_i32 : i32
    %1 = arith.extui %0 : i1 to i32
    %c0_i32_0 = arith.constant 0 : i32
    %2 = arith.cmpi ne, %1, %c0_i32_0 : i32
    scf.if %2 {
      %cst_52 = arith.constant 0.000000e+00 : f32
      %82 = vector.broadcast %cst_52 : f32 to vector<1x8x1xf32>
      %c0_53 = arith.constant 0 : index
      %c0_54 = arith.constant 0 : index
      %c0_55 = arith.constant 0 : index
      %83 = vector.load %arg7[%c0_53, %c0_54, %c0_55] : memref<1x8x1xf32, #tpu.memory_space<vmem>>, vector<1x8x1xf32>
      tpu.vector_store %arg7[%c0_53, %c0_54, %c0_55], %82 {strides = array<i32>} : memref<1x8x1xf32, #tpu.memory_space<vmem>>, vector<1x8x1xf32>,
      %cst_56 = arith.constant 0.000000e+00 : f32
      %84 = vector.broadcast %cst_56 : f32 to vector<1x8x1xf32>
      %c0_57 = arith.constant 0 : index
      %c0_58 = arith.constant 0 : index
      %c0_59 = arith.constant 0 : index
      %85 = vector.load %arg8[%c0_57, %c0_58, %c0_59] : memref<1x8x1xf32, #tpu.memory_space<vmem>>, vector<1x8x1xf32>
      tpu.vector_store %arg8[%c0_57, %c0_58, %c0_59], %84 {strides = array<i32>} : memref<1x8x1xf32, #tpu.memory_space<vmem>>, vector<1x8x1xf32>,
    } else {
    }
    %c0 = arith.constant 0 : index
    %c0_1 = arith.constant 0 : index
    %3 = vector.load %arg2[%c0, %c0_1] : memref<4x512xbf16, #tpu.memory_space<vmem>>, vector<4x512xbf16>
    %c0_2 = arith.constant 0 : index
    %c0_3 = arith.constant 0 : index
    %4 = vector.load %arg3[%c0_2, %c0_3] : memref<4x512xbf16, #tpu.memory_space<vmem>>, vector<4x512xbf16>
    %5 = tpu.concatenate %3, %4 in 1 : vector<4x512xbf16>, vector<4x512xbf16> -> vector<4x1024xbf16>
    %6 = vector.extract_strided_slice %5 {offsets = [0, 0], sizes = [4, 512], strides = [1, 1]} : vector<4x1024xbf16> to vector<4x512xbf16>
    %c0_4 = arith.constant 0 : index
    %c0_5 = arith.constant 0 : index
    %c0_6 = arith.constant 0 : index
    %7 = vector.load %arg5[%c0_4, %c0_5, %c0_6] : memref<9x16x4xbf16, #tpu.memory_space<vmem>>, vector<1x16x4xbf16>
    %8 = vector.shape_cast %7 : vector<1x16x4xbf16> to vector<16x4xbf16>
    %cst = arith.constant dense<0.000000e+00> : vector<16x512xf32>
    %9 = tpu.matmul %8, %6, %cst {dimension_numbers = #tpu.dot_dimension_numbers<[1], [0], [0], [1], [0, 0, 1, 1], [], []>} : vector<16x4xbf16>, vector<4x512xbf16>, vector<16x512xf32> -> vector<16x512xf32>
    %10 = vector.extract_strided_slice %5 {offsets = [0, 1], sizes = [4, 512], strides = [1, 1]} : vector<4x1024xbf16> to vector<4x512xbf16>
    %c1 = arith.constant 1 : index
    %c0_7 = arith.constant 0 : index
    %c0_8 = arith.constant 0 : index
    %11 = vector.load %arg5[%c1, %c0_7, %c0_8] : memref<9x16x4xbf16, #tpu.memory_space<vmem>>, vector<1x16x4xbf16>
    %12 = vector.shape_cast %11 : vector<1x16x4xbf16> to vector<16x4xbf16>
    %cst_9 = arith.constant dense<0.000000e+00> : vector<16x512xf32>
    %13 = tpu.matmul %12, %10, %cst_9 {dimension_numbers = #tpu.dot_dimension_numbers<[1], [0], [0], [1], [0, 0, 1, 1], [], []>} : vector<16x4xbf16>, vector<4x512xbf16>, vector<16x512xf32> -> vector<16x512xf32>
    %14 = arith.addf %9, %13 : vector<16x512xf32>
    %15 = vector.extract_strided_slice %5 {offsets = [0, 2], sizes = [4, 512], strides = [1, 1]} : vector<4x1024xbf16> to vector<4x512xbf16>
    %c2 = arith.constant 2 : index
    %c0_10 = arith.constant 0 : index
    %c0_11 = arith.constant 0 : index
    %16 = vector.load %arg5[%c2, %c0_10, %c0_11] : memref<9x16x4xbf16, #tpu.memory_space<vmem>>, vector<1x16x4xbf16>
    %17 = vector.shape_cast %16 : vector<1x16x4xbf16> to vector<16x4xbf16>
    %cst_12 = arith.constant dense<0.000000e+00> : vector<16x512xf32>
    %18 = tpu.matmul %17, %15, %cst_12 {dimension_numbers = #tpu.dot_dimension_numbers<[1], [0], [0], [1], [0, 0, 1, 1], [], []>} : vector<16x4xbf16>, vector<4x512xbf16>, vector<16x512xf32> -> vector<16x512xf32>
    %19 = arith.addf %14, %18 : vector<16x512xf32>
    %20 = vector.extract_strided_slice %5 {offsets = [0, 18], sizes = [4, 512], strides = [1, 1]} : vector<4x1024xbf16> to vector<4x512xbf16>
    %c3 = arith.constant 3 : index
    %c0_13 = arith.constant 0 : index
    %c0_14 = arith.constant 0 : index
    %21 = vector.load %arg5[%c3, %c0_13, %c0_14] : memref<9x16x4xbf16, #tpu.memory_space<vmem>>, vector<1x16x4xbf16>
    %22 = vector.shape_cast %21 : vector<1x16x4xbf16> to vector<16x4xbf16>
    %cst_15 = arith.constant dense<0.000000e+00> : vector<16x512xf32>
    %23 = tpu.matmul %22, %20, %cst_15 {dimension_numbers = #tpu.dot_dimension_numbers<[1], [0], [0], [1], [0, 0, 1, 1], [], []>} : vector<16x4xbf16>, vector<4x512xbf16>, vector<16x512xf32> -> vector<16x512xf32>
    %24 = arith.addf %19, %23 : vector<16x512xf32>
    %25 = vector.extract_strided_slice %5 {offsets = [0, 19], sizes = [4, 512], strides = [1, 1]} : vector<4x1024xbf16> to vector<4x512xbf16>
    %c4 = arith.constant 4 : index
    %c0_16 = arith.constant 0 : index
    %c0_17 = arith.constant 0 : index
    %26 = vector.load %arg5[%c4, %c0_16, %c0_17] : memref<9x16x4xbf16, #tpu.memory_space<vmem>>, vector<1x16x4xbf16>
    %27 = vector.shape_cast %26 : vector<1x16x4xbf16> to vector<16x4xbf16>
    %cst_18 = arith.constant dense<0.000000e+00> : vector<16x512xf32>
    %28 = tpu.matmul %27, %25, %cst_18 {dimension_numbers = #tpu.dot_dimension_numbers<[1], [0], [0], [1], [0, 0, 1, 1], [], []>} : vector<16x4xbf16>, vector<4x512xbf16>, vector<16x512xf32> -> vector<16x512xf32>
    %29 = arith.addf %24, %28 : vector<16x512xf32>
    %30 = vector.extract_strided_slice %5 {offsets = [0, 20], sizes = [4, 512], strides = [1, 1]} : vector<4x1024xbf16> to vector<4x512xbf16>
    %c5 = arith.constant 5 : index
    %c0_19 = arith.constant 0 : index
    %c0_20 = arith.constant 0 : index
    %31 = vector.load %arg5[%c5, %c0_19, %c0_20] : memref<9x16x4xbf16, #tpu.memory_space<vmem>>, vector<1x16x4xbf16>
    %32 = vector.shape_cast %31 : vector<1x16x4xbf16> to vector<16x4xbf16>
    %cst_21 = arith.constant dense<0.000000e+00> : vector<16x512xf32>
    %33 = tpu.matmul %32, %30, %cst_21 {dimension_numbers = #tpu.dot_dimension_numbers<[1], [0], [0], [1], [0, 0, 1, 1], [], []>} : vector<16x4xbf16>, vector<4x512xbf16>, vector<16x512xf32> -> vector<16x512xf32>
    %34 = arith.addf %29, %33 : vector<16x512xf32>
    %35 = vector.extract_strided_slice %5 {offsets = [0, 36], sizes = [4, 512], strides = [1, 1]} : vector<4x1024xbf16> to vector<4x512xbf16>
    %c6 = arith.constant 6 : index
    %c0_22 = arith.constant 0 : index
    %c0_23 = arith.constant 0 : index
    %36 = vector.load %arg5[%c6, %c0_22, %c0_23] : memref<9x16x4xbf16, #tpu.memory_space<vmem>>, vector<1x16x4xbf16>
    %37 = vector.shape_cast %36 : vector<1x16x4xbf16> to vector<16x4xbf16>
    %cst_24 = arith.constant dense<0.000000e+00> : vector<16x512xf32>
    %38 = tpu.matmul %37, %35, %cst_24 {dimension_numbers = #tpu.dot_dimension_numbers<[1], [0], [0], [1], [0, 0, 1, 1], [], []>} : vector<16x4xbf16>, vector<4x512xbf16>, vector<16x512xf32> -> vector<16x512xf32>
    %39 = arith.addf %34, %38 : vector<16x512xf32>
    %40 = vector.extract_strided_slice %5 {offsets = [0, 37], sizes = [4, 512], strides = [1, 1]} : vector<4x1024xbf16> to vector<4x512xbf16>
    %c7 = arith.constant 7 : index
    %c0_25 = arith.constant 0 : index
    %c0_26 = arith.constant 0 : index
    %41 = vector.load %arg5[%c7, %c0_25, %c0_26] : memref<9x16x4xbf16, #tpu.memory_space<vmem>>, vector<1x16x4xbf16>
    %42 = vector.shape_cast %41 : vector<1x16x4xbf16> to vector<16x4xbf16>
    %cst_27 = arith.constant dense<0.000000e+00> : vector<16x512xf32>
    %43 = tpu.matmul %42, %40, %cst_27 {dimension_numbers = #tpu.dot_dimension_numbers<[1], [0], [0], [1], [0, 0, 1, 1], [], []>} : vector<16x4xbf16>, vector<4x512xbf16>, vector<16x512xf32> -> vector<16x512xf32>
    %44 = arith.addf %39, %43 : vector<16x512xf32>
    %45 = vector.extract_strided_slice %5 {offsets = [0, 38], sizes = [4, 512], strides = [1, 1]} : vector<4x1024xbf16> to vector<4x512xbf16>
    %c8 = arith.constant 8 : index
    %c0_28 = arith.constant 0 : index
    %c0_29 = arith.constant 0 : index
    %46 = vector.load %arg5[%c8, %c0_28, %c0_29] : memref<9x16x4xbf16, #tpu.memory_space<vmem>>, vector<1x16x4xbf16>
    %47 = vector.shape_cast %46 : vector<1x16x4xbf16> to vector<16x4xbf16>
    %cst_30 = arith.constant dense<0.000000e+00> : vector<16x512xf32>
    %48 = tpu.matmul %47, %45, %cst_30 {dimension_numbers = #tpu.dot_dimension_numbers<[1], [0], [0], [1], [0, 0, 1, 1], [], []>} : vector<16x4xbf16>, vector<4x512xbf16>, vector<16x512xf32> -> vector<16x512xf32>
    %49 = arith.addf %44, %48 : vector<16x512xf32>
    %c0_31 = arith.constant 0 : index
    %c0_32 = arith.constant 0 : index
    %50 = vector.load %arg6[%c0_31, %c0_32] : memref<16x1xf32, #tpu.memory_space<vmem>>, vector<16x1xf32>
    %51 = vector.broadcast %50 : vector<16x1xf32> to vector<16x512xf32>
    %52 = arith.addf %49, %51 : vector<16x512xf32>
    %53 = vector.extract_strided_slice %52 {offsets = [0, 0], sizes = [8, 512], strides = [1, 1]} : vector<16x512xf32> to vector<8x512xf32>
    %54 = vector.extract_strided_slice %52 {offsets = [8, 0], sizes = [8, 512], strides = [1, 1]} : vector<16x512xf32> to vector<8x512xf32>
    %cst_33 = arith.constant 0.000000e+00 : f32
    %55 = vector.broadcast %cst_33 : f32 to vector<8x512xf32>
    %56 = arith.cmpf oge, %53, %55 : vector<8x512xf32>
    %cst_34 = arith.constant 2.000000e-01 : f32
    %57 = vector.broadcast %cst_34 : f32 to vector<8x512xf32>
    %58 = arith.mulf %57, %53 : vector<8x512xf32>
    %59 = arith.select %56, %53, %58 : vector<8x512xi1>, vector<8x512xf32>
    %60 = arith.negf %54 : vector<8x512xf32>
    %61 = math.exp %60 : vector<8x512xf32>
    %cst_35 = arith.constant 1.000000e+00 : f32
    %62 = vector.broadcast %cst_35 : f32 to vector<8x512xf32>
    %63 = arith.addf %62, %61 : vector<8x512xf32>
    %64 = arith.divf %62, %63 : vector<8x512xf32>
    %65 = arith.mulf %59, %64 : vector<8x512xf32>
    %c0_36 = arith.constant 0 : index
    %c0_37 = arith.constant 0 : index
    %66 = vector.load %arg4[%c0_36, %c0_37] : memref<1x512xf32, #tpu.memory_space<vmem>>, vector<1x512xf32>
    %67 = vector.broadcast %66 : vector<1x512xf32> to vector<8x512xf32>
    %68 = arith.mulf %65, %67 : vector<8x512xf32>
    %c0_38 = arith.constant 0 : index
    %c0_39 = arith.constant 0 : index
    %c0_40 = arith.constant 0 : index
    %69 = vector.load %arg7[%c0_38, %c0_39, %c0_40] : memref<1x8x1xf32, #tpu.memory_space<vmem>>, vector<1x8x1xf32>
    %cst_41 = arith.constant dense<0.000000e+00> : vector<8xf32>
    %70 = vector.multi_reduction <add>, %68, %cst_41 [1] : vector<8x512xf32> to vector<8xf32>
    %71 = vector.shape_cast %70 : vector<8xf32> to vector<8x1xf32>
    %72 = vector.shape_cast %71 : vector<8x1xf32> to vector<1x8x1xf32>
    %73 = arith.addf %69, %72 : vector<1x8x1xf32>
    %c0_42 = arith.constant 0 : index
    %c0_43 = arith.constant 0 : index
    %c0_44 = arith.constant 0 : index
    %74 = vector.load %arg7[%c0_42, %c0_43, %c0_44] : memref<1x8x1xf32, #tpu.memory_space<vmem>>, vector<1x8x1xf32>
    tpu.vector_store %arg7[%c0_42, %c0_43, %c0_44], %73 {strides = array<i32>} : memref<1x8x1xf32, #tpu.memory_space<vmem>>, vector<1x8x1xf32>,
    %c0_45 = arith.constant 0 : index
    %c0_46 = arith.constant 0 : index
    %c0_47 = arith.constant 0 : index
    %75 = vector.load %arg8[%c0_45, %c0_46, %c0_47] : memref<1x8x1xf32, #tpu.memory_space<vmem>>, vector<1x8x1xf32>
    %76 = arith.mulf %68, %68 : vector<8x512xf32>
    %cst_48 = arith.constant dense<0.000000e+00> : vector<8xf32>
    %77 = vector.multi_reduction <add>, %76, %cst_48 [1] : vector<8x512xf32> to vector<8xf32>
    %78 = vector.shape_cast %77 : vector<8xf32> to vector<8x1xf32>
    %79 = vector.shape_cast %78 : vector<8x1xf32> to vector<1x8x1xf32>
    %80 = arith.addf %75, %79 : vector<1x8x1xf32>
    %c0_49 = arith.constant 0 : index
    %c0_50 = arith.constant 0 : index
    %c0_51 = arith.constant 0 : index
    %81 = vector.load %arg8[%c0_49, %c0_50, %c0_51] : memref<1x8x1xf32, #tpu.memory_space<vmem>>, vector<1x8x1xf32>
    tpu.vector_store %arg8[%c0_49, %c0_50, %c0_51], %80 {strides = array<i32>} : memref<1x8x1xf32, #tpu.memory_space<vmem>>, vector<1x8x1xf32>,
    return
  }
  func.func @transform_0(%arg0: i32, %arg1: i32) -> (i32, i32) {
    %c1_i32 = arith.constant 1 : i32
    %0 = arith.muli %arg0, %c1_i32 : i32
    %1 = arith.addi %0, %arg1 : i32
    %c0_i32 = arith.constant 0 : i32
    %c0_i32_0 = arith.constant 0 : i32
    return %c0_i32, %1 : i32, i32
  }
  func.func @transform_1(%arg0: i32, %arg1: i32) -> (i32, i32) {
    %c1_i32 = arith.constant 1 : i32
    %0 = arith.muli %arg0, %c1_i32 : i32
    %1 = arith.addi %0, %arg1 : i32
    %c1_i32_0 = arith.constant 1 : i32
    %2 = arith.addi %1, %c1_i32_0 : i32
    %c0_i32 = arith.constant 0 : i32
    %c0_i32_1 = arith.constant 0 : i32
    return %c0_i32, %2 : i32, i32
  }
  func.func @transform_2(%arg0: i32, %arg1: i32) -> (i32, i32) {
    %c1_i32 = arith.constant 1 : i32
    %0 = arith.muli %arg0, %c1_i32 : i32
    %1 = arith.addi %0, %arg1 : i32
    %c0_i32 = arith.constant 0 : i32
    %c0_i32_0 = arith.constant 0 : i32
    return %c0_i32, %1 : i32, i32
  }
  func.func @transform_3(%arg0: i32, %arg1: i32) -> (i32, i32, i32) {
    %c0_i32 = arith.constant 0 : i32
    %c0_i32_0 = arith.constant 0 : i32
    %c0_i32_1 = arith.constant 0 : i32
    %c0_i32_2 = arith.constant 0 : i32
    return %c0_i32, %c0_i32_0, %c0_i32_1 : i32, i32, i32
  }
  func.func @transform_4(%arg0: i32, %arg1: i32) -> (i32, i32) {
    %c0_i32 = arith.constant 0 : i32
    %c0_i32_0 = arith.constant 0 : i32
    %c0_i32_1 = arith.constant 0 : i32
    return %c0_i32, %c0_i32_0 : i32, i32
  }
  func.func @transform_5(%arg0: i32, %arg1: i32) -> (i32, i32, i32) {
    %c0_i32 = arith.constant 0 : i32
    %c0_i32_0 = arith.constant 0 : i32
    %c0_i32_1 = arith.constant 0 : i32
    return %arg0, %c0_i32, %c0_i32_0 : i32, i32, i32
  }
  func.func @transform_6(%arg0: i32, %arg1: i32) -> (i32, i32, i32) {
    %c0_i32 = arith.constant 0 : i32
    %c0_i32_0 = arith.constant 0 : i32
    %c0_i32_1 = arith.constant 0 : i32
    return %arg0, %c0_i32, %c0_i32_0 : i32, i32, i32
  }
}

module attributes {stable_mosaic.version = 11 : i64} {
  func.func @_apply_kernel(%arg0: i32, %arg1: memref<4x512xbf16, #tpu.memory_space<vmem>>, %arg2: memref<4x512xbf16, #tpu.memory_space<vmem>>, %arg3: memref<9x16x4xbf16, #tpu.memory_space<vmem>>, %arg4: memref<16x1xf32, #tpu.memory_space<vmem>>, %arg5: memref<8x1xf32, #tpu.memory_space<vmem>>, %arg6: memref<8x1xf32, #tpu.memory_space<vmem>>, %arg7: memref<8x512xf32, #tpu.memory_space<vmem>>) attributes {dimension_semantics = [#tpu.dimension_semantics<parallel>], iteration_bounds = array<i64: 2>, scalar_prefetch = 0 : i64, scratch_operands = 0 : i64, tpu.core_type = #tpu.core_type<tc>, window_params = [{transform_indices = @transform_0, window_bounds = array<i64: 4, 512>}, {transform_indices = @transform_1, window_bounds = array<i64: 4, 512>}, {pipeline_mode = #tpu.pipeline_mode<synchronous>, transform_indices = @transform_2, window_bounds = array<i64: 9, 16, 4>}, {pipeline_mode = #tpu.pipeline_mode<synchronous>, transform_indices = @transform_3, window_bounds = array<i64: 16, 1>}, {pipeline_mode = #tpu.pipeline_mode<synchronous>, transform_indices = @transform_4, window_bounds = array<i64: 8, 1>}, {pipeline_mode = #tpu.pipeline_mode<synchronous>, transform_indices = @transform_5, window_bounds = array<i64: 8, 1>}, {transform_indices = @transform_6, window_bounds = array<i64: 8, 512>}]} {
    %c0 = arith.constant 0 : index
    %c0_0 = arith.constant 0 : index
    %0 = vector.load %arg1[%c0, %c0_0] : memref<4x512xbf16, #tpu.memory_space<vmem>>, vector<4x512xbf16>
    %c0_1 = arith.constant 0 : index
    %c0_2 = arith.constant 0 : index
    %1 = vector.load %arg2[%c0_1, %c0_2] : memref<4x512xbf16, #tpu.memory_space<vmem>>, vector<4x512xbf16>
    %2 = tpu.concatenate %0, %1 in 1 : vector<4x512xbf16>, vector<4x512xbf16> -> vector<4x1024xbf16>
    %3 = vector.extract_strided_slice %2 {offsets = [0, 0], sizes = [4, 512], strides = [1, 1]} : vector<4x1024xbf16> to vector<4x512xbf16>
    %c0_3 = arith.constant 0 : index
    %c0_4 = arith.constant 0 : index
    %c0_5 = arith.constant 0 : index
    %4 = vector.load %arg3[%c0_3, %c0_4, %c0_5] : memref<9x16x4xbf16, #tpu.memory_space<vmem>>, vector<1x16x4xbf16>
    %5 = vector.shape_cast %4 : vector<1x16x4xbf16> to vector<16x4xbf16>
    %cst = arith.constant dense<0.000000e+00> : vector<16x512xf32>
    %6 = tpu.matmul %5, %3, %cst {dimension_numbers = #tpu.dot_dimension_numbers<[1], [0], [0], [1], [0, 0, 1, 1], [], []>} : vector<16x4xbf16>, vector<4x512xbf16>, vector<16x512xf32> -> vector<16x512xf32>
    %7 = vector.extract_strided_slice %2 {offsets = [0, 1], sizes = [4, 512], strides = [1, 1]} : vector<4x1024xbf16> to vector<4x512xbf16>
    %c1 = arith.constant 1 : index
    %c0_6 = arith.constant 0 : index
    %c0_7 = arith.constant 0 : index
    %8 = vector.load %arg3[%c1, %c0_6, %c0_7] : memref<9x16x4xbf16, #tpu.memory_space<vmem>>, vector<1x16x4xbf16>
    %9 = vector.shape_cast %8 : vector<1x16x4xbf16> to vector<16x4xbf16>
    %cst_8 = arith.constant dense<0.000000e+00> : vector<16x512xf32>
    %10 = tpu.matmul %9, %7, %cst_8 {dimension_numbers = #tpu.dot_dimension_numbers<[1], [0], [0], [1], [0, 0, 1, 1], [], []>} : vector<16x4xbf16>, vector<4x512xbf16>, vector<16x512xf32> -> vector<16x512xf32>
    %11 = arith.addf %6, %10 : vector<16x512xf32>
    %12 = vector.extract_strided_slice %2 {offsets = [0, 2], sizes = [4, 512], strides = [1, 1]} : vector<4x1024xbf16> to vector<4x512xbf16>
    %c2 = arith.constant 2 : index
    %c0_9 = arith.constant 0 : index
    %c0_10 = arith.constant 0 : index
    %13 = vector.load %arg3[%c2, %c0_9, %c0_10] : memref<9x16x4xbf16, #tpu.memory_space<vmem>>, vector<1x16x4xbf16>
    %14 = vector.shape_cast %13 : vector<1x16x4xbf16> to vector<16x4xbf16>
    %cst_11 = arith.constant dense<0.000000e+00> : vector<16x512xf32>
    %15 = tpu.matmul %14, %12, %cst_11 {dimension_numbers = #tpu.dot_dimension_numbers<[1], [0], [0], [1], [0, 0, 1, 1], [], []>} : vector<16x4xbf16>, vector<4x512xbf16>, vector<16x512xf32> -> vector<16x512xf32>
    %16 = arith.addf %11, %15 : vector<16x512xf32>
    %17 = vector.extract_strided_slice %2 {offsets = [0, 18], sizes = [4, 512], strides = [1, 1]} : vector<4x1024xbf16> to vector<4x512xbf16>
    %c3 = arith.constant 3 : index
    %c0_12 = arith.constant 0 : index
    %c0_13 = arith.constant 0 : index
    %18 = vector.load %arg3[%c3, %c0_12, %c0_13] : memref<9x16x4xbf16, #tpu.memory_space<vmem>>, vector<1x16x4xbf16>
    %19 = vector.shape_cast %18 : vector<1x16x4xbf16> to vector<16x4xbf16>
    %cst_14 = arith.constant dense<0.000000e+00> : vector<16x512xf32>
    %20 = tpu.matmul %19, %17, %cst_14 {dimension_numbers = #tpu.dot_dimension_numbers<[1], [0], [0], [1], [0, 0, 1, 1], [], []>} : vector<16x4xbf16>, vector<4x512xbf16>, vector<16x512xf32> -> vector<16x512xf32>
    %21 = arith.addf %16, %20 : vector<16x512xf32>
    %22 = vector.extract_strided_slice %2 {offsets = [0, 19], sizes = [4, 512], strides = [1, 1]} : vector<4x1024xbf16> to vector<4x512xbf16>
    %c4 = arith.constant 4 : index
    %c0_15 = arith.constant 0 : index
    %c0_16 = arith.constant 0 : index
    %23 = vector.load %arg3[%c4, %c0_15, %c0_16] : memref<9x16x4xbf16, #tpu.memory_space<vmem>>, vector<1x16x4xbf16>
    %24 = vector.shape_cast %23 : vector<1x16x4xbf16> to vector<16x4xbf16>
    %cst_17 = arith.constant dense<0.000000e+00> : vector<16x512xf32>
    %25 = tpu.matmul %24, %22, %cst_17 {dimension_numbers = #tpu.dot_dimension_numbers<[1], [0], [0], [1], [0, 0, 1, 1], [], []>} : vector<16x4xbf16>, vector<4x512xbf16>, vector<16x512xf32> -> vector<16x512xf32>
    %26 = arith.addf %21, %25 : vector<16x512xf32>
    %27 = vector.extract_strided_slice %2 {offsets = [0, 20], sizes = [4, 512], strides = [1, 1]} : vector<4x1024xbf16> to vector<4x512xbf16>
    %c5 = arith.constant 5 : index
    %c0_18 = arith.constant 0 : index
    %c0_19 = arith.constant 0 : index
    %28 = vector.load %arg3[%c5, %c0_18, %c0_19] : memref<9x16x4xbf16, #tpu.memory_space<vmem>>, vector<1x16x4xbf16>
    %29 = vector.shape_cast %28 : vector<1x16x4xbf16> to vector<16x4xbf16>
    %cst_20 = arith.constant dense<0.000000e+00> : vector<16x512xf32>
    %30 = tpu.matmul %29, %27, %cst_20 {dimension_numbers = #tpu.dot_dimension_numbers<[1], [0], [0], [1], [0, 0, 1, 1], [], []>} : vector<16x4xbf16>, vector<4x512xbf16>, vector<16x512xf32> -> vector<16x512xf32>
    %31 = arith.addf %26, %30 : vector<16x512xf32>
    %32 = vector.extract_strided_slice %2 {offsets = [0, 36], sizes = [4, 512], strides = [1, 1]} : vector<4x1024xbf16> to vector<4x512xbf16>
    %c6 = arith.constant 6 : index
    %c0_21 = arith.constant 0 : index
    %c0_22 = arith.constant 0 : index
    %33 = vector.load %arg3[%c6, %c0_21, %c0_22] : memref<9x16x4xbf16, #tpu.memory_space<vmem>>, vector<1x16x4xbf16>
    %34 = vector.shape_cast %33 : vector<1x16x4xbf16> to vector<16x4xbf16>
    %cst_23 = arith.constant dense<0.000000e+00> : vector<16x512xf32>
    %35 = tpu.matmul %34, %32, %cst_23 {dimension_numbers = #tpu.dot_dimension_numbers<[1], [0], [0], [1], [0, 0, 1, 1], [], []>} : vector<16x4xbf16>, vector<4x512xbf16>, vector<16x512xf32> -> vector<16x512xf32>
    %36 = arith.addf %31, %35 : vector<16x512xf32>
    %37 = vector.extract_strided_slice %2 {offsets = [0, 37], sizes = [4, 512], strides = [1, 1]} : vector<4x1024xbf16> to vector<4x512xbf16>
    %c7 = arith.constant 7 : index
    %c0_24 = arith.constant 0 : index
    %c0_25 = arith.constant 0 : index
    %38 = vector.load %arg3[%c7, %c0_24, %c0_25] : memref<9x16x4xbf16, #tpu.memory_space<vmem>>, vector<1x16x4xbf16>
    %39 = vector.shape_cast %38 : vector<1x16x4xbf16> to vector<16x4xbf16>
    %cst_26 = arith.constant dense<0.000000e+00> : vector<16x512xf32>
    %40 = tpu.matmul %39, %37, %cst_26 {dimension_numbers = #tpu.dot_dimension_numbers<[1], [0], [0], [1], [0, 0, 1, 1], [], []>} : vector<16x4xbf16>, vector<4x512xbf16>, vector<16x512xf32> -> vector<16x512xf32>
    %41 = arith.addf %36, %40 : vector<16x512xf32>
    %42 = vector.extract_strided_slice %2 {offsets = [0, 38], sizes = [4, 512], strides = [1, 1]} : vector<4x1024xbf16> to vector<4x512xbf16>
    %c8 = arith.constant 8 : index
    %c0_27 = arith.constant 0 : index
    %c0_28 = arith.constant 0 : index
    %43 = vector.load %arg3[%c8, %c0_27, %c0_28] : memref<9x16x4xbf16, #tpu.memory_space<vmem>>, vector<1x16x4xbf16>
    %44 = vector.shape_cast %43 : vector<1x16x4xbf16> to vector<16x4xbf16>
    %cst_29 = arith.constant dense<0.000000e+00> : vector<16x512xf32>
    %45 = tpu.matmul %44, %42, %cst_29 {dimension_numbers = #tpu.dot_dimension_numbers<[1], [0], [0], [1], [0, 0, 1, 1], [], []>} : vector<16x4xbf16>, vector<4x512xbf16>, vector<16x512xf32> -> vector<16x512xf32>
    %46 = arith.addf %41, %45 : vector<16x512xf32>
    %c0_30 = arith.constant 0 : index
    %c0_31 = arith.constant 0 : index
    %47 = vector.load %arg4[%c0_30, %c0_31] : memref<16x1xf32, #tpu.memory_space<vmem>>, vector<16x1xf32>
    %48 = vector.broadcast %47 : vector<16x1xf32> to vector<16x512xf32>
    %49 = arith.addf %46, %48 : vector<16x512xf32>
    %50 = vector.extract_strided_slice %49 {offsets = [0, 0], sizes = [8, 512], strides = [1, 1]} : vector<16x512xf32> to vector<8x512xf32>
    %51 = vector.extract_strided_slice %49 {offsets = [8, 0], sizes = [8, 512], strides = [1, 1]} : vector<16x512xf32> to vector<8x512xf32>
    %cst_32 = arith.constant 0.000000e+00 : f32
    %52 = vector.broadcast %cst_32 : f32 to vector<8x512xf32>
    %53 = arith.cmpf oge, %50, %52 : vector<8x512xf32>
    %cst_33 = arith.constant 2.000000e-01 : f32
    %54 = vector.broadcast %cst_33 : f32 to vector<8x512xf32>
    %55 = arith.mulf %54, %50 : vector<8x512xf32>
    %56 = arith.select %53, %50, %55 : vector<8x512xi1>, vector<8x512xf32>
    %57 = arith.negf %51 : vector<8x512xf32>
    %58 = math.exp %57 : vector<8x512xf32>
    %cst_34 = arith.constant 1.000000e+00 : f32
    %59 = vector.broadcast %cst_34 : f32 to vector<8x512xf32>
    %60 = arith.addf %59, %58 : vector<8x512xf32>
    %61 = arith.divf %59, %60 : vector<8x512xf32>
    %62 = arith.mulf %56, %61 : vector<8x512xf32>
    %c0_35 = arith.constant 0 : index
    %c0_36 = arith.constant 0 : index
    %63 = vector.load %arg5[%c0_35, %c0_36] : memref<8x1xf32, #tpu.memory_space<vmem>>, vector<8x1xf32>
    %64 = vector.broadcast %63 : vector<8x1xf32> to vector<8x512xf32>
    %65 = arith.mulf %62, %64 : vector<8x512xf32>
    %c0_37 = arith.constant 0 : index
    %c0_38 = arith.constant 0 : index
    %66 = vector.load %arg6[%c0_37, %c0_38] : memref<8x1xf32, #tpu.memory_space<vmem>>, vector<8x1xf32>
    %67 = vector.broadcast %66 : vector<8x1xf32> to vector<8x512xf32>
    %68 = arith.addf %65, %67 : vector<8x512xf32>
    %c0_39 = arith.constant 0 : index
    %c0_40 = arith.constant 0 : index
    %69 = vector.load %arg7[%c0_39, %c0_40] : memref<8x512xf32, #tpu.memory_space<vmem>>, vector<8x512xf32>
    tpu.vector_store %arg7[%c0_39, %c0_40], %68 {strides = array<i32>} : memref<8x512xf32, #tpu.memory_space<vmem>>, vector<8x512xf32>,
    return
  }
  func.func @transform_0(%arg0: i32) -> (i32, i32) {
    %c0_i32 = arith.constant 0 : i32
    %c0_i32_0 = arith.constant 0 : i32
    return %c0_i32, %arg0 : i32, i32
  }
  func.func @transform_1(%arg0: i32) -> (i32, i32) {
    %c1_i32 = arith.constant 1 : i32
    %0 = arith.addi %arg0, %c1_i32 : i32
    %c0_i32 = arith.constant 0 : i32
    %c0_i32_0 = arith.constant 0 : i32
    return %c0_i32, %0 : i32, i32
  }
  func.func @transform_2(%arg0: i32) -> (i32, i32, i32) {
    %c0_i32 = arith.constant 0 : i32
    %c0_i32_0 = arith.constant 0 : i32
    %c0_i32_1 = arith.constant 0 : i32
    %c0_i32_2 = arith.constant 0 : i32
    return %c0_i32, %c0_i32_0, %c0_i32_1 : i32, i32, i32
  }
  func.func @transform_3(%arg0: i32) -> (i32, i32) {
    %c0_i32 = arith.constant 0 : i32
    %c0_i32_0 = arith.constant 0 : i32
    %c0_i32_1 = arith.constant 0 : i32
    return %c0_i32, %c0_i32_0 : i32, i32
  }
  func.func @transform_4(%arg0: i32) -> (i32, i32) {
    %c0_i32 = arith.constant 0 : i32
    %c0_i32_0 = arith.constant 0 : i32
    %c0_i32_1 = arith.constant 0 : i32
    return %c0_i32, %c0_i32_0 : i32, i32
  }
  func.func @transform_5(%arg0: i32) -> (i32, i32) {
    %c0_i32 = arith.constant 0 : i32
    %c0_i32_0 = arith.constant 0 : i32
    %c0_i32_1 = arith.constant 0 : i32
    return %c0_i32, %c0_i32_0 : i32, i32
  }
  func.func @transform_6(%arg0: i32) -> (i32, i32) {
    %c0_i32 = arith.constant 0 : i32
    %c0_i32_0 = arith.constant 0 : i32
    return %c0_i32, %arg0 : i32, i32
  }
}

</mosaic_0001>

<llo_original>
// kernel: mul.21
$region0: #{mul.21}
  #allocation0 [shape = 's32[1]{0}', space=sflag, size = 0x4, scoped, tag = 'scoped memory for mul.21']
  %s0 = inlined_call_operand.vmem [shape: f32[8,1], index: 0, kind: input, shape index: {}]
  %s1 = inlined_call_operand.vmem [shape: f32[8,1], index: 1, kind: input, shape index: {}]
  %s2 = inlined_call_operand.vmem [shape: f32[8,1], index: 2, kind: output, shape index: {}]
  %v3 = vld [vmem:[%s0] sm:$0xff]
  %v4 = vld [vmem:[%s1] sm:$0xff]
  %5 = xla_tuple %v3, %v4
  %6 = xla_tuple %5
  %v7 = vmul.f32 %v3, %v4
  %8 = xla_tuple %v7
  %9 = vst [vmem:[%s2] sm:$0xff] %v7

// kernel: gated_conv2d_with_activation.2
$region0: #{gated_conv2d_with_activation.2}
  #allocation0 [shape = 'u32[]', space=smem, size = 0x4, offset = 0x4, fixed_abs, tag = 'smem constant byte address 0x4 - core index']
  #allocation1 [shape = 'u32[144,128]{1,0:T(1,128)}', space=vmem, size = 0x12000, scoped, tag = 'internal scratch']
  %s0 = inlined_call_operand.vmem [shape: bf16[4,1536], index: 0, kind: input, shape index: {}, may-alias: {0,1}]
  %s1 = inlined_call_operand.vmem [shape: bf16[4,1536], index: 1, kind: input, shape index: {}, may-alias: {0,1}]
  %s2 = inlined_call_operand.vmem [shape: f32[1,1024], index: 2, kind: input, shape index: {}]
  %s3 = inlined_call_operand.vmem [shape: bf16[9,16,4], index: 3, kind: input, shape index: {}]
  %s4 = inlined_call_operand.vmem [shape: f32[16,1], index: 4, kind: input, shape index: {}]
  %s5 = inlined_call_operand.vmem [shape: f32[2,8,1], index: 5, kind: output, shape index: {0}]
  %s6 = inlined_call_operand.vmem [shape: f32[2,8,1], index: 6, kind: output, shape index: {1}]
  %7 = xla_tuple %s5, %s6
  %s8 = sld [smem:[#allocation0]]
  $region65: #{gated_conv2d_with_activation.2} parent=0
    _
  %s10 = ssub.s32 1, %s8
  %s11 = scalar_select 0, %s10, %s8
  loop: start=0, step=1, limit=4
  $region2: #{gated_conv2d_with_activation.2} parent=0 // loop_pre_header
    _
  $region3: #{gated_conv2d_with_activation.2} parent=0 // loop_header
    %s13 = sphi 0, %s17
    %p14 = scmp.ge.s32.totalorder %s13, 4
    %s20 = sphi 0, %s32
    %s21 = sphi 0, %s28
    %s22 = sphi 0, %s20
    %s23 = sphi 0, %s21
    %s24 = sphi 0, %s22
    %s25 = sphi 0, %s23
    %s37 = sphi 0, %s39
    %s40 = sphi 0, %s37
    %s41 = sphi 0, %s40
    %s57 = sphi 0, %s41
    %s67 = sphi 0, %s69
    %s70 = sphi 0, %s67
    %s71 = sphi 0, %s70
    %s87 = sphi 0, %s71
    %s95 = sphi 0, %s97
    %s98 = sphi 0, %s95
    %s99 = sphi 0, %s98
    %s115 = sphi 0, %s99
    %s119 = sphi 0, %s119
    %s121 = sphi 0, %s119
    %s122 = sphi 0, %s121
    %s136 = sphi 0, %s122
    %s140 = sphi 0, %s140
    %s142 = sphi 0, %s140
    %s143 = sphi 0, %s142
    %s157 = sphi 0, %s143
    %s163 = sphi 0, %s165
    %s166 = sphi 0, %s163
    %s167 = sphi 0, %s166
    %s183 = sphi 0, %s167
    %s189 = sphi 0, %s191
    %s192 = sphi 0, %s189
    %s193 = sphi 0, %s192
    %s209 = sphi 0, %s193
  $region4: #{gated_conv2d_with_activation.2} parent=0 // loop_header_branch
    %16 = sbr.rel (%p14) target = $region8
  $region5: #{gated_conv2d_with_activation.2} parent=0 // loop_body
    %s18 = ssub.s32 %s13, 1
    %s19 = ssub.s32 %s13, 2
    %s26 = sadd.s32 1, %s21
    %p27 = scmp.ge.s32.totalorder %s26, 1
    %s28 = scalar_select %p27, 0, %s26
    %s29 = sadd.s32 1, %s20
    %s30 = scalar_select %p27, %s29, %s20
    %p31 = scmp.ge.s32.totalorder %s30, 2
    %s32 = scalar_select %p31, 0, %s30
    %s33 = sadd.s32 %s20, %s21
    %s34 = sadd.s32 %s32, %s28
    %s35 = ssub.s32 %s33, %s34
    %p36 = scmp.eq.s32.totalorder %s35, 0
    %s38 = sadd.s32 %s37, 1
    %s39 = scalar_select %p36, %s37, %s38
    %p42 = pneg %p36
    %p43 = scmp.eq.s32.totalorder %s13, 1
    %p44 = por %p42, %p43
    %p45 = scmp.ne.s32.totalorder %s37, %s40
    %p46 = scmp.eq.s32.totalorder %s13, 0
    %p47 = por %p45, %p46
    %p48 = scmp.ne.s32.totalorder %s37, %s40
    %p49 = scmp.eq.s32.totalorder %s18, 1
    %p50 = por %p48, %p49
    %p51 = scmp.ne.s32.totalorder %s40, %s41
    %p52 = scmp.eq.s32.totalorder %s18, 0
    %p53 = por %p51, %p52
    %p54 = scmp.ne.s32.totalorder %s40, %s41
    %p55 = scmp.eq.s32.totalorder %s19, 1
    %p56 = por %p54, %p55
    %p58 = scmp.ne.s32.totalorder %s41, %s57
    %p59 = scmp.eq.s32.totalorder %s19, 0
    %p60 = por %p58, %p59
    %s61 = sadd.s32 %s20, %s21
    %s62 = sadd.s32 %s61, 1
    %s63 = sadd.s32 %s32, %s28
    %s64 = sadd.s32 %s63, 1
    %s65 = ssub.s32 %s62, %s64
    %p66 = scmp.eq.s32.totalorder %s65, 0
    %s68 = sadd.s32 %s67, 1
    %s69 = scalar_select %p66, %s67, %s68
    %p72 = pneg %p66
    %p73 = scmp.eq.s32.totalorder %s13, 1
    %p74 = por %p72, %p73
    %p75 = scmp.ne.s32.totalorder %s67, %s70
    %p76 = scmp.eq.s32.totalorder %s13, 0
    %p77 = por %p75, %p76
    %p78 = scmp.ne.s32.totalorder %s67, %s70
    %p79 = scmp.eq.s32.totalorder %s18, 1
    %p80 = por %p78, %p79
    %p81 = scmp.ne.s32.totalorder %s70, %s71
    %p82 = scmp.eq.s32.totalorder %s18, 0
    %p83 = por %p81, %p82
    %p84 = scmp.ne.s32.totalorder %s70, %s71
    %p85 = scmp.eq.s32.totalorder %s19, 1
    %p86 = por %p84, %p85
    %p88 = scmp.ne.s32.totalorder %s71, %s87
    %p89 = scmp.eq.s32.totalorder %s19, 0
    %p90 = por %p88, %p89
    %s91 = sadd.s32 %s20, %s21
    %s92 = sadd.s32 %s32, %s28
    %s93 = ssub.s32 %s91, %s92
    %p94 = scmp.eq.s32.totalorder %s93, 0
    %s96 = sadd.s32 %s95, 1
    %s97 = scalar_select %p94, %s95, %s96
    %p100 = pneg %p94
    %p101 = scmp.eq.s32.totalorder %s13, 1
    %p102 = por %p100, %p101
    %p103 = scmp.ne.s32.totalorder %s95, %s98
    %p104 = scmp.eq.s32.totalorder %s13, 0
    %p105 = por %p103, %p104
    %p106 = scmp.ne.s32.totalorder %s95, %s98
    %p107 = scmp.eq.s32.totalorder %s18, 1
    %p108 = por %p106, %p107
    %p109 = scmp.ne.s32.totalorder %s98, %s99
    %p110 = scmp.eq.s32.totalorder %s18, 0
    %p111 = por %p109, %p110
    %p112 = scmp.ne.s32.totalorder %s98, %s99
    %p113 = scmp.eq.s32.totalorder %s19, 1
    %p114 = por %p112, %p113
    %p116 = scmp.ne.s32.totalorder %s99, %s115
    %p117 = scmp.eq.s32.totalorder %s19, 0
    %p118 = por %p116, %p117
    %s120 = sadd.s32 %s119, 1
    %p123 = scmp.eq.s32.totalorder %s13, 1
    %p124 = scmp.ne.s32.totalorder %s119, %s121
    %p125 = scmp.eq.s32.totalorder %s13, 0
    %p126 = por %p124, %p125
    %p127 = scmp.ne.s32.totalorder %s119, %s121
    %p128 = scmp.eq.s32.totalorder %s18, 1
    %p129 = por %p127, %p128
    %p130 = scmp.ne.s32.totalorder %s121, %s122
    %p131 = scmp.eq.s32.totalorder %s18, 0
    %p132 = por %p130, %p131
    %p133 = scmp.ne.s32.totalorder %s121, %s122
    %p134 = scmp.eq.s32.totalorder %s19, 1
    %p135 = por %p133, %p134
    %p137 = scmp.ne.s32.totalorder %s122, %s136
    %p138 = scmp.eq.s32.totalorder %s19, 0
    %p139 = por %p137, %p138
    %s141 = sadd.s32 %s140, 1
    %p144 = scmp.eq.s32.totalorder %s13, 1
    %p145 = scmp.ne.s32.totalorder %s140, %s142
    %p146 = scmp.eq.s32.totalorder %s13, 0
    %p147 = por %p145, %p146
    %p148 = scmp.ne.s32.totalorder %s140, %s142
    %p149 = scmp.eq.s32.totalorder %s18, 1
    %p150 = por %p148, %p149
    %p151 = scmp.ne.s32.totalorder %s142, %s143
    %p152 = scmp.eq.s32.totalorder %s18, 0
    %p153 = por %p151, %p152
    %p154 = scmp.ne.s32.totalorder %s142, %s143
    %p155 = scmp.eq.s32.totalorder %s19, 1
    %p156 = por %p154, %p155
    %p158 = scmp.ne.s32.totalorder %s143, %s157
    %p159 = scmp.eq.s32.totalorder %s19, 0
    %p160 = por %p158, %p159
    %s161 = ssub.s32 %s20, %s32
    %p162 = scmp.eq.s32.totalorder %s161, 0
    %s164 = sadd.s32 %s163, 1
    %s165 = scalar_select %p162, %s163, %s164
    %p168 = pneg %p162
    %p169 = scmp.eq.s32.totalorder %s13, 1
    %p170 = por %p168, %p169
    %p171 = scmp.ne.s32.totalorder %s163, %s166
    %p172 = scmp.eq.s32.totalorder %s13, 0
    %p173 = por %p171, %p172
    %p174 = scmp.ne.s32.totalorder %s163, %s166
    %p175 = scmp.eq.s32.totalorder %s18, 1
    %p176 = por %p174, %p175
    %p177 = scmp.ne.s32.totalorder %s166, %s167
    %p178 = scmp.eq.s32.totalorder %s18, 0
    %p179 = por %p177, %p178
    %p180 = scmp.ne.s32.totalorder %s166, %s167
    %p181 = scmp.eq.s32.totalorder %s19, 1
    %p182 = por %p180, %p181
    %p184 = scmp.ne.s32.totalorder %s167, %s183
    %p185 = scmp.eq.s32.totalorder %s19, 0
    %p186 = por %p184, %p185
    %s187 = ssub.s32 %s20, %s32
    %p188 = scmp.eq.s32.totalorder %s187, 0
    %s190 = sadd.s32 %s189, 1
    %s191 = scalar_select %p188, %s189, %s190
    %p194 = pneg %p188
    %p195 = scmp.eq.s32.totalorder %s13, 1
    %p196 = por %p194, %p195
    %p197 = scmp.ne.s32.totalorder %s189, %s192
    %p198 = scmp.eq.s32.totalorder %s13, 0
    %p199 = por %p197, %p198
    %p200 = scmp.ne.s32.totalorder %s189, %s192
    %p201 = scmp.eq.s32.totalorder %s18, 1
    %p202 = por %p200, %p201
    %p203 = scmp.ne.s32.totalorder %s192, %s193
    %p204 = scmp.eq.s32.totalorder %s18, 0
    %p205 = por %p203, %p204
    %p206 = scmp.ne.s32.totalorder %s192, %s193
    %p207 = scmp.eq.s32.totalorder %s19, 1
    %p208 = por %p206, %p207
    %p210 = scmp.ne.s32.totalorder %s193, %s209
    %p211 = scmp.eq.s32.totalorder %s19, 0
    %p212 = por %p210, %p211
    %p213 = scmp.le.s32.totalorder 1, %s13
    %p214 = scmp.lt.s32.totalorder %s13, 3
    %p215 = pnand %p213, %p214
    %p216 = pneg %p215
    // Predicated region
    $region9: #{gated_conv2d_with_activation.2} parent=5 // pred_check
      _
    $region10: #{gated_conv2d_with_activation.2} parent=5 // pred_check_branch
      %218 = sbr.rel (%p215) target = $region12
    $region11: #{gated_conv2d_with_activation.2} parent=5 // pred_region
      %s219 = ssub.s32 %s13, 1
      // Predicated region
      $region13: #{gated_conv2d_with_activation.2} parent=11 // pred_check
        %p220 = pneg %p132
      $region14: #{gated_conv2d_with_activation.2} parent=11 // pred_check_branch
        %222 = sbr.rel (%p220) target = $region16
      $region15: #{gated_conv2d_with_activation.2} parent=11 // pred_region
        _
      $region16: #{gated_conv2d_with_activation.2} parent=11 // pred_fallthru
        _
      // Predicated region
      $region17: #{gated_conv2d_with_activation.2} parent=11 // pred_check
        %p223 = pneg %p153
      $region18: #{gated_conv2d_with_activation.2} parent=11 // pred_check_branch
        %225 = sbr.rel (%p223) target = $region20
      $region19: #{gated_conv2d_with_activation.2} parent=11 // pred_region
        _
      $region20: #{gated_conv2d_with_activation.2} parent=11 // pred_fallthru
        _
    $region12: #{gated_conv2d_with_activation.2} parent=5 // pred_fallthru
      _
    %p226 = scmp.lt.s32.totalorder %s13, 2
    // Predicated region
    $region21: #{gated_conv2d_with_activation.2} parent=5 // pred_check
      %p227 = pneg %p226
    $region22: #{gated_conv2d_with_activation.2} parent=5 // pred_check_branch
      %229 = sbr.rel (%p227) target = $region24
    $region23: #{gated_conv2d_with_activation.2} parent=5 // pred_region
      // Predicated region
      $region25: #{gated_conv2d_with_activation.2} parent=23 // pred_check
        %p230 = pneg %p47
      $region26: #{gated_conv2d_with_activation.2} parent=23 // pred_check_branch
        %232 = sbr.rel (%p230) target = $region28
      $region27: #{gated_conv2d_with_activation.2} parent=23 // pred_region
        %s233 = sadd.s32 %s20, %s21
        %s234 = smul.u32 4, %s233
        %p235 = scmp.lt.s32.totalorder %s234, 11
        %s236 = scalar_select %p235, %s234, 11
        %s237 = smul.addr %s236, 2
        %s238 = scalar_lea.vmem %s0, %s237
        %s239 = sadd.s32 %s20, %s21
        %s240 = smul.u32 4, %s239
      $region28: #{gated_conv2d_with_activation.2} parent=23 // pred_fallthru
        _
      // Predicated region
      $region29: #{gated_conv2d_with_activation.2} parent=23 // pred_check
        %p241 = pneg %p77
      $region30: #{gated_conv2d_with_activation.2} parent=23 // pred_check_branch
        %243 = sbr.rel (%p241) target = $region32
      $region31: #{gated_conv2d_with_activation.2} parent=23 // pred_region
        %s244 = sadd.s32 %s20, %s21
        %s245 = sadd.s32 %s244, 1
        %s246 = smul.u32 4, %s245
        %p247 = scmp.lt.s32.totalorder %s246, 11
        %s248 = scalar_select %p247, %s246, 11
        %s249 = smul.addr %s248, 2
        %s250 = scalar_lea.vmem %s1, %s249
        %s251 = sadd.s32 %s20, %s21
        %s252 = sadd.s32 %s251, 1
        %s253 = smul.u32 4, %s252
      $region32: #{gated_conv2d_with_activation.2} parent=23 // pred_fallthru
        _
      // Predicated region
      $region33: #{gated_conv2d_with_activation.2} parent=23 // pred_check
        %p254 = pneg %p105
      $region34: #{gated_conv2d_with_activation.2} parent=23 // pred_check_branch
        %256 = sbr.rel (%p254) target = $region36
      $region35: #{gated_conv2d_with_activation.2} parent=23 // pred_region
        %s257 = sadd.s32 %s20, %s21
        %s258 = smul.u32 4, %s257
        %p259 = scmp.lt.s32.totalorder %s258, 7
        %s260 = scalar_select %p259, %s258, 7
        %s261 = scalar_lea.vmem %s2, %s260
        %s262 = sadd.s32 %s20, %s21
        %s263 = smul.u32 4, %s262
      $region36: #{gated_conv2d_with_activation.2} parent=23 // pred_fallthru
        _
    $region24: #{gated_conv2d_with_activation.2} parent=5 // pred_fallthru
      _
    %p264 = scmp.le.s32.totalorder 1, %s13
    %p265 = scmp.lt.s32.totalorder %s13, 3
    %p266 = pnand %p264, %p265
    %p267 = pneg %p266
    // Predicated region
    $region37: #{gated_conv2d_with_activation.2} parent=5 // pred_check
      _
    $region38: #{gated_conv2d_with_activation.2} parent=5 // pred_check_branch
      %269 = sbr.rel (%p266) target = $region40
    $region39: #{gated_conv2d_with_activation.2} parent=5 // pred_region
      %s270 = ssub.s32 %s13, 1
      %s271 = sadd.s32 %s22, %s23
      %s272 = smul.u32 4, %s271
      %p273 = scmp.lt.s32.totalorder %s272, 11
      %s274 = scalar_select %p273, %s272, 11
      %s275 = smul.addr %s274, 2
      %s276 = scalar_lea.vmem %s0, %s275
      %p277 = pneg %p53
      %p278 = pneg %p50
      %s279 = sadd.s32 %s22, %s23
      %s280 = sadd.s32 %s279, 1
      %s281 = smul.u32 4, %s280
      %p282 = scmp.lt.s32.totalorder %s281, 11
      %s283 = scalar_select %p282, %s281, 11
      %s284 = smul.addr %s283, 2
      %s285 = scalar_lea.vmem %s1, %s284
      %p286 = pneg %p83
      %p287 = pneg %p80
      %s288 = sadd.s32 %s22, %s23
      %s289 = smul.u32 4, %s288
      %p290 = scmp.lt.s32.totalorder %s289, 7
      %s291 = scalar_select %p290, %s289, 7
      %s292 = scalar_lea.vmem %s2, %s291
      %p293 = pneg %p111
      %p294 = pneg %p108
      %p295 = pneg %p132
      %p296 = pneg %p129
      %p297 = pneg %p153
      %p298 = pneg %p150
      %p299 = pneg %p179
      %p300 = pneg %p176
      %p301 = scmp.lt.s32.totalorder %s22, 1
      %s302 = scalar_select %p301, %s22, 1
      %s303 = smul.addr %s302, 8
      %s304 = scalar_lea.vmem %s5, %s303
      %p305 = pneg %p205
      %p306 = pneg %p202
      %p307 = scmp.lt.s32.totalorder %s22, 1
      %s308 = scalar_select %p307, %s22, 1
      %s309 = smul.addr %s308, 8
      %s310 = scalar_lea.vmem %s6, %s309
      %s311 = sadd.s32 %s22, %s23
      %s312 = smul.u32 4, %s311
      %p313 = scmp.lt.s32.totalorder %s312, 11
      %s314 = scalar_select %p313, %s312, 11
      %s315 = smul.addr %s314, 2
      %s316 = scalar_lea.vmem %s0, %s315
      %s317 = sadd.s32 %s22, %s23
      %s318 = smul.u32 4, %s317
      %s319 = sadd.s32 %s22, %s23
      %s320 = sadd.s32 %s319, 1
      %s321 = smul.u32 4, %s320
      %p322 = scmp.lt.s32.totalorder %s321, 11
      %s323 = scalar_select %p322, %s321, 11
      %s324 = smul.addr %s323, 2
      %s325 = scalar_lea.vmem %s1, %s324
      %s326 = sadd.s32 %s22, %s23
      %s327 = sadd.s32 %s326, 1
      %s328 = smul.u32 4, %s327
      %s329 = sadd.s32 %s22, %s23
      %s330 = smul.u32 4, %s329
      %p331 = scmp.lt.s32.totalorder %s330, 7
      %s332 = scalar_select %p331, %s330, 7
      %s333 = scalar_lea.vmem %s2, %s332
      %s334 = sadd.s32 %s22, %s23
      %s335 = smul.u32 4, %s334
      %p336 = scmp.lt.s32.totalorder %s22, 1
      %s337 = scalar_select %p336, %s22, 1
      %s338 = smul.addr %s337, 8
      %s339 = scalar_lea.vmem %s5, %s338
      %p340 = scmp.lt.s32.totalorder %s22, 1
      %s341 = scalar_select %p340, %s22, 1
      %s342 = smul.addr %s341, 8
      %s343 = scalar_lea.vmem %s6, %s342
      %p345 = scmp.eq.s32.totalorder %s23, 0
      // Predicated region
      $region41: #{gated_conv2d_with_activation.2} parent=39 // pred_check
        %p346 = pneg %p345
      $region42: #{gated_conv2d_with_activation.2} parent=39 // pred_check_branch
        %348 = sbr.rel (%p346) target = $region44
      $region43: #{gated_conv2d_with_activation.2} parent=39 // pred_region
        %vm349 = vcmask 7168
        %350 = vst.msk [vmem:[%s339] sm:$0xff] %vm349, 0.0
        %351 = vst.msk [vmem:[%s343] sm:$0xff] %vm349, 0.0
      $region44: #{gated_conv2d_with_activation.2} parent=39 // pred_fallthru
        _
      %v352 = vld [vmem:[%s316] sm:$0xff]
      %v353 = vld [vmem:[%s325] sm:$0xff]
      %v355 = vcombine.high %v352, %v352
      %v357 = vunpack.c.l.s4 1983009808
      %v358 = vunpack.c.0.s8 %v357
      %v359 = vlaneseq
      %v360 = vshrl.u32 %v359, 7
      %v361 = vsub.s32 %v358, %v360
      %v362 = vrot.slane %v352, %v361
      %v364 = vunpack.c.l.s4 1983009808
      %v365 = vunpack.c.0.s8 %v364
      %v366 = vlaneseq
      %v367 = vshrl.u32 %v366, 7
      %v368 = vsub.s32 %v365, %v367
      %v369 = vrot.slane %v355, %v368
      %v370 = vcombine.high %v362, %v362
      %v371 = vcombine.high %v369, %v369
      %v374 = vunpack.c.l.s4 1983009808
      %v375 = vunpack.c.0.s8 %v374
      %v376 = vlaneseq
      %v377 = vshrl.u32 %v376, 7
      %v378 = vsub.s32 %v375, %v377
      %v379 = vrot.slane %v353, %v378
      %v380 = vld [vmem:[%s3] sm:$0xf]
      %v381 = vld [vmem:[%s3 + $0x4] sm:$0xf]
      %s382 = scalar_lea.vmem %s3, 8
      %v383 = vld [vmem:[%s382] sm:$0xf]
      %v384 = vld [vmem:[%s382 + $0x4] sm:$0xf]
      %v387 = vunpack.c.l.b16 %v383
      %v388 = vunpack.c.l.b16 %v384
      %v389 = vpack.c.b16 %v388, %v387
      %390 = vrot.lane.b32.xlu0 %v362, 127
      %v391 = vpop.permute.xlu0 %390
      %392 = vrot.lane.b32.xlu0 %v370, 127
      %v393 = vpop.permute.xlu0 %392
      %394 = vrot.lane.b32.xlu0 %v369, 127
      %v395 = vpop.permute.xlu0 %394
      %396 = vrot.lane.b32.xlu0 %v371, 127
      %v397 = vpop.permute.xlu0 %396
      %398 = vrot.lane.b32.xlu0 %v379, 127
      %v399 = vpop.permute.xlu0 %398
      %vm400 = vcmask 1039360
      %v401 = vsel %vm400, %v391, %v393
      %v402 = vsel %vm400, %v393, %v395
      %v403 = vsel %vm400, %v395, %v397
      %v404 = vsel %vm400, %v397, %v399
      %vm405 = vcmask 31744
      %v407 = vsel %vm405, %v389, 0
      %vm409 = vcmask 1041408
      %v411 = vsel %vm409, %v401, 0
      %v414 = vsel %vm409, %v402, 0
      %v417 = vsel %vm409, %v403, 0
      %v420 = vsel %vm409, %v404, 0
      %422 = vmatprep.subr.bf16.mxu0 0
      %423 = vmatpush1.bf16.msra.mxu0 0
      %424 = vmatprep.subr.bf16.mxu0 0
      %425 = vmatpush1.bf16.msra.mxu0 0
      %426 = vmatprep.subr.bf16.mxu0 0
      %427 = vmatpush1.bf16.msra.mxu0 0
      %428 = vmatprep.subr.bf16.mxu0 0
      %429 = vmatpush1.bf16.msra.mxu0 0
      %430 = vmatprep.subr.bf16.mxu0 0
      %431 = vmatpush1.bf16.msra.mxu0 0
      %432 = vmatprep.subr.bf16.mxu0 0
      %433 = vmatpush1.bf16.msra.mxu0 0
      %434 = vmatprep.subr.bf16.mxu0 0
      %435 = vmatpush1.bf16.msra.mxu0 0
      %436 = vmatprep.subr.bf16.mxu0 %v414
      %437 = vmatpush1.bf16.msra.mxu0 %v411
      %438 = vmatprep.subr.bf16.mxu0 0
      %439 = vmatpush2.bf16.msra.mxu0 0
      %440 = vmatprep.subr.bf16.mxu0 0
      %441 = vmatpush2.bf16.msra.mxu0 0
      %442 = vmatprep.subr.bf16.mxu0 0
      %443 = vmatpush2.bf16.msra.mxu0 0
      %444 = vmatprep.subr.bf16.mxu0 0
      %445 = vmatpush2.bf16.msra.mxu0 0
      %446 = vmatprep.subr.bf16.mxu0 0
      %447 = vmatpush2.bf16.msra.mxu0 0
      %448 = vmatprep.subr.bf16.mxu0 0
      %449 = vmatpush2.bf16.msra.mxu0 0
      %450 = vmatprep.subr.bf16.mxu0 0
      %451 = vmatpush2.bf16.msra.mxu0 0
      %452 = vmatprep.subr.bf16.mxu0 0
      %453 = vmatpush2.bf16.msra.mxu0 0
      %454 = vmatprep.mubr.bf16.mxu0 0
      %455 = vmatmul.mubr.bf16.gmra.mxu0 %v407
      %v456 = vpop.f32.mrf.mxu0
      %v457 = vadd.f32 0.0, %v456
      %v458 = vpop.f32.mrf.mxu0
      %v459 = vadd.f32 0.0, %v458
      %v460 = vpop.f32.mrf.mxu0
      %v461 = vadd.f32 0.0, %v460
      %v462 = vpop.f32.mrf.mxu0
      %v463 = vadd.f32 0.0, %v462
      %464 = vdwg.mxu0
      %465 = vmatprep.subr.bf16.mxu0 0
      %466 = vmatpush1.bf16.msra.mxu0 0
      %467 = vmatprep.subr.bf16.mxu0 0
      %468 = vmatpush1.bf16.msra.mxu0 0
      %469 = vmatprep.subr.bf16.mxu0 0
      %470 = vmatpush1.bf16.msra.mxu0 0
      %471 = vmatprep.subr.bf16.mxu0 0
      %472 = vmatpush1.bf16.msra.mxu0 0
      %473 = vmatprep.subr.bf16.mxu0 0
      %474 = vmatpush1.bf16.msra.mxu0 0
      %475 = vmatprep.subr.bf16.mxu0 0
      %476 = vmatpush1.bf16.msra.mxu0 0
      %477 = vmatprep.subr.bf16.mxu0 0
      %478 = vmatpush1.bf16.msra.mxu0 0
      %479 = vmatprep.subr.bf16.mxu0 %v420
      %480 = vmatpush1.bf16.msra.mxu0 %v417
      %481 = vmatprep.subr.bf16.mxu0 0
      %482 = vmatpush2.bf16.msra.mxu0 0
      %483 = vmatprep.subr.bf16.mxu0 0
      %484 = vmatpush2.bf16.msra.mxu0 0
      %485 = vmatprep.subr.bf16.mxu0 0
      %486 = vmatpush2.bf16.msra.mxu0 0
      %487 = vmatprep.subr.bf16.mxu0 0
      %488 = vmatpush2.bf16.msra.mxu0 0
      %489 = vmatprep.subr.bf16.mxu0 0
      %490 = vmatpush2.bf16.msra.mxu0 0
      %491 = vmatprep.subr.bf16.mxu0 0
      %492 = vmatpush2.bf16.msra.mxu0 0
      %493 = vmatprep.subr.bf16.mxu0 0
      %494 = vmatpush2.bf16.msra.mxu0 0
      %495 = vmatprep.subr.bf16.mxu0 0
      %496 = vmatpush2.bf16.msra.mxu0 0
      %497 = vmatprep.mubr.bf16.mxu0 0
      %498 = vmatmul.mubr.bf16.gmra.mxu0 %v407
      %v499 = vpop.f32.mrf.mxu0
      %v500 = vadd.f32 0.0, %v499
      %v501 = vpop.f32.mrf.mxu0
      %v502 = vadd.f32 0.0, %v501
      %v503 = vpop.f32.mrf.mxu0
      %v504 = vadd.f32 0.0, %v503
      %v505 = vpop.f32.mrf.mxu0
      %v506 = vadd.f32 0.0, %v505
      %507 = vdwg.mxu0
      %v510 = vunpack.c.l.b16 %v380
      %v511 = vunpack.c.l.b16 %v381
      %v512 = vpack.c.b16 %v511, %v510
      %v514 = vsel %vm405, %v512, 0
      %v517 = vsel %vm409, %v362, 0
      %v520 = vsel %vm409, %v370, 0
      %v523 = vsel %vm409, %v369, 0
      %v526 = vsel %vm409, %v371, 0
      %528 = vmatprep.subr.bf16.mxu0 0
      %529 = vmatpush1.bf16.msra.mxu0 0
      %530 = vmatprep.subr.bf16.mxu0 0
      %531 = vmatpush1.bf16.msra.mxu0 0
      %532 = vmatprep.subr.bf16.mxu0 0
      %533 = vmatpush1.bf16.msra.mxu0 0
      %534 = vmatprep.subr.bf16.mxu0 0
      %535 = vmatpush1.bf16.msra.mxu0 0
      %536 = vmatprep.subr.bf16.mxu0 0
      %537 = vmatpush1.bf16.msra.mxu0 0
      %538 = vmatprep.subr.bf16.mxu0 0
      %539 = vmatpush1.bf16.msra.mxu0 0
      %540 = vmatprep.subr.bf16.mxu0 0
      %541 = vmatpush1.bf16.msra.mxu0 0
      %542 = vmatprep.subr.bf16.mxu0 %v520
      %543 = vmatpush1.bf16.msra.mxu0 %v517
      %544 = vmatprep.subr.bf16.mxu0 0
      %545 = vmatpush2.bf16.msra.mxu0 0
      %546 = vmatprep.subr.bf16.mxu0 0
      %547 = vmatpush2.bf16.msra.mxu0 0
      %548 = vmatprep.subr.bf16.mxu0 0
      %549 = vmatpush2.bf16.msra.mxu0 0
      %550 = vmatprep.subr.bf16.mxu0 0
      %551 = vmatpush2.bf16.msra.mxu0 0
      %552 = vmatprep.subr.bf16.mxu0 0
      %553 = vmatpush2.bf16.msra.mxu0 0
      %554 = vmatprep.subr.bf16.mxu0 0
      %555 = vmatpush2.bf16.msra.mxu0 0
      %556 = vmatprep.subr.bf16.mxu0 0
      %557 = vmatpush2.bf16.msra.mxu0 0
      %558 = vmatprep.subr.bf16.mxu0 0
      %559 = vmatpush2.bf16.msra.mxu0 0
      %560 = vmatprep.mubr.bf16.mxu0 0
      %561 = vmatmul.mubr.bf16.gmra.mxu0 %v514
      %v562 = vpop.f32.mrf.mxu0
      %v563 = vadd.f32 %v457, %v562
      %v564 = vpop.f32.mrf.mxu0
      %v565 = vadd.f32 %v459, %v564
      %v566 = vpop.f32.mrf.mxu0
      %v567 = vadd.f32 %v461, %v566
      %v568 = vpop.f32.mrf.mxu0
      %v569 = vadd.f32 %v463, %v568
      %570 = vdwg.mxu0
      %571 = vmatprep.subr.bf16.mxu0 0
      %572 = vmatpush1.bf16.msra.mxu0 0
      %573 = vmatprep.subr.bf16.mxu0 0
      %574 = vmatpush1.bf16.msra.mxu0 0
      %575 = vmatprep.subr.bf16.mxu0 0
      %576 = vmatpush1.bf16.msra.mxu0 0
      %577 = vmatprep.subr.bf16.mxu0 0
      %578 = vmatpush1.bf16.msra.mxu0 0
      %579 = vmatprep.subr.bf16.mxu0 0
      %580 = vmatpush1.bf16.msra.mxu0 0
      %581 = vmatprep.subr.bf16.mxu0 0
      %582 = vmatpush1.bf16.msra.mxu0 0
      %583 = vmatprep.subr.bf16.mxu0 0
      %584 = vmatpush1.bf16.msra.mxu0 0
      %585 = vmatprep.subr.bf16.mxu0 %v526
      %586 = vmatpush1.bf16.msra.mxu0 %v523
      %587 = vmatprep.subr.bf16.mxu0 0
      %588 = vmatpush2.bf16.msra.mxu0 0
      %589 = vmatprep.subr.bf16.mxu0 0
      %590 = vmatpush2.bf16.msra.mxu0 0
      %591 = vmatprep.subr.bf16.mxu0 0
      %592 = vmatpush2.bf16.msra.mxu0 0
      %593 = vmatprep.subr.bf16.mxu0 0
      %594 = vmatpush2.bf16.msra.mxu0 0
      %595 = vmatprep.subr.bf16.mxu0 0
      %596 = vmatpush2.bf16.msra.mxu0 0
      %597 = vmatprep.subr.bf16.mxu0 0
      %598 = vmatpush2.bf16.msra.mxu0 0
      %599 = vmatprep.subr.bf16.mxu0 0
      %600 = vmatpush2.bf16.msra.mxu0 0
      %601 = vmatprep.subr.bf16.mxu0 0
      %602 = vmatpush2.bf16.msra.mxu0 0
      %603 = vmatprep.mubr.bf16.mxu0 0
      %604 = vmatmul.mubr.bf16.gmra.mxu0 %v514
      %v605 = vpop.f32.mrf.mxu0
      %v606 = vadd.f32 %v500, %v605
      %v607 = vpop.f32.mrf.mxu0
      %v608 = vadd.f32 %v502, %v607
      %v609 = vpop.f32.mrf.mxu0
      %v610 = vadd.f32 %v504, %v609
      %v611 = vpop.f32.mrf.mxu0
      %v612 = vadd.f32 %v506, %v611
      %613 = vdwg.mxu0
      %s614 = scalar_lea.vmem %s3, 16
      %v615 = vld [vmem:[%s614] sm:$0xf]
      %v616 = vld [vmem:[%s614 + $0x4] sm:$0xf]
      %v619 = vunpack.c.l.b16 %v615
      %v620 = vunpack.c.l.b16 %v616
      %v621 = vpack.c.b16 %v620, %v619
      %622 = vrot.lane.b32.xlu0 %v362, 126
      %v623 = vpop.permute.xlu0 %622
      %624 = vrot.lane.b32.xlu0 %v370, 126
      %v625 = vpop.permute.xlu0 %624
      %626 = vrot.lane.b32.xlu0 %v369, 126
      %v627 = vpop.permute.xlu0 %626
      %628 = vrot.lane.b32.xlu0 %v371, 126
      %v629 = vpop.permute.xlu0 %628
      %630 = vrot.lane.b32.xlu0 %v379, 126
      %v631 = vpop.permute.xlu0 %630
      %vm632 = vcmask 1031168
      %v633 = vsel %vm632, %v623, %v625
      %v634 = vsel %vm632, %v625, %v627
      %v635 = vsel %vm632, %v627, %v629
      %v636 = vsel %vm632, %v629, %v631
      %v638 = vsel %vm405, %v621, 0
      %v641 = vsel %vm409, %v633, 0
      %v644 = vsel %vm409, %v634, 0
      %v647 = vsel %vm409, %v635, 0
      %v650 = vsel %vm409, %v636, 0
      %652 = vmatprep.subr.bf16.mxu0 0
      %653 = vmatpush1.bf16.msra.mxu0 0
      %654 = vmatprep.subr.bf16.mxu0 0
      %655 = vmatpush1.bf16.msra.mxu0 0
      %656 = vmatprep.subr.bf16.mxu0 0
      %657 = vmatpush1.bf16.msra.mxu0 0
      %658 = vmatprep.subr.bf16.mxu0 0
      %659 = vmatpush1.bf16.msra.mxu0 0
      %660 = vmatprep.subr.bf16.mxu0 0
      %661 = vmatpush1.bf16.msra.mxu0 0
      %662 = vmatprep.subr.bf16.mxu0 0
      %663 = vmatpush1.bf16.msra.mxu0 0
      %664 = vmatprep.subr.bf16.mxu0 0
      %665 = vmatpush1.bf16.msra.mxu0 0
      %666 = vmatprep.subr.bf16.mxu0 %v644
      %667 = vmatpush1.bf16.msra.mxu0 %v641
      %668 = vmatprep.subr.bf16.mxu0 0
      %669 = vmatpush2.bf16.msra.mxu0 0
      %670 = vmatprep.subr.bf16.mxu0 0
      %671 = vmatpush2.bf16.msra.mxu0 0
      %672 = vmatprep.subr.bf16.mxu0 0
      %673 = vmatpush2.bf16.msra.mxu0 0
      %674 = vmatprep.subr.bf16.mxu0 0
      %675 = vmatpush2.bf16.msra.mxu0 0
      %676 = vmatprep.subr.bf16.mxu0 0
      %677 = vmatpush2.bf16.msra.mxu0 0
      %678 = vmatprep.subr.bf16.mxu0 0
      %679 = vmatpush2.bf16.msra.mxu0 0
      %680 = vmatprep.subr.bf16.mxu0 0
      %681 = vmatpush2.bf16.msra.mxu0 0
      %682 = vmatprep.subr.bf16.mxu0 0
      %683 = vmatpush2.bf16.msra.mxu0 0
      %684 = vmatprep.mubr.bf16.mxu0 0
      %685 = vmatmul.mubr.bf16.gmra.mxu0 %v638
      %v686 = vpop.f32.mrf.mxu0
      %v687 = vadd.f32 0.0, %v686
      %v688 = vpop.f32.mrf.mxu0
      %v689 = vadd.f32 0.0, %v688
      %v690 = vpop.f32.mrf.mxu0
      %v691 = vadd.f32 0.0, %v690
      %v692 = vpop.f32.mrf.mxu0
      %v693 = vadd.f32 0.0, %v692
      %694 = vdwg.mxu0
      %695 = vmatprep.subr.bf16.mxu0 0
      %696 = vmatpush1.bf16.msra.mxu0 0
      %697 = vmatprep.subr.bf16.mxu0 0
      %698 = vmatpush1.bf16.msra.mxu0 0
      %699 = vmatprep.subr.bf16.mxu0 0
      %700 = vmatpush1.bf16.msra.mxu0 0
      %701 = vmatprep.subr.bf16.mxu0 0
      %702 = vmatpush1.bf16.msra.mxu0 0
      %703 = vmatprep.subr.bf16.mxu0 0
      %704 = vmatpush1.bf16.msra.mxu0 0
      %705 = vmatprep.subr.bf16.mxu0 0
      %706 = vmatpush1.bf16.msra.mxu0 0
      %707 = vmatprep.subr.bf16.mxu0 0
      %708 = vmatpush1.bf16.msra.mxu0 0
      %709 = vmatprep.subr.bf16.mxu0 %v650
      %710 = vmatpush1.bf16.msra.mxu0 %v647
      %711 = vmatprep.subr.bf16.mxu0 0
      %712 = vmatpush2.bf16.msra.mxu0 0
      %713 = vmatprep.subr.bf16.mxu0 0
      %714 = vmatpush2.bf16.msra.mxu0 0
      %715 = vmatprep.subr.bf16.mxu0 0
      %716 = vmatpush2.bf16.msra.mxu0 0
      %717 = vmatprep.subr.bf16.mxu0 0
      %718 = vmatpush2.bf16.msra.mxu0 0
      %719 = vmatprep.subr.bf16.mxu0 0
      %720 = vmatpush2.bf16.msra.mxu0 0
      %721 = vmatprep.subr.bf16.mxu0 0
      %722 = vmatpush2.bf16.msra.mxu0 0
      %723 = vmatprep.subr.bf16.mxu0 0
      %724 = vmatpush2.bf16.msra.mxu0 0
      %725 = vmatprep.subr.bf16.mxu0 0
      %726 = vmatpush2.bf16.msra.mxu0 0
      %727 = vmatprep.mubr.bf16.mxu0 0
      %728 = vmatmul.mubr.bf16.gmra.mxu0 %v638
      %v729 = vpop.f32.mrf.mxu0
      %v730 = vadd.f32 0.0, %v729
      %v731 = vpop.f32.mrf.mxu0
      %v732 = vadd.f32 0.0, %v731
      %v733 = vpop.f32.mrf.mxu0
      %v734 = vadd.f32 0.0, %v733
      %v735 = vpop.f32.mrf.mxu0
      %v736 = vadd.f32 0.0, %v735
      %737 = vdwg.mxu0
      %v738 = vadd.f32 %v563, %v687
      %v739 = vadd.f32 %v565, %v689
      %v740 = vadd.f32 %v606, %v730
      %v741 = vadd.f32 %v608, %v732
      %v742 = vadd.f32 %v567, %v691
      %v743 = vadd.f32 %v569, %v693
      %v744 = vadd.f32 %v610, %v734
      %v745 = vadd.f32 %v612, %v736
      %s746 = scalar_lea.vmem %s3, 24
      %v747 = vld [vmem:[%s746] sm:$0xf]
      %v748 = vld [vmem:[%s746 + $0x4] sm:$0xf]
      %v751 = vunpack.c.l.b16 %v747
      %v752 = vunpack.c.l.b16 %v748
      %v753 = vpack.c.b16 %v752, %v751
      %754 = vrot.lane.b32.xlu0 %v362, 110
      %v755 = vpop.permute.xlu0 %754
      %756 = vrot.lane.b32.xlu0 %v370, 110
      %v757 = vpop.permute.xlu0 %756
      %758 = vrot.lane.b32.xlu0 %v369, 110
      %v759 = vpop.permute.xlu0 %758
      %760 = vrot.lane.b32.xlu0 %v371, 110
      %v761 = vpop.permute.xlu0 %760
      %762 = vrot.lane.b32.xlu0 %v379, 110
      %v763 = vpop.permute.xlu0 %762
      %vm764 = vcmask 900096
      %v765 = vsel %vm764, %v755, %v757
      %v766 = vsel %vm764, %v757, %v759
      %v767 = vsel %vm764, %v759, %v761
      %v768 = vsel %vm764, %v761, %v763
      %v770 = vsel %vm405, %v753, 0
      %v773 = vsel %vm409, %v765, 0
      %v776 = vsel %vm409, %v766, 0
      %v779 = vsel %vm409, %v767, 0
      %v782 = vsel %vm409, %v768, 0
      %784 = vmatprep.subr.bf16.mxu0 0
      %785 = vmatpush1.bf16.msra.mxu0 0
      %786 = vmatprep.subr.bf16.mxu0 0
      %787 = vmatpush1.bf16.msra.mxu0 0
      %788 = vmatprep.subr.bf16.mxu0 0
      %789 = vmatpush1.bf16.msra.mxu0 0
      %790 = vmatprep.subr.bf16.mxu0 0
      %791 = vmatpush1.bf16.msra.mxu0 0
      %792 = vmatprep.subr.bf16.mxu0 0
      %793 = vmatpush1.bf16.msra.mxu0 0
      %794 = vmatprep.subr.bf16.mxu0 0
      %795 = vmatpush1.bf16.msra.mxu0 0
      %796 = vmatprep.subr.bf16.mxu0 0
      %797 = vmatpush1.bf16.msra.mxu0 0
      %798 = vmatprep.subr.bf16.mxu0 %v776
      %799 = vmatpush1.bf16.msra.mxu0 %v773
      %800 = vmatprep.subr.bf16.mxu0 0
      %801 = vmatpush2.bf16.msra.mxu0 0
      %802 = vmatprep.subr.bf16.mxu0 0
      %803 = vmatpush2.bf16.msra.mxu0 0
      %804 = vmatprep.subr.bf16.mxu0 0
      %805 = vmatpush2.bf16.msra.mxu0 0
      %806 = vmatprep.subr.bf16.mxu0 0
      %807 = vmatpush2.bf16.msra.mxu0 0
      %808 = vmatprep.subr.bf16.mxu0 0
      %809 = vmatpush2.bf16.msra.mxu0 0
      %810 = vmatprep.subr.bf16.mxu0 0
      %811 = vmatpush2.bf16.msra.mxu0 0
      %812 = vmatprep.subr.bf16.mxu0 0
      %813 = vmatpush2.bf16.msra.mxu0 0
      %814 = vmatprep.subr.bf16.mxu0 0
      %815 = vmatpush2.bf16.msra.mxu0 0
      %816 = vmatprep.mubr.bf16.mxu0 0
      %817 = vmatmul.mubr.bf16.gmra.mxu0 %v770
      %v818 = vpop.f32.mrf.mxu0
      %v819 = vadd.f32 0.0, %v818
      %v820 = vpop.f32.mrf.mxu0
      %v821 = vadd.f32 0.0, %v820
      %v822 = vpop.f32.mrf.mxu0
      %v823 = vadd.f32 0.0, %v822
      %v824 = vpop.f32.mrf.mxu0
      %v825 = vadd.f32 0.0, %v824
      %826 = vdwg.mxu0
      %827 = vmatprep.subr.bf16.mxu0 0
      %828 = vmatpush1.bf16.msra.mxu0 0
      %829 = vmatprep.subr.bf16.mxu0 0
      %830 = vmatpush1.bf16.msra.mxu0 0
      %831 = vmatprep.subr.bf16.mxu0 0
      %832 = vmatpush1.bf16.msra.mxu0 0
      %833 = vmatprep.subr.bf16.mxu0 0
      %834 = vmatpush1.bf16.msra.mxu0 0
      %835 = vmatprep.subr.bf16.mxu0 0
      %836 = vmatpush1.bf16.msra.mxu0 0
      %837 = vmatprep.subr.bf16.mxu0 0
      %838 = vmatpush1.bf16.msra.mxu0 0
      %839 = vmatprep.subr.bf16.mxu0 0
      %840 = vmatpush1.bf16.msra.mxu0 0
      %841 = vmatprep.subr.bf16.mxu0 %v782
      %842 = vmatpush1.bf16.msra.mxu0 %v779
      %843 = vmatprep.subr.bf16.mxu0 0
      %844 = vmatpush2.bf16.msra.mxu0 0
      %845 = vmatprep.subr.bf16.mxu0 0
      %846 = vmatpush2.bf16.msra.mxu0 0
      %847 = vmatprep.subr.bf16.mxu0 0
      %848 = vmatpush2.bf16.msra.mxu0 0
      %849 = vmatprep.subr.bf16.mxu0 0
      %850 = vmatpush2.bf16.msra.mxu0 0
      %851 = vmatprep.subr.bf16.mxu0 0
      %852 = vmatpush2.bf16.msra.mxu0 0
      %853 = vmatprep.subr.bf16.mxu0 0
      %854 = vmatpush2.bf16.msra.mxu0 0
      %855 = vmatprep.subr.bf16.mxu0 0
      %856 = vmatpush2.bf16.msra.mxu0 0
      %857 = vmatprep.subr.bf16.mxu0 0
      %858 = vmatpush2.bf16.msra.mxu0 0
      %859 = vmatprep.mubr.bf16.mxu0 0
      %860 = vmatmul.mubr.bf16.gmra.mxu0 %v770
      %v861 = vpop.f32.mrf.mxu0
      %v862 = vadd.f32 0.0, %v861
      %v863 = vpop.f32.mrf.mxu0
      %v864 = vadd.f32 0.0, %v863
      %v865 = vpop.f32.mrf.mxu0
      %v866 = vadd.f32 0.0, %v865
      %v867 = vpop.f32.mrf.mxu0
      %v868 = vadd.f32 0.0, %v867
      %869 = vdwg.mxu0
      %v870 = vadd.f32 %v738, %v819
      %v871 = vadd.f32 %v739, %v821
      %v872 = vadd.f32 %v740, %v862
      %v873 = vadd.f32 %v741, %v864
      %v874 = vadd.f32 %v742, %v823
      %v875 = vadd.f32 %v743, %v825
      %v876 = vadd.f32 %v744, %v866
      %v877 = vadd.f32 %v745, %v868
      %s878 = scalar_lea.vmem %s3, 32
      %v879 = vld [vmem:[%s878] sm:$0xf]
      %v880 = vld [vmem:[%s878 + $0x4] sm:$0xf]
      %v883 = vunpack.c.l.b16 %v879
      %v884 = vunpack.c.l.b16 %v880
      %v885 = vpack.c.b16 %v884, %v883
      %886 = vrot.lane.b32.xlu0 %v362, 109
      %v887 = vpop.permute.xlu0 %886
      %888 = vrot.lane.b32.xlu0 %v370, 109
      %v889 = vpop.permute.xlu0 %888
      %890 = vrot.lane.b32.xlu0 %v369, 109
      %v891 = vpop.permute.xlu0 %890
      %892 = vrot.lane.b32.xlu0 %v371, 109
      %v893 = vpop.permute.xlu0 %892
      %894 = vrot.lane.b32.xlu0 %v379, 109
      %v895 = vpop.permute.xlu0 %894
      %vm896 = vcmask 891904
      %v897 = vsel %vm896, %v887, %v889
      %v898 = vsel %vm896, %v889, %v891
      %v899 = vsel %vm896, %v891, %v893
      %v900 = vsel %vm896, %v893, %v895
      %v902 = vsel %vm405, %v885, 0
      %v905 = vsel %vm409, %v897, 0
      %v908 = vsel %vm409, %v898, 0
      %v911 = vsel %vm409, %v899, 0
      %v914 = vsel %vm409, %v900, 0
      %916 = vmatprep.subr.bf16.mxu0 0
      %917 = vmatpush1.bf16.msra.mxu0 0
      %918 = vmatprep.subr.bf16.mxu0 0
      %919 = vmatpush1.bf16.msra.mxu0 0
      %920 = vmatprep.subr.bf16.mxu0 0
      %921 = vmatpush1.bf16.msra.mxu0 0
      %922 = vmatprep.subr.bf16.mxu0 0
      %923 = vmatpush1.bf16.msra.mxu0 0
      %924 = vmatprep.subr.bf16.mxu0 0
      %925 = vmatpush1.bf16.msra.mxu0 0
      %926 = vmatprep.subr.bf16.mxu0 0
      %927 = vmatpush1.bf16.msra.mxu0 0
      %928 = vmatprep.subr.bf16.mxu0 0
      %929 = vmatpush1.bf16.msra.mxu0 0
      %930 = vmatprep.subr.bf16.mxu0 %v908
      %931 = vmatpush1.bf16.msra.mxu0 %v905
      %932 = vmatprep.subr.bf16.mxu0 0
      %933 = vmatpush2.bf16.msra.mxu0 0
      %934 = vmatprep.subr.bf16.mxu0 0
      %935 = vmatpush2.bf16.msra.mxu0 0
      %936 = vmatprep.subr.bf16.mxu0 0
      %937 = vmatpush2.bf16.msra.mxu0 0
      %938 = vmatprep.subr.bf16.mxu0 0
      %939 = vmatpush2.bf16.msra.mxu0 0
      %940 = vmatprep.subr.bf16.mxu0 0
      %941 = vmatpush2.bf16.msra.mxu0 0
      %942 = vmatprep.subr.bf16.mxu0 0
      %943 = vmatpush2.bf16.msra.mxu0 0
      %944 = vmatprep.subr.bf16.mxu0 0
      %945 = vmatpush2.bf16.msra.mxu0 0
      %946 = vmatprep.subr.bf16.mxu0 0
      %947 = vmatpush2.bf16.msra.mxu0 0
      %948 = vmatprep.mubr.bf16.mxu0 0
      %949 = vmatmul.mubr.bf16.gmra.mxu0 %v902
      %v950 = vpop.f32.mrf.mxu0
      %v951 = vadd.f32 0.0, %v950
      %v952 = vpop.f32.mrf.mxu0
      %v953 = vadd.f32 0.0, %v952
      %v954 = vpop.f32.mrf.mxu0
      %v955 = vadd.f32 0.0, %v954
      %v956 = vpop.f32.mrf.mxu0
      %v957 = vadd.f32 0.0, %v956
      %958 = vdwg.mxu0
      %959 = vmatprep.subr.bf16.mxu0 0
      %960 = vmatpush1.bf16.msra.mxu0 0
      %961 = vmatprep.subr.bf16.mxu0 0
      %962 = vmatpush1.bf16.msra.mxu0 0
      %963 = vmatprep.subr.bf16.mxu0 0
      %964 = vmatpush1.bf16.msra.mxu0 0
      %965 = vmatprep.subr.bf16.mxu0 0
      %966 = vmatpush1.bf16.msra.mxu0 0
      %967 = vmatprep.subr.bf16.mxu0 0
      %968 = vmatpush1.bf16.msra.mxu0 0
      %969 = vmatprep.subr.bf16.mxu0 0
      %970 = vmatpush1.bf16.msra.mxu0 0
      %971 = vmatprep.subr.bf16.mxu0 0
      %972 = vmatpush1.bf16.msra.mxu0 0
      %973 = vmatprep.subr.bf16.mxu0 %v914
      %974 = vmatpush1.bf16.msra.mxu0 %v911
      %975 = vmatprep.subr.bf16.mxu0 0
      %976 = vmatpush2.bf16.msra.mxu0 0
      %977 = vmatprep.subr.bf16.mxu0 0
      %978 = vmatpush2.bf16.msra.mxu0 0
      %979 = vmatprep.subr.bf16.mxu0 0
      %980 = vmatpush2.bf16.msra.mxu0 0
      %981 = vmatprep.subr.bf16.mxu0 0
      %982 = vmatpush2.bf16.msra.mxu0 0
      %983 = vmatprep.subr.bf16.mxu0 0
      %984 = vmatpush2.bf16.msra.mxu0 0
      %985 = vmatprep.subr.bf16.mxu0 0
      %986 = vmatpush2.bf16.msra.mxu0 0
      %987 = vmatprep.subr.bf16.mxu0 0
      %988 = vmatpush2.bf16.msra.mxu0 0
      %989 = vmatprep.subr.bf16.mxu0 0
      %990 = vmatpush2.bf16.msra.mxu0 0
      %991 = vmatprep.mubr.bf16.mxu0 0
      %992 = vmatmul.mubr.bf16.gmra.mxu0 %v902
      %v993 = vpop.f32.mrf.mxu0
      %v994 = vadd.f32 0.0, %v993
      %v995 = vpop.f32.mrf.mxu0
      %v996 = vadd.f32 0.0, %v995
      %v997 = vpop.f32.mrf.mxu0
      %v998 = vadd.f32 0.0, %v997
      %v999 = vpop.f32.mrf.mxu0
      %v1000 = vadd.f32 0.0, %v999
      %1001 = vdwg.mxu0
      %v1002 = vadd.f32 %v870, %v951
      %v1003 = vadd.f32 %v871, %v953
      %v1004 = vadd.f32 %v872, %v994
      %v1005 = vadd.f32 %v873, %v996
      %v1006 = vadd.f32 %v874, %v955
      %v1007 = vadd.f32 %v875, %v957
      %v1008 = vadd.f32 %v876, %v998
      %v1009 = vadd.f32 %v877, %v1000
      %s1010 = scalar_lea.vmem %s3, 40
      %v1011 = vld [vmem:[%s1010] sm:$0xf]
      %v1012 = vld [vmem:[%s1010 + $0x4] sm:$0xf]
      %v1015 = vunpack.c.l.b16 %v1011
      %v1016 = vunpack.c.l.b16 %v1012
      %v1017 = vpack.c.b16 %v1016, %v1015
      %1018 = vrot.lane.b32.xlu0 %v362, 108
      %v1019 = vpop.permute.xlu0 %1018
      %1020 = vrot.lane.b32.xlu0 %v370, 108
      %v1021 = vpop.permute.xlu0 %1020
      %1022 = vrot.lane.b32.xlu0 %v369, 108
      %v1023 = vpop.permute.xlu0 %1022
      %1024 = vrot.lane.b32.xlu0 %v371, 108
      %v1025 = vpop.permute.xlu0 %1024
      %1026 = vrot.lane.b32.xlu0 %v379, 108
      %v1027 = vpop.permute.xlu0 %1026
      %vm1028 = vcmask 883712
      %v1029 = vsel %vm1028, %v1019, %v1021
      %v1030 = vsel %vm1028, %v1021, %v1023
      %v1031 = vsel %vm1028, %v1023, %v1025
      %v1032 = vsel %vm1028, %v1025, %v1027
      %v1034 = vsel %vm405, %v1017, 0
      %v1037 = vsel %vm409, %v1029, 0
      %v1040 = vsel %vm409, %v1030, 0
      %v1043 = vsel %vm409, %v1031, 0
      %v1046 = vsel %vm409, %v1032, 0
      %1048 = vmatprep.subr.bf16.mxu0 0
      %1049 = vmatpush1.bf16.msra.mxu0 0
      %1050 = vmatprep.subr.bf16.mxu0 0
      %1051 = vmatpush1.bf16.msra.mxu0 0
      %1052 = vmatprep.subr.bf16.mxu0 0
      %1053 = vmatpush1.bf16.msra.mxu0 0
      %1054 = vmatprep.subr.bf16.mxu0 0
      %1055 = vmatpush1.bf16.msra.mxu0 0
      %1056 = vmatprep.subr.bf16.mxu0 0
      %1057 = vmatpush1.bf16.msra.mxu0 0
      %1058 = vmatprep.subr.bf16.mxu0 0
      %1059 = vmatpush1.bf16.msra.mxu0 0
      %1060 = vmatprep.subr.bf16.mxu0 0
      %1061 = vmatpush1.bf16.msra.mxu0 0
      %1062 = vmatprep.subr.bf16.mxu0 %v1040
      %1063 = vmatpush1.bf16.msra.mxu0 %v1037
      %1064 = vmatprep.subr.bf16.mxu0 0
      %1065 = vmatpush2.bf16.msra.mxu0 0
      %1066 = vmatprep.subr.bf16.mxu0 0
      %1067 = vmatpush2.bf16.msra.mxu0 0
      %1068 = vmatprep.subr.bf16.mxu0 0
      %1069 = vmatpush2.bf16.msra.mxu0 0
      %1070 = vmatprep.subr.bf16.mxu0 0
      %1071 = vmatpush2.bf16.msra.mxu0 0
      %1072 = vmatprep.subr.bf16.mxu0 0
      %1073 = vmatpush2.bf16.msra.mxu0 0
      %1074 = vmatprep.subr.bf16.mxu0 0
      %1075 = vmatpush2.bf16.msra.mxu0 0
      %1076 = vmatprep.subr.bf16.mxu0 0
      %1077 = vmatpush2.bf16.msra.mxu0 0
      %1078 = vmatprep.subr.bf16.mxu0 0
      %1079 = vmatpush2.bf16.msra.mxu0 0
      %1080 = vmatprep.mubr.bf16.mxu0 0
      %1081 = vmatmul.mubr.bf16.gmra.mxu0 %v1034
      %v1082 = vpop.f32.mrf.mxu0
      %v1083 = vadd.f32 0.0, %v1082
      %v1084 = vpop.f32.mrf.mxu0
      %v1085 = vadd.f32 0.0, %v1084
      %v1086 = vpop.f32.mrf.mxu0
      %v1087 = vadd.f32 0.0, %v1086
      %v1088 = vpop.f32.mrf.mxu0
      %v1089 = vadd.f32 0.0, %v1088
      %1090 = vdwg.mxu0
      %1091 = vmatprep.subr.bf16.mxu0 0
      %1092 = vmatpush1.bf16.msra.mxu0 0
      %1093 = vmatprep.subr.bf16.mxu0 0
      %1094 = vmatpush1.bf16.msra.mxu0 0
      %1095 = vmatprep.subr.bf16.mxu0 0
      %1096 = vmatpush1.bf16.msra.mxu0 0
      %1097 = vmatprep.subr.bf16.mxu0 0
      %1098 = vmatpush1.bf16.msra.mxu0 0
      %1099 = vmatprep.subr.bf16.mxu0 0
      %1100 = vmatpush1.bf16.msra.mxu0 0
      %1101 = vmatprep.subr.bf16.mxu0 0
      %1102 = vmatpush1.bf16.msra.mxu0 0
      %1103 = vmatprep.subr.bf16.mxu0 0
      %1104 = vmatpush1.bf16.msra.mxu0 0
      %1105 = vmatprep.subr.bf16.mxu0 %v1046
      %1106 = vmatpush1.bf16.msra.mxu0 %v1043
      %1107 = vmatprep.subr.bf16.mxu0 0
      %1108 = vmatpush2.bf16.msra.mxu0 0
      %1109 = vmatprep.subr.bf16.mxu0 0
      %1110 = vmatpush2.bf16.msra.mxu0 0
      %1111 = vmatprep.subr.bf16.mxu0 0
      %1112 = vmatpush2.bf16.msra.mxu0 0
      %1113 = vmatprep.subr.bf16.mxu0 0
      %1114 = vmatpush2.bf16.msra.mxu0 0
      %1115 = vmatprep.subr.bf16.mxu0 0
      %1116 = vmatpush2.bf16.msra.mxu0 0
      %1117 = vmatprep.subr.bf16.mxu0 0
      %1118 = vmatpush2.bf16.msra.mxu0 0
      %1119 = vmatprep.subr.bf16.mxu0 0
      %1120 = vmatpush2.bf16.msra.mxu0 0
      %1121 = vmatprep.subr.bf16.mxu0 0
      %1122 = vmatpush2.bf16.msra.mxu0 0
      %1123 = vmatprep.mubr.bf16.mxu0 0
      %1124 = vmatmul.mubr.bf16.gmra.mxu0 %v1034
      %v1125 = vpop.f32.mrf.mxu0
      %v1126 = vadd.f32 0.0, %v1125
      %v1127 = vpop.f32.mrf.mxu0
      %v1128 = vadd.f32 0.0, %v1127
      %v1129 = vpop.f32.mrf.mxu0
      %v1130 = vadd.f32 0.0, %v1129
      %v1131 = vpop.f32.mrf.mxu0
      %v1132 = vadd.f32 0.0, %v1131
      %1133 = vdwg.mxu0
      %v1134 = vadd.f32 %v1002, %v1083
      %v1135 = vadd.f32 %v1003, %v1085
      %v1136 = vadd.f32 %v1004, %v1126
      %v1137 = vadd.f32 %v1005, %v1128
      %v1138 = vadd.f32 %v1006, %v1087
      %v1139 = vadd.f32 %v1007, %v1089
      %v1140 = vadd.f32 %v1008, %v1130
      %v1141 = vadd.f32 %v1009, %v1132
      %s1142 = scalar_lea.vmem %s3, 48
      %v1143 = vld [vmem:[%s1142] sm:$0xf]
      %v1144 = vld [vmem:[%s1142 + $0x4] sm:$0xf]
      %v1147 = vunpack.c.l.b16 %v1143
      %v1148 = vunpack.c.l.b16 %v1144
      %v1149 = vpack.c.b16 %v1148, %v1147
      %1150 = vrot.lane.b32.xlu0 %v362, 92
      %v1151 = vpop.permute.xlu0 %1150
      %1152 = vrot.lane.b32.xlu0 %v370, 92
      %v1153 = vpop.permute.xlu0 %1152
      %1154 = vrot.lane.b32.xlu0 %v369, 92
      %v1155 = vpop.permute.xlu0 %1154
      %1156 = vrot.lane.b32.xlu0 %v371, 92
      %v1157 = vpop.permute.xlu0 %1156
      %1158 = vrot.lane.b32.xlu0 %v379, 92
      %v1159 = vpop.permute.xlu0 %1158
      %vm1160 = vcmask 752640
      %v1161 = vsel %vm1160, %v1151, %v1153
      %v1162 = vsel %vm1160, %v1153, %v1155
      %v1163 = vsel %vm1160, %v1155, %v1157
      %v1164 = vsel %vm1160, %v1157, %v1159
      %v1166 = vsel %vm405, %v1149, 0
      %v1169 = vsel %vm409, %v1161, 0
      %v1172 = vsel %vm409, %v1162, 0
      %v1175 = vsel %vm409, %v1163, 0
      %v1178 = vsel %vm409, %v1164, 0
      %1180 = vmatprep.subr.bf16.mxu0 0
      %1181 = vmatpush1.bf16.msra.mxu0 0
      %1182 = vmatprep.subr.bf16.mxu0 0
      %1183 = vmatpush1.bf16.msra.mxu0 0
      %1184 = vmatprep.subr.bf16.mxu0 0
      %1185 = vmatpush1.bf16.msra.mxu0 0
      %1186 = vmatprep.subr.bf16.mxu0 0
      %1187 = vmatpush1.bf16.msra.mxu0 0
      %1188 = vmatprep.subr.bf16.mxu0 0
      %1189 = vmatpush1.bf16.msra.mxu0 0
      %1190 = vmatprep.subr.bf16.mxu0 0
      %1191 = vmatpush1.bf16.msra.mxu0 0
      %1192 = vmatprep.subr.bf16.mxu0 0
      %1193 = vmatpush1.bf16.msra.mxu0 0
      %1194 = vmatprep.subr.bf16.mxu0 %v1172
      %1195 = vmatpush1.bf16.msra.mxu0 %v1169
      %1196 = vmatprep.subr.bf16.mxu0 0
      %1197 = vmatpush2.bf16.msra.mxu0 0
      %1198 = vmatprep.subr.bf16.mxu0 0
      %1199 = vmatpush2.bf16.msra.mxu0 0
      %1200 = vmatprep.subr.bf16.mxu0 0
      %1201 = vmatpush2.bf16.msra.mxu0 0
      %1202 = vmatprep.subr.bf16.mxu0 0
      %1203 = vmatpush2.bf16.msra.mxu0 0
      %1204 = vmatprep.subr.bf16.mxu0 0
      %1205 = vmatpush2.bf16.msra.mxu0 0
      %1206 = vmatprep.subr.bf16.mxu0 0
      %1207 = vmatpush2.bf16.msra.mxu0 0
      %1208 = vmatprep.subr.bf16.mxu0 0
      %1209 = vmatpush2.bf16.msra.mxu0 0
      %1210 = vmatprep.subr.bf16.mxu0 0
      %1211 = vmatpush2.bf16.msra.mxu0 0
      %1212 = vmatprep.mubr.bf16.mxu0 0
      %1213 = vmatmul.mubr.bf16.gmra.mxu0 %v1166
      %v1214 = vpop.f32.mrf.mxu0
      %v1215 = vadd.f32 0.0, %v1214
      %v1216 = vpop.f32.mrf.mxu0
      %v1217 = vadd.f32 0.0, %v1216
      %v1218 = vpop.f32.mrf.mxu0
      %v1219 = vadd.f32 0.0, %v1218
      %v1220 = vpop.f32.mrf.mxu0
      %v1221 = vadd.f32 0.0, %v1220
      %1222 = vdwg.mxu0
      %1223 = vmatprep.subr.bf16.mxu0 0
      %1224 = vmatpush1.bf16.msra.mxu0 0
      %1225 = vmatprep.subr.bf16.mxu0 0
      %1226 = vmatpush1.bf16.msra.mxu0 0
      %1227 = vmatprep.subr.bf16.mxu0 0
      %1228 = vmatpush1.bf16.msra.mxu0 0
      %1229 = vmatprep.subr.bf16.mxu0 0
      %1230 = vmatpush1.bf16.msra.mxu0 0
      %1231 = vmatprep.subr.bf16.mxu0 0
      %1232 = vmatpush1.bf16.msra.mxu0 0
      %1233 = vmatprep.subr.bf16.mxu0 0
      %1234 = vmatpush1.bf16.msra.mxu0 0
      %1235 = vmatprep.subr.bf16.mxu0 0
      %1236 = vmatpush1.bf16.msra.mxu0 0
      %1237 = vmatprep.subr.bf16.mxu0 %v1178
      %1238 = vmatpush1.bf16.msra.mxu0 %v1175
      %1239 = vmatprep.subr.bf16.mxu0 0
      %1240 = vmatpush2.bf16.msra.mxu0 0
      %1241 = vmatprep.subr.bf16.mxu0 0
      %1242 = vmatpush2.bf16.msra.mxu0 0
      %1243 = vmatprep.subr.bf16.mxu0 0
      %1244 = vmatpush2.bf16.msra.mxu0 0
      %1245 = vmatprep.subr.bf16.mxu0 0
      %1246 = vmatpush2.bf16.msra.mxu0 0
      %1247 = vmatprep.subr.bf16.mxu0 0
      %1248 = vmatpush2.bf16.msra.mxu0 0
      %1249 = vmatprep.subr.bf16.mxu0 0
      %1250 = vmatpush2.bf16.msra.mxu0 0
      %1251 = vmatprep.subr.bf16.mxu0 0
      %1252 = vmatpush2.bf16.msra.mxu0 0
      %1253 = vmatprep.subr.bf16.mxu0 0
      %1254 = vmatpush2.bf16.msra.mxu0 0
      %1255 = vmatprep.mubr.bf16.mxu0 0
      %1256 = vmatmul.mubr.bf16.gmra.mxu0 %v1166
      %v1257 = vpop.f32.mrf.mxu0
      %v1258 = vadd.f32 0.0, %v1257
      %v1259 = vpop.f32.mrf.mxu0
      %v1260 = vadd.f32 0.0, %v1259
      %v1261 = vpop.f32.mrf.mxu0
      %v1262 = vadd.f32 0.0, %v1261
      %v1263 = vpop.f32.mrf.mxu0
      %v1264 = vadd.f32 0.0, %v1263
      %1265 = vdwg.mxu0
      %v1266 = vadd.f32 %v1134, %v1215
      %v1267 = vadd.f32 %v1135, %v1217
      %v1268 = vadd.f32 %v1136, %v1258
      %v1269 = vadd.f32 %v1137, %v1260
      %v1270 = vadd.f32 %v1138, %v1219
      %v1271 = vadd.f32 %v1139, %v1221
      %v1272 = vadd.f32 %v1140, %v1262
      %v1273 = vadd.f32 %v1141, %v1264
      %s1274 = scalar_lea.vmem %s3, 56
      %v1275 = vld [vmem:[%s1274] sm:$0xf]
      %v1276 = vld [vmem:[%s1274 + $0x4] sm:$0xf]
      %v1279 = vunpack.c.l.b16 %v1275
      %v1280 = vunpack.c.l.b16 %v1276
      %v1281 = vpack.c.b16 %v1280, %v1279
      %1282 = vrot.lane.b32.xlu0 %v362, 91
      %v1283 = vpop.permute.xlu0 %1282
      %1284 = vrot.lane.b32.xlu0 %v370, 91
      %v1285 = vpop.permute.xlu0 %1284
      %1286 = vrot.lane.b32.xlu0 %v369, 91
      %v1287 = vpop.permute.xlu0 %1286
      %1288 = vrot.lane.b32.xlu0 %v371, 91
      %v1289 = vpop.permute.xlu0 %1288
      %1290 = vrot.lane.b32.xlu0 %v379, 91
      %v1291 = vpop.permute.xlu0 %1290
      %vm1292 = vcmask 744448
      %v1293 = vsel %vm1292, %v1283, %v1285
      %v1294 = vsel %vm1292, %v1285, %v1287
      %v1295 = vsel %vm1292, %v1287, %v1289
      %v1296 = vsel %vm1292, %v1289, %v1291
      %v1298 = vsel %vm405, %v1281, 0
      %v1301 = vsel %vm409, %v1293, 0
      %v1304 = vsel %vm409, %v1294, 0
      %v1307 = vsel %vm409, %v1295, 0
      %v1310 = vsel %vm409, %v1296, 0
      %1312 = vmatprep.subr.bf16.mxu0 0
      %1313 = vmatpush1.bf16.msra.mxu0 0
      %1314 = vmatprep.subr.bf16.mxu0 0
      %1315 = vmatpush1.bf16.msra.mxu0 0
      %1316 = vmatprep.subr.bf16.mxu0 0
      %1317 = vmatpush1.bf16.msra.mxu0 0
      %1318 = vmatprep.subr.bf16.mxu0 0
      %1319 = vmatpush1.bf16.msra.mxu0 0
      %1320 = vmatprep.subr.bf16.mxu0 0
      %1321 = vmatpush1.bf16.msra.mxu0 0
      %1322 = vmatprep.subr.bf16.mxu0 0
      %1323 = vmatpush1.bf16.msra.mxu0 0
      %1324 = vmatprep.subr.bf16.mxu0 0
      %1325 = vmatpush1.bf16.msra.mxu0 0
      %1326 = vmatprep.subr.bf16.mxu0 %v1304
      %1327 = vmatpush1.bf16.msra.mxu0 %v1301
      %1328 = vmatprep.subr.bf16.mxu0 0
      %1329 = vmatpush2.bf16.msra.mxu0 0
      %1330 = vmatprep.subr.bf16.mxu0 0
      %1331 = vmatpush2.bf16.msra.mxu0 0
      %1332 = vmatprep.subr.bf16.mxu0 0
      %1333 = vmatpush2.bf16.msra.mxu0 0
      %1334 = vmatprep.subr.bf16.mxu0 0
      %1335 = vmatpush2.bf16.msra.mxu0 0
      %1336 = vmatprep.subr.bf16.mxu0 0
      %1337 = vmatpush2.bf16.msra.mxu0 0
      %1338 = vmatprep.subr.bf16.mxu0 0
      %1339 = vmatpush2.bf16.msra.mxu0 0
      %1340 = vmatprep.subr.bf16.mxu0 0
      %1341 = vmatpush2.bf16.msra.mxu0 0
      %1342 = vmatprep.subr.bf16.mxu0 0
      %1343 = vmatpush2.bf16.msra.mxu0 0
      %1344 = vmatprep.mubr.bf16.mxu0 0
      %1345 = vmatmul.mubr.bf16.gmra.mxu0 %v1298
      %v1346 = vpop.f32.mrf.mxu0
      %v1347 = vadd.f32 0.0, %v1346
      %v1348 = vpop.f32.mrf.mxu0
      %v1349 = vadd.f32 0.0, %v1348
      %v1350 = vpop.f32.mrf.mxu0
      %v1351 = vadd.f32 0.0, %v1350
      %v1352 = vpop.f32.mrf.mxu0
      %v1353 = vadd.f32 0.0, %v1352
      %1354 = vdwg.mxu0
      %1355 = vmatprep.subr.bf16.mxu0 0
      %1356 = vmatpush1.bf16.msra.mxu0 0
      %1357 = vmatprep.subr.bf16.mxu0 0
      %1358 = vmatpush1.bf16.msra.mxu0 0
      %1359 = vmatprep.subr.bf16.mxu0 0
      %1360 = vmatpush1.bf16.msra.mxu0 0
      %1361 = vmatprep.subr.bf16.mxu0 0
      %1362 = vmatpush1.bf16.msra.mxu0 0
      %1363 = vmatprep.subr.bf16.mxu0 0
      %1364 = vmatpush1.bf16.msra.mxu0 0
      %1365 = vmatprep.subr.bf16.mxu0 0
      %1366 = vmatpush1.bf16.msra.mxu0 0
      %1367 = vmatprep.subr.bf16.mxu0 0
      %1368 = vmatpush1.bf16.msra.mxu0 0
      %1369 = vmatprep.subr.bf16.mxu0 %v1310
      %1370 = vmatpush1.bf16.msra.mxu0 %v1307
      %1371 = vmatprep.subr.bf16.mxu0 0
      %1372 = vmatpush2.bf16.msra.mxu0 0
      %1373 = vmatprep.subr.bf16.mxu0 0
      %1374 = vmatpush2.bf16.msra.mxu0 0
      %1375 = vmatprep.subr.bf16.mxu0 0
      %1376 = vmatpush2.bf16.msra.mxu0 0
      %1377 = vmatprep.subr.bf16.mxu0 0
      %1378 = vmatpush2.bf16.msra.mxu0 0
      %1379 = vmatprep.subr.bf16.mxu0 0
      %1380 = vmatpush2.bf16.msra.mxu0 0
      %1381 = vmatprep.subr.bf16.mxu0 0
      %1382 = vmatpush2.bf16.msra.mxu0 0
      %1383 = vmatprep.subr.bf16.mxu0 0
      %1384 = vmatpush2.bf16.msra.mxu0 0
      %1385 = vmatprep.subr.bf16.mxu0 0
      %1386 = vmatpush2.bf16.msra.mxu0 0
      %1387 = vmatprep.mubr.bf16.mxu0 0
      %1388 = vmatmul.mubr.bf16.gmra.mxu0 %v1298
      %v1389 = vpop.f32.mrf.mxu0
      %v1390 = vadd.f32 0.0, %v1389
      %v1391 = vpop.f32.mrf.mxu0
      %v1392 = vadd.f32 0.0, %v1391
      %v1393 = vpop.f32.mrf.mxu0
      %v1394 = vadd.f32 0.0, %v1393
      %v1395 = vpop.f32.mrf.mxu0
      %v1396 = vadd.f32 0.0, %v1395
      %1397 = vdwg.mxu0
      %v1398 = vadd.f32 %v1266, %v1347
      %v1399 = vadd.f32 %v1267, %v1349
      %v1400 = vadd.f32 %v1268, %v1390
      %v1401 = vadd.f32 %v1269, %v1392
      %v1402 = vadd.f32 %v1270, %v1351
      %v1403 = vadd.f32 %v1271, %v1353
      %v1404 = vadd.f32 %v1272, %v1394
      %v1405 = vadd.f32 %v1273, %v1396
      %s1406 = scalar_lea.vmem %s3, 64
      %v1407 = vld [vmem:[%s1406] sm:$0xf]
      %v1408 = vld [vmem:[%s1406 + $0x4] sm:$0xf]
      %v1411 = vunpack.c.l.b16 %v1407
      %v1412 = vunpack.c.l.b16 %v1408
      %v1413 = vpack.c.b16 %v1412, %v1411
      %1414 = vrot.lane.b32.xlu0 %v362, 90
      %v1415 = vpop.permute.xlu0 %1414
      %1416 = vrot.lane.b32.xlu0 %v370, 90
      %v1417 = vpop.permute.xlu0 %1416
      %1418 = vrot.lane.b32.xlu0 %v369, 90
      %v1419 = vpop.permute.xlu0 %1418
      %1420 = vrot.lane.b32.xlu0 %v371, 90
      %v1421 = vpop.permute.xlu0 %1420
      %1422 = vrot.lane.b32.xlu0 %v379, 90
      %v1423 = vpop.permute.xlu0 %1422
      %vm1424 = vcmask 736256
      %v1425 = vsel %vm1424, %v1415, %v1417
      %v1426 = vsel %vm1424, %v1417, %v1419
      %v1427 = vsel %vm1424, %v1419, %v1421
      %v1428 = vsel %vm1424, %v1421, %v1423
      %v1430 = vsel %vm405, %v1413, 0
      %v1433 = vsel %vm409, %v1425, 0
      %v1436 = vsel %vm409, %v1426, 0
      %v1439 = vsel %vm409, %v1427, 0
      %v1442 = vsel %vm409, %v1428, 0
      %1444 = vmatprep.subr.bf16.mxu0 0
      %1445 = vmatpush1.bf16.msra.mxu0 0
      %1446 = vmatprep.subr.bf16.mxu0 0
      %1447 = vmatpush1.bf16.msra.mxu0 0
      %1448 = vmatprep.subr.bf16.mxu0 0
      %1449 = vmatpush1.bf16.msra.mxu0 0
      %1450 = vmatprep.subr.bf16.mxu0 0
      %1451 = vmatpush1.bf16.msra.mxu0 0
      %1452 = vmatprep.subr.bf16.mxu0 0
      %1453 = vmatpush1.bf16.msra.mxu0 0
      %1454 = vmatprep.subr.bf16.mxu0 0
      %1455 = vmatpush1.bf16.msra.mxu0 0
      %1456 = vmatprep.subr.bf16.mxu0 0
      %1457 = vmatpush1.bf16.msra.mxu0 0
      %1458 = vmatprep.subr.bf16.mxu0 %v1436
      %1459 = vmatpush1.bf16.msra.mxu0 %v1433
      %1460 = vmatprep.subr.bf16.mxu0 0
      %1461 = vmatpush2.bf16.msra.mxu0 0
      %1462 = vmatprep.subr.bf16.mxu0 0
      %1463 = vmatpush2.bf16.msra.mxu0 0
      %1464 = vmatprep.subr.bf16.mxu0 0
      %1465 = vmatpush2.bf16.msra.mxu0 0
      %1466 = vmatprep.subr.bf16.mxu0 0
      %1467 = vmatpush2.bf16.msra.mxu0 0
      %1468 = vmatprep.subr.bf16.mxu0 0
      %1469 = vmatpush2.bf16.msra.mxu0 0
      %1470 = vmatprep.subr.bf16.mxu0 0
      %1471 = vmatpush2.bf16.msra.mxu0 0
      %1472 = vmatprep.subr.bf16.mxu0 0
      %1473 = vmatpush2.bf16.msra.mxu0 0
      %1474 = vmatprep.subr.bf16.mxu0 0
      %1475 = vmatpush2.bf16.msra.mxu0 0
      %1476 = vmatprep.mubr.bf16.mxu0 0
      %1477 = vmatmul.mubr.bf16.gmra.mxu0 %v1430
      %v1478 = vpop.f32.mrf.mxu0
      %v1479 = vadd.f32 0.0, %v1478
      %v1480 = vpop.f32.mrf.mxu0
      %v1481 = vadd.f32 0.0, %v1480
      %v1482 = vpop.f32.mrf.mxu0
      %v1483 = vadd.f32 0.0, %v1482
      %v1484 = vpop.f32.mrf.mxu0
      %v1485 = vadd.f32 0.0, %v1484
      %1486 = vdwg.mxu0
      %1487 = vmatprep.subr.bf16.mxu0 0
      %1488 = vmatpush1.bf16.msra.mxu0 0
      %1489 = vmatprep.subr.bf16.mxu0 0
      %1490 = vmatpush1.bf16.msra.mxu0 0
      %1491 = vmatprep.subr.bf16.mxu0 0
      %1492 = vmatpush1.bf16.msra.mxu0 0
      %1493 = vmatprep.subr.bf16.mxu0 0
      %1494 = vmatpush1.bf16.msra.mxu0 0
      %1495 = vmatprep.subr.bf16.mxu0 0
      %1496 = vmatpush1.bf16.msra.mxu0 0
      %1497 = vmatprep.subr.bf16.mxu0 0
      %1498 = vmatpush1.bf16.msra.mxu0 0
      %1499 = vmatprep.subr.bf16.mxu0 0
      %1500 = vmatpush1.bf16.msra.mxu0 0
      %1501 = vmatprep.subr.bf16.mxu0 %v1442
      %1502 = vmatpush1.bf16.msra.mxu0 %v1439
      %1503 = vmatprep.subr.bf16.mxu0 0
      %1504 = vmatpush2.bf16.msra.mxu0 0
      %1505 = vmatprep.subr.bf16.mxu0 0
      %1506 = vmatpush2.bf16.msra.mxu0 0
      %1507 = vmatprep.subr.bf16.mxu0 0
      %1508 = vmatpush2.bf16.msra.mxu0 0
      %1509 = vmatprep.subr.bf16.mxu0 0
      %1510 = vmatpush2.bf16.msra.mxu0 0
      %1511 = vmatprep.subr.bf16.mxu0 0
      %1512 = vmatpush2.bf16.msra.mxu0 0
      %1513 = vmatprep.subr.bf16.mxu0 0
      %1514 = vmatpush2.bf16.msra.mxu0 0
      %1515 = vmatprep.subr.bf16.mxu0 0
      %1516 = vmatpush2.bf16.msra.mxu0 0
      %1517 = vmatprep.subr.bf16.mxu0 0
      %1518 = vmatpush2.bf16.msra.mxu0 0
      %1519 = vmatprep.mubr.bf16.mxu0 0
      %1520 = vmatmul.mubr.bf16.gmra.mxu0 %v1430
      %v1521 = vpop.f32.mrf.mxu0
      %v1522 = vadd.f32 0.0, %v1521
      %v1523 = vpop.f32.mrf.mxu0
      %v1524 = vadd.f32 0.0, %v1523
      %v1525 = vpop.f32.mrf.mxu0
      %v1526 = vadd.f32 0.0, %v1525
      %v1527 = vpop.f32.mrf.mxu0
      %v1528 = vadd.f32 0.0, %v1527
      %1529 = vdwg.mxu0
      %v1530 = vadd.f32 %v1398, %v1479
      %v1531 = vadd.f32 %v1399, %v1481
      %v1532 = vadd.f32 %v1400, %v1522
      %v1533 = vadd.f32 %v1401, %v1524
      %v1534 = vadd.f32 %v1402, %v1483
      %v1535 = vadd.f32 %v1403, %v1485
      %v1536 = vadd.f32 %v1404, %v1526
      %v1537 = vadd.f32 %v1405, %v1528
      %v1538 = vld [vmem:[%s4] sm:$0xff]
      %v1539 = vld [vmem:[%s4 + $0x8] sm:$0xff]
      %1541 = vset.pattern.permute.xlu0 0
      %1542 = vperm.xlu0 %1541, %v1538
      %v1543 = vpop.permute.xlu0 %1542
      %1546 = vset.pattern.permute.xlu0 0
      %1547 = vperm.xlu0 %1546, %v1539
      %v1548 = vpop.permute.xlu0 %1547
      %v1550 = vadd.f32 %v1530, %v1543
      %v1551 = vadd.f32 %v1531, %v1543
      %v1552 = vadd.f32 %v1532, %v1543
      %v1553 = vadd.f32 %v1533, %v1543
      %v1554 = vadd.f32 %v1534, %v1548
      %v1555 = vadd.f32 %v1535, %v1548
      %v1556 = vadd.f32 %v1536, %v1548
      %v1557 = vadd.f32 %v1537, %v1548
      %vm1558 = vcmp.ge.f32.partialorder %v1550, 0.0
      %vm1559 = vcmp.ge.f32.partialorder %v1551, 0.0
      %vm1560 = vcmp.ge.f32.partialorder %v1552, 0.0
      %vm1561 = vcmp.ge.f32.partialorder %v1553, 0.0
      %v1562 = vmul.f32 %v1550, 0.2
      %v1563 = vmul.f32 %v1551, 0.2
      %v1564 = vmul.f32 %v1552, 0.2
      %v1565 = vmul.f32 %v1553, 0.2
      %v1566 = vsel %vm1558, %v1550, %v1562
      %v1567 = vsel %vm1559, %v1551, %v1563
      %v1568 = vsel %vm1560, %v1552, %v1564
      %v1569 = vsel %vm1561, %v1553, %v1565
      %v1570 = vxor.u32 %v1554, 2147483648
      %v1571 = vxor.u32 %v1555, 2147483648
      %v1572 = vxor.u32 %v1556, 2147483648
      %v1573 = vxor.u32 %v1557, 2147483648
      %v1574 = vmul.f32 %v1570, 1.442695
      %v1575 = vpow.pop %v1574
      %v1576 = vmul.f32 %v1571, 1.442695
      %v1577 = vpow.pop %v1576
      %v1578 = vmul.f32 %v1572, 1.442695
      %v1579 = vpow.pop %v1578
      %v1580 = vmul.f32 %v1573, 1.442695
      %v1581 = vpow.pop %v1580
      %v1582 = vadd.f32 %v1575, 1.0
      %v1583 = vadd.f32 %v1577, 1.0
      %v1584 = vadd.f32 %v1579, 1.0
      %v1585 = vadd.f32 %v1581, 1.0
      %v1586 = vrcp.pop %v1582
      %v1587 = vmul.f32 1.0, %v1586
      %v1588 = vrcp.pop %v1583
      %v1589 = vmul.f32 1.0, %v1588
      %v1590 = vrcp.pop %v1584
      %v1591 = vmul.f32 1.0, %v1590
      %v1592 = vrcp.pop %v1585
      %v1593 = vmul.f32 1.0, %v1592
      %v1594 = vmul.f32 %v1566, %v1587
      %v1595 = vmul.f32 %v1567, %v1589
      %v1596 = vmul.f32 %v1568, %v1591
      %v1597 = vmul.f32 %v1569, %v1593
      %v1598 = vld [vmem:[%s333] sm:$0xf]
      %v1600 = vlaneseq
      %v1601 = vshrl.u32 %v1600, 7
      %v1602 = vsub.s32 0, %v1601
      %v1603 = vrot.slane %v1598, %v1602
      %v1604 = vlaneseq
      %v1605 = vshrl.u32 %v1604, 7
      %v1606 = vsub.s32 1, %v1605
      %v1607 = vrot.slane %v1598, %v1606
      %v1608 = vlaneseq
      %v1609 = vshrl.u32 %v1608, 7
      %v1610 = vsub.s32 2, %v1609
      %v1611 = vrot.slane %v1598, %v1610
      %v1612 = vlaneseq
      %v1613 = vshrl.u32 %v1612, 7
      %v1614 = vsub.s32 3, %v1613
      %v1615 = vrot.slane %v1598, %v1614
      %v1620 = vmul.f32 %v1594, %v1603
      %v1621 = vmul.f32 %v1595, %v1607
      %v1622 = vmul.f32 %v1596, %v1611
      %v1623 = vmul.f32 %v1597, %v1615
      %v1624 = vld [vmem:[%s339] sm:$0xff]
      %v1625 = vadd.f32 %v1620, %v1621
      %v1626 = vadd.f32 %v1625, %v1622
      %v1627 = vadd.f32 %v1626, %v1623
      %1628 = vadd.xlane.f32.xlu0 %v1627
      %v1629 = vpop.xlane.xlu0 %1628
      %v1630 = vadd.f32 %v1624, %v1629
      %vm1631 = vcmask 7168
      %1632 = vst.msk [vmem:[%s339] sm:$0xff] %vm1631, %v1630
      %v1633 = vld [vmem:[%s343] sm:$0xff]
      %v1634 = vmul.f32 %v1620, %v1620
      %v1635 = vmul.f32 %v1621, %v1621
      %v1636 = vmul.f32 %v1622, %v1622
      %v1637 = vmul.f32 %v1623, %v1623
      %v1638 = vadd.f32 %v1634, %v1635
      %v1639 = vadd.f32 %v1638, %v1636
      %v1640 = vadd.f32 %v1639, %v1637
      %1641 = vadd.xlane.f32.xlu0 %v1640
      %v1642 = vpop.xlane.xlu0 %1641
      %v1643 = vadd.f32 %v1633, %v1642
      %1644 = vst.msk [vmem:[%s343] sm:$0xff] %vm1631, %v1643
      %p1645 = scmp.lt.s32.totalorder %s22, 1
      %s1646 = scalar_select %p1645, %s22, 1
      %s1647 = smul.addr %s1646, 8
      %s1648 = scalar_lea.vmem %s5, %s1647
      %p1649 = scmp.lt.s32.totalorder %s22, 1
      %s1650 = scalar_select %p1649, %s22, 1
      %s1651 = smul.addr %s1650, 8
      %s1652 = scalar_lea.vmem %s6, %s1651
      // Predicated region
      $region45: #{gated_conv2d_with_activation.2} parent=39 // pred_check
        %p1653 = pneg %p176
      $region46: #{gated_conv2d_with_activation.2} parent=39 // pred_check_branch
        %1655 = sbr.rel (%p1653) target = $region48
      $region47: #{gated_conv2d_with_activation.2} parent=39 // pred_region
        _
      $region48: #{gated_conv2d_with_activation.2} parent=39 // pred_fallthru
        _
      // Predicated region
      $region49: #{gated_conv2d_with_activation.2} parent=39 // pred_check
        %p1656 = pneg %p202
      $region50: #{gated_conv2d_with_activation.2} parent=39 // pred_check_branch
        %1658 = sbr.rel (%p1656) target = $region52
      $region51: #{gated_conv2d_with_activation.2} parent=39 // pred_region
        _
      $region52: #{gated_conv2d_with_activation.2} parent=39 // pred_fallthru
        _
    $region40: #{gated_conv2d_with_activation.2} parent=5 // pred_fallthru
      _
    %p1659 = scmp.le.s32.totalorder 2, %s13
    // Predicated region
    $region53: #{gated_conv2d_with_activation.2} parent=5 // pred_check
      %p1660 = pneg %p1659
    $region54: #{gated_conv2d_with_activation.2} parent=5 // pred_check_branch
      %1662 = sbr.rel (%p1660) target = $region56
    $region55: #{gated_conv2d_with_activation.2} parent=5 // pred_region
      %s1663 = ssub.s32 %s13, 2
      // Predicated region
      $region57: #{gated_conv2d_with_activation.2} parent=55 // pred_check
        %p1664 = pneg %p182
      $region58: #{gated_conv2d_with_activation.2} parent=55 // pred_check_branch
        %1666 = sbr.rel (%p1664) target = $region60
      $region59: #{gated_conv2d_with_activation.2} parent=55 // pred_region
        %p1667 = scmp.lt.s32.totalorder %s24, 1
        %s1668 = scalar_select %p1667, %s24, 1
        %s1669 = smul.addr %s1668, 8
        %s1670 = scalar_lea.vmem %s5, %s1669
      $region60: #{gated_conv2d_with_activation.2} parent=55 // pred_fallthru
        _
      // Predicated region
      $region61: #{gated_conv2d_with_activation.2} parent=55 // pred_check
        %p1671 = pneg %p208
      $region62: #{gated_conv2d_with_activation.2} parent=55 // pred_check_branch
        %1673 = sbr.rel (%p1671) target = $region64
      $region63: #{gated_conv2d_with_activation.2} parent=55 // pred_region
        %p1674 = scmp.lt.s32.totalorder %s24, 1
        %s1675 = scalar_select %p1674, %s24, 1
        %s1676 = smul.addr %s1675, 8
        %s1677 = scalar_lea.vmem %s6, %s1676
      $region64: #{gated_conv2d_with_activation.2} parent=55 // pred_fallthru
        _
    $region56: #{gated_conv2d_with_activation.2} parent=5 // pred_fallthru
      _
  $region6: #{gated_conv2d_with_activation.2} parent=0 // loop_footer
    %s17 = sadd.s32 1, %s13
  $region7: #{gated_conv2d_with_activation.2} parent=0 // loop_footer_branch
    %12 = sbr.rel target = $region3
  $region8: #{gated_conv2d_with_activation.2} parent=0 // loop_exit
    _

// kernel: gated_conv2d_with_activation.3
$region0: #{gated_conv2d_with_activation.3}
  #allocation0 [shape = 'u32[]', space=smem, size = 0x4, offset = 0x4, fixed_abs, tag = 'smem constant byte address 0x4 - core index']
  #allocation1 [shape = 'u32[144,128]{1,0:T(1,128)}', space=vmem, size = 0x12000, scoped, tag = 'internal scratch']
  %s0 = inlined_call_operand.vmem [shape: bf16[4,1536], index: 0, kind: input, shape index: {}, may-alias: {0,1}]
  %s1 = inlined_call_operand.vmem [shape: bf16[4,1536], index: 1, kind: input, shape index: {}, may-alias: {0,1}]
  %s2 = inlined_call_operand.vmem [shape: bf16[9,16,4], index: 2, kind: input, shape index: {}]
  %s3 = inlined_call_operand.vmem [shape: f32[16,1], index: 3, kind: input, shape index: {}]
  %s4 = inlined_call_operand.vmem [shape: f32[8,1], index: 4, kind: input, shape index: {}]
  %s5 = inlined_call_operand.vmem [shape: f32[8,1], index: 5, kind: input, shape index: {}]
  %s6 = inlined_call_operand.vmem [shape: f32[8,1024], index: 6, kind: output, shape index: {}]
  %s7 = sld [smem:[#allocation0]]
  $region57: #{gated_conv2d_with_activation.3} parent=0
    _
  %s9 = ssub.s32 1, %s7
  %s10 = scalar_select 0, %s9, %s7
  loop: start=0, step=1, limit=4
  $region2: #{gated_conv2d_with_activation.3} parent=0 // loop_pre_header
    _
  $region3: #{gated_conv2d_with_activation.3} parent=0 // loop_header
    %s12 = sphi 0, %s16
    %p13 = scmp.ge.s32.totalorder %s12, 4
    %s22 = sphi 0, %s24
    %s25 = sphi 0, %s22
    %s26 = sphi 0, %s25
    %s42 = sphi 0, %s26
    %s50 = sphi 0, %s52
    %s53 = sphi 0, %s50
    %s54 = sphi 0, %s53
    %s70 = sphi 0, %s54
    %s74 = sphi 0, %s74
    %s76 = sphi 0, %s74
    %s77 = sphi 0, %s76
    %s91 = sphi 0, %s77
    %s95 = sphi 0, %s95
    %s97 = sphi 0, %s95
    %s98 = sphi 0, %s97
    %s112 = sphi 0, %s98
    %s116 = sphi 0, %s116
    %s118 = sphi 0, %s116
    %s119 = sphi 0, %s118
    %s133 = sphi 0, %s119
    %s137 = sphi 0, %s137
    %s139 = sphi 0, %s137
    %s140 = sphi 0, %s139
    %s154 = sphi 0, %s140
    %s160 = sphi 0, %s162
    %s163 = sphi 0, %s160
    %s164 = sphi 0, %s163
    %s180 = sphi 0, %s164
  $region4: #{gated_conv2d_with_activation.3} parent=0 // loop_header_branch
    %15 = sbr.rel (%p13) target = $region8
  $region5: #{gated_conv2d_with_activation.3} parent=0 // loop_body
    %s17 = ssub.s32 %s12, 1
    %s18 = ssub.s32 %s12, 2
    %s19 = sadd.s32 %s12, 1
    %s20 = ssub.s32 %s12, %s19
    %p21 = scmp.eq.s32.totalorder %s20, 0
    %s23 = sadd.s32 %s22, 1
    %s24 = scalar_select %p21, %s22, %s23
    %p27 = pneg %p21
    %p28 = scmp.eq.s32.totalorder %s12, 1
    %p29 = por %p27, %p28
    %p30 = scmp.ne.s32.totalorder %s22, %s25
    %p31 = scmp.eq.s32.totalorder %s12, 0
    %p32 = por %p30, %p31
    %p33 = scmp.ne.s32.totalorder %s22, %s25
    %p34 = scmp.eq.s32.totalorder %s17, 1
    %p35 = por %p33, %p34
    %p36 = scmp.ne.s32.totalorder %s25, %s26
    %p37 = scmp.eq.s32.totalorder %s17, 0
    %p38 = por %p36, %p37
    %p39 = scmp.ne.s32.totalorder %s25, %s26
    %p40 = scmp.eq.s32.totalorder %s18, 1
    %p41 = por %p39, %p40
    %p43 = scmp.ne.s32.totalorder %s26, %s42
    %p44 = scmp.eq.s32.totalorder %s18, 0
    %p45 = por %p43, %p44
    %s46 = sadd.s32 %s12, 1
    %s47 = sadd.s32 %s19, 1
    %s48 = ssub.s32 %s46, %s47
    %p49 = scmp.eq.s32.totalorder %s48, 0
    %s51 = sadd.s32 %s50, 1
    %s52 = scalar_select %p49, %s50, %s51
    %p55 = pneg %p49
    %p56 = scmp.eq.s32.totalorder %s12, 1
    %p57 = por %p55, %p56
    %p58 = scmp.ne.s32.totalorder %s50, %s53
    %p59 = scmp.eq.s32.totalorder %s12, 0
    %p60 = por %p58, %p59
    %p61 = scmp.ne.s32.totalorder %s50, %s53
    %p62 = scmp.eq.s32.totalorder %s17, 1
    %p63 = por %p61, %p62
    %p64 = scmp.ne.s32.totalorder %s53, %s54
    %p65 = scmp.eq.s32.totalorder %s17, 0
    %p66 = por %p64, %p65
    %p67 = scmp.ne.s32.totalorder %s53, %s54
    %p68 = scmp.eq.s32.totalorder %s18, 1
    %p69 = por %p67, %p68
    %p71 = scmp.ne.s32.totalorder %s54, %s70
    %p72 = scmp.eq.s32.totalorder %s18, 0
    %p73 = por %p71, %p72
    %s75 = sadd.s32 %s74, 1
    %p78 = scmp.eq.s32.totalorder %s12, 1
    %p79 = scmp.ne.s32.totalorder %s74, %s76
    %p80 = scmp.eq.s32.totalorder %s12, 0
    %p81 = por %p79, %p80
    %p82 = scmp.ne.s32.totalorder %s74, %s76
    %p83 = scmp.eq.s32.totalorder %s17, 1
    %p84 = por %p82, %p83
    %p85 = scmp.ne.s32.totalorder %s76, %s77
    %p86 = scmp.eq.s32.totalorder %s17, 0
    %p87 = por %p85, %p86
    %p88 = scmp.ne.s32.totalorder %s76, %s77
    %p89 = scmp.eq.s32.totalorder %s18, 1
    %p90 = por %p88, %p89
    %p92 = scmp.ne.s32.totalorder %s77, %s91
    %p93 = scmp.eq.s32.totalorder %s18, 0
    %p94 = por %p92, %p93
    %s96 = sadd.s32 %s95, 1
    %p99 = scmp.eq.s32.totalorder %s12, 1
    %p100 = scmp.ne.s32.totalorder %s95, %s97
    %p101 = scmp.eq.s32.totalorder %s12, 0
    %p102 = por %p100, %p101
    %p103 = scmp.ne.s32.totalorder %s95, %s97
    %p104 = scmp.eq.s32.totalorder %s17, 1
    %p105 = por %p103, %p104
    %p106 = scmp.ne.s32.totalorder %s97, %s98
    %p107 = scmp.eq.s32.totalorder %s17, 0
    %p108 = por %p106, %p107
    %p109 = scmp.ne.s32.totalorder %s97, %s98
    %p110 = scmp.eq.s32.totalorder %s18, 1
    %p111 = por %p109, %p110
    %p113 = scmp.ne.s32.totalorder %s98, %s112
    %p114 = scmp.eq.s32.totalorder %s18, 0
    %p115 = por %p113, %p114
    %s117 = sadd.s32 %s116, 1
    %p120 = scmp.eq.s32.totalorder %s12, 1
    %p121 = scmp.ne.s32.totalorder %s116, %s118
    %p122 = scmp.eq.s32.totalorder %s12, 0
    %p123 = por %p121, %p122
    %p124 = scmp.ne.s32.totalorder %s116, %s118
    %p125 = scmp.eq.s32.totalorder %s17, 1
    %p126 = por %p124, %p125
    %p127 = scmp.ne.s32.totalorder %s118, %s119
    %p128 = scmp.eq.s32.totalorder %s17, 0
    %p129 = por %p127, %p128
    %p130 = scmp.ne.s32.totalorder %s118, %s119
    %p131 = scmp.eq.s32.totalorder %s18, 1
    %p132 = por %p130, %p131
    %p134 = scmp.ne.s32.totalorder %s119, %s133
    %p135 = scmp.eq.s32.totalorder %s18, 0
    %p136 = por %p134, %p135
    %s138 = sadd.s32 %s137, 1
    %p141 = scmp.eq.s32.totalorder %s12, 1
    %p142 = scmp.ne.s32.totalorder %s137, %s139
    %p143 = scmp.eq.s32.totalorder %s12, 0
    %p144 = por %p142, %p143
    %p145 = scmp.ne.s32.totalorder %s137, %s139
    %p146 = scmp.eq.s32.totalorder %s17, 1
    %p147 = por %p145, %p146
    %p148 = scmp.ne.s32.totalorder %s139, %s140
    %p149 = scmp.eq.s32.totalorder %s17, 0
    %p150 = por %p148, %p149
    %p151 = scmp.ne.s32.totalorder %s139, %s140
    %p152 = scmp.eq.s32.totalorder %s18, 1
    %p153 = por %p151, %p152
    %p155 = scmp.ne.s32.totalorder %s140, %s154
    %p156 = scmp.eq.s32.totalorder %s18, 0
    %p157 = por %p155, %p156
    %s158 = ssub.s32 %s12, %s19
    %p159 = scmp.eq.s32.totalorder %s158, 0
    %s161 = sadd.s32 %s160, 1
    %s162 = scalar_select %p159, %s160, %s161
    %p165 = pneg %p159
    %p166 = scmp.eq.s32.totalorder %s12, 1
    %p167 = por %p165, %p166
    %p168 = scmp.ne.s32.totalorder %s160, %s163
    %p169 = scmp.eq.s32.totalorder %s12, 0
    %p170 = por %p168, %p169
    %p171 = scmp.ne.s32.totalorder %s160, %s163
    %p172 = scmp.eq.s32.totalorder %s17, 1
    %p173 = por %p171, %p172
    %p174 = scmp.ne.s32.totalorder %s163, %s164
    %p175 = scmp.eq.s32.totalorder %s17, 0
    %p176 = por %p174, %p175
    %p177 = scmp.ne.s32.totalorder %s163, %s164
    %p178 = scmp.eq.s32.totalorder %s18, 1
    %p179 = por %p177, %p178
    %p181 = scmp.ne.s32.totalorder %s164, %s180
    %p182 = scmp.eq.s32.totalorder %s18, 0
    %p183 = por %p181, %p182
    %p184 = scmp.le.s32.totalorder 1, %s12
    %p185 = scmp.lt.s32.totalorder %s12, 3
    %p186 = pnand %p184, %p185
    %p187 = pneg %p186
    // Predicated region
    $region9: #{gated_conv2d_with_activation.3} parent=5 // pred_check
      _
    $region10: #{gated_conv2d_with_activation.3} parent=5 // pred_check_branch
      %189 = sbr.rel (%p186) target = $region12
    $region11: #{gated_conv2d_with_activation.3} parent=5 // pred_region
      %s190 = ssub.s32 %s12, 1
      // Predicated region
      $region13: #{gated_conv2d_with_activation.3} parent=11 // pred_check
        %p191 = pneg %p87
      $region14: #{gated_conv2d_with_activation.3} parent=11 // pred_check_branch
        %193 = sbr.rel (%p191) target = $region16
      $region15: #{gated_conv2d_with_activation.3} parent=11 // pred_region
        _
      $region16: #{gated_conv2d_with_activation.3} parent=11 // pred_fallthru
        _
      // Predicated region
      $region17: #{gated_conv2d_with_activation.3} parent=11 // pred_check
        %p194 = pneg %p108
      $region18: #{gated_conv2d_with_activation.3} parent=11 // pred_check_branch
        %196 = sbr.rel (%p194) target = $region20
      $region19: #{gated_conv2d_with_activation.3} parent=11 // pred_region
        _
      $region20: #{gated_conv2d_with_activation.3} parent=11 // pred_fallthru
        _
      // Predicated region
      $region21: #{gated_conv2d_with_activation.3} parent=11 // pred_check
        %p197 = pneg %p129
      $region22: #{gated_conv2d_with_activation.3} parent=11 // pred_check_branch
        %199 = sbr.rel (%p197) target = $region24
      $region23: #{gated_conv2d_with_activation.3} parent=11 // pred_region
        _
      $region24: #{gated_conv2d_with_activation.3} parent=11 // pred_fallthru
        _
      // Predicated region
      $region25: #{gated_conv2d_with_activation.3} parent=11 // pred_check
        %p200 = pneg %p150
      $region26: #{gated_conv2d_with_activation.3} parent=11 // pred_check_branch
        %202 = sbr.rel (%p200) target = $region28
      $region27: #{gated_conv2d_with_activation.3} parent=11 // pred_region
        _
      $region28: #{gated_conv2d_with_activation.3} parent=11 // pred_fallthru
        _
    $region12: #{gated_conv2d_with_activation.3} parent=5 // pred_fallthru
      _
    %p203 = scmp.lt.s32.totalorder %s12, 2
    // Predicated region
    $region29: #{gated_conv2d_with_activation.3} parent=5 // pred_check
      %p204 = pneg %p203
    $region30: #{gated_conv2d_with_activation.3} parent=5 // pred_check_branch
      %206 = sbr.rel (%p204) target = $region32
    $region31: #{gated_conv2d_with_activation.3} parent=5 // pred_region
      // Predicated region
      $region33: #{gated_conv2d_with_activation.3} parent=31 // pred_check
        %p207 = pneg %p32
      $region34: #{gated_conv2d_with_activation.3} parent=31 // pred_check_branch
        %209 = sbr.rel (%p207) target = $region36
      $region35: #{gated_conv2d_with_activation.3} parent=31 // pred_region
        %s210 = smul.u32 4, %s12
        %p211 = scmp.lt.s32.totalorder %s210, 11
        %s212 = scalar_select %p211, %s210, 11
        %s213 = smul.addr %s212, 2
        %s214 = scalar_lea.vmem %s0, %s213
        %s215 = smul.u32 4, %s12
      $region36: #{gated_conv2d_with_activation.3} parent=31 // pred_fallthru
        _
      // Predicated region
      $region37: #{gated_conv2d_with_activation.3} parent=31 // pred_check
        %p216 = pneg %p60
      $region38: #{gated_conv2d_with_activation.3} parent=31 // pred_check_branch
        %218 = sbr.rel (%p216) target = $region40
      $region39: #{gated_conv2d_with_activation.3} parent=31 // pred_region
        %s219 = sadd.s32 %s12, 1
        %s220 = smul.u32 4, %s219
        %p221 = scmp.lt.s32.totalorder %s220, 11
        %s222 = scalar_select %p221, %s220, 11
        %s223 = smul.addr %s222, 2
        %s224 = scalar_lea.vmem %s1, %s223
        %s225 = sadd.s32 %s12, 1
        %s226 = smul.u32 4, %s225
      $region40: #{gated_conv2d_with_activation.3} parent=31 // pred_fallthru
        _
    $region32: #{gated_conv2d_with_activation.3} parent=5 // pred_fallthru
      _
    %p227 = scmp.le.s32.totalorder 1, %s12
    %p228 = scmp.lt.s32.totalorder %s12, 3
    %p229 = pnand %p227, %p228
    %p230 = pneg %p229
    // Predicated region
    $region41: #{gated_conv2d_with_activation.3} parent=5 // pred_check
      _
    $region42: #{gated_conv2d_with_activation.3} parent=5 // pred_check_branch
      %232 = sbr.rel (%p229) target = $region44
    $region43: #{gated_conv2d_with_activation.3} parent=5 // pred_region
      %s233 = ssub.s32 %s12, 1
      %s234 = smul.u32 4, %s17
      %p235 = scmp.lt.s32.totalorder %s234, 11
      %s236 = scalar_select %p235, %s234, 11
      %s237 = smul.addr %s236, 2
      %s238 = scalar_lea.vmem %s0, %s237
      %p239 = pneg %p38
      %p240 = pneg %p35
      %s241 = sadd.s32 %s17, 1
      %s242 = smul.u32 4, %s241
      %p243 = scmp.lt.s32.totalorder %s242, 11
      %s244 = scalar_select %p243, %s242, 11
      %s245 = smul.addr %s244, 2
      %s246 = scalar_lea.vmem %s1, %s245
      %p247 = pneg %p66
      %p248 = pneg %p63
      %p249 = pneg %p87
      %p250 = pneg %p84
      %p251 = pneg %p108
      %p252 = pneg %p105
      %p253 = pneg %p129
      %p254 = pneg %p126
      %p255 = pneg %p150
      %p256 = pneg %p147
      %p257 = pneg %p176
      %p258 = pneg %p173
      %s259 = smul.u32 4, %s17
      %p260 = scmp.lt.s32.totalorder %s259, 7
      %s261 = scalar_select %p260, %s259, 7
      %s262 = smul.addr %s261, 8
      %s263 = scalar_lea.vmem %s6, %s262
      %s264 = smul.u32 4, %s17
      %p265 = scmp.lt.s32.totalorder %s264, 11
      %s266 = scalar_select %p265, %s264, 11
      %s267 = smul.addr %s266, 2
      %s268 = scalar_lea.vmem %s0, %s267
      %s269 = smul.u32 4, %s17
      %s270 = sadd.s32 %s17, 1
      %s271 = smul.u32 4, %s270
      %p272 = scmp.lt.s32.totalorder %s271, 11
      %s273 = scalar_select %p272, %s271, 11
      %s274 = smul.addr %s273, 2
      %s275 = scalar_lea.vmem %s1, %s274
      %s276 = sadd.s32 %s17, 1
      %s277 = smul.u32 4, %s276
      %s278 = smul.u32 4, %s17
      %p279 = scmp.lt.s32.totalorder %s278, 7
      %s280 = scalar_select %p279, %s278, 7
      %s281 = smul.addr %s280, 8
      %s282 = scalar_lea.vmem %s6, %s281
      %s283 = smul.u32 4, %s17
      %v285 = vld [vmem:[%s268] sm:$0xff]
      %v286 = vld [vmem:[%s275] sm:$0xff]
      %v288 = vcombine.high %v285, %v285
      %v290 = vunpack.c.l.s4 1983009808
      %v291 = vunpack.c.0.s8 %v290
      %v292 = vlaneseq
      %v293 = vshrl.u32 %v292, 7
      %v294 = vsub.s32 %v291, %v293
      %v295 = vrot.slane %v285, %v294
      %v297 = vunpack.c.l.s4 1983009808
      %v298 = vunpack.c.0.s8 %v297
      %v299 = vlaneseq
      %v300 = vshrl.u32 %v299, 7
      %v301 = vsub.s32 %v298, %v300
      %v302 = vrot.slane %v288, %v301
      %v303 = vcombine.high %v295, %v295
      %v304 = vcombine.high %v302, %v302
      %v307 = vunpack.c.l.s4 1983009808
      %v308 = vunpack.c.0.s8 %v307
      %v309 = vlaneseq
      %v310 = vshrl.u32 %v309, 7
      %v311 = vsub.s32 %v308, %v310
      %v312 = vrot.slane %v286, %v311
      %v313 = vld [vmem:[%s2] sm:$0xf]
      %v314 = vld [vmem:[%s2 + $0x4] sm:$0xf]
      %s315 = scalar_lea.vmem %s2, 8
      %v316 = vld [vmem:[%s315] sm:$0xf]
      %v317 = vld [vmem:[%s315 + $0x4] sm:$0xf]
      %v320 = vunpack.c.l.b16 %v316
      %v321 = vunpack.c.l.b16 %v317
      %v322 = vpack.c.b16 %v321, %v320
      %323 = vrot.lane.b32.xlu0 %v295, 127
      %v324 = vpop.permute.xlu0 %323
      %325 = vrot.lane.b32.xlu0 %v303, 127
      %v326 = vpop.permute.xlu0 %325
      %327 = vrot.lane.b32.xlu0 %v302, 127
      %v328 = vpop.permute.xlu0 %327
      %329 = vrot.lane.b32.xlu0 %v304, 127
      %v330 = vpop.permute.xlu0 %329
      %331 = vrot.lane.b32.xlu0 %v312, 127
      %v332 = vpop.permute.xlu0 %331
      %vm333 = vcmask 1039360
      %v334 = vsel %vm333, %v324, %v326
      %v335 = vsel %vm333, %v326, %v328
      %v336 = vsel %vm333, %v328, %v330
      %v337 = vsel %vm333, %v330, %v332
      %vm338 = vcmask 31744
      %v340 = vsel %vm338, %v322, 0
      %vm342 = vcmask 1041408
      %v344 = vsel %vm342, %v334, 0
      %v347 = vsel %vm342, %v335, 0
      %v350 = vsel %vm342, %v336, 0
      %v353 = vsel %vm342, %v337, 0
      %355 = vmatprep.subr.bf16.mxu0 0
      %356 = vmatpush1.bf16.msra.mxu0 0
      %357 = vmatprep.subr.bf16.mxu0 0
      %358 = vmatpush1.bf16.msra.mxu0 0
      %359 = vmatprep.subr.bf16.mxu0 0
      %360 = vmatpush1.bf16.msra.mxu0 0
      %361 = vmatprep.subr.bf16.mxu0 0
      %362 = vmatpush1.bf16.msra.mxu0 0
      %363 = vmatprep.subr.bf16.mxu0 0
      %364 = vmatpush1.bf16.msra.mxu0 0
      %365 = vmatprep.subr.bf16.mxu0 0
      %366 = vmatpush1.bf16.msra.mxu0 0
      %367 = vmatprep.subr.bf16.mxu0 0
      %368 = vmatpush1.bf16.msra.mxu0 0
      %369 = vmatprep.subr.bf16.mxu0 %v347
      %370 = vmatpush1.bf16.msra.mxu0 %v344
      %371 = vmatprep.subr.bf16.mxu0 0
      %372 = vmatpush2.bf16.msra.mxu0 0
      %373 = vmatprep.subr.bf16.mxu0 0
      %374 = vmatpush2.bf16.msra.mxu0 0
      %375 = vmatprep.subr.bf16.mxu0 0
      %376 = vmatpush2.bf16.msra.mxu0 0
      %377 = vmatprep.subr.bf16.mxu0 0
      %378 = vmatpush2.bf16.msra.mxu0 0
      %379 = vmatprep.subr.bf16.mxu0 0
      %380 = vmatpush2.bf16.msra.mxu0 0
      %381 = vmatprep.subr.bf16.mxu0 0
      %382 = vmatpush2.bf16.msra.mxu0 0
      %383 = vmatprep.subr.bf16.mxu0 0
      %384 = vmatpush2.bf16.msra.mxu0 0
      %385 = vmatprep.subr.bf16.mxu0 0
      %386 = vmatpush2.bf16.msra.mxu0 0
      %387 = vmatprep.mubr.bf16.mxu0 0
      %388 = vmatmul.mubr.bf16.gmra.mxu0 %v340
      %v389 = vpop.f32.mrf.mxu0
      %v390 = vadd.f32 0.0, %v389
      %v391 = vpop.f32.mrf.mxu0
      %v392 = vadd.f32 0.0, %v391
      %v393 = vpop.f32.mrf.mxu0
      %v394 = vadd.f32 0.0, %v393
      %v395 = vpop.f32.mrf.mxu0
      %v396 = vadd.f32 0.0, %v395
      %397 = vdwg.mxu0
      %398 = vmatprep.subr.bf16.mxu0 0
      %399 = vmatpush1.bf16.msra.mxu0 0
      %400 = vmatprep.subr.bf16.mxu0 0
      %401 = vmatpush1.bf16.msra.mxu0 0
      %402 = vmatprep.subr.bf16.mxu0 0
      %403 = vmatpush1.bf16.msra.mxu0 0
      %404 = vmatprep.subr.bf16.mxu0 0
      %405 = vmatpush1.bf16.msra.mxu0 0
      %406 = vmatprep.subr.bf16.mxu0 0
      %407 = vmatpush1.bf16.msra.mxu0 0
      %408 = vmatprep.subr.bf16.mxu0 0
      %409 = vmatpush1.bf16.msra.mxu0 0
      %410 = vmatprep.subr.bf16.mxu0 0
      %411 = vmatpush1.bf16.msra.mxu0 0
      %412 = vmatprep.subr.bf16.mxu0 %v353
      %413 = vmatpush1.bf16.msra.mxu0 %v350
      %414 = vmatprep.subr.bf16.mxu0 0
      %415 = vmatpush2.bf16.msra.mxu0 0
      %416 = vmatprep.subr.bf16.mxu0 0
      %417 = vmatpush2.bf16.msra.mxu0 0
      %418 = vmatprep.subr.bf16.mxu0 0
      %419 = vmatpush2.bf16.msra.mxu0 0
      %420 = vmatprep.subr.bf16.mxu0 0
      %421 = vmatpush2.bf16.msra.mxu0 0
      %422 = vmatprep.subr.bf16.mxu0 0
      %423 = vmatpush2.bf16.msra.mxu0 0
      %424 = vmatprep.subr.bf16.mxu0 0
      %425 = vmatpush2.bf16.msra.mxu0 0
      %426 = vmatprep.subr.bf16.mxu0 0
      %427 = vmatpush2.bf16.msra.mxu0 0
      %428 = vmatprep.subr.bf16.mxu0 0
      %429 = vmatpush2.bf16.msra.mxu0 0
      %430 = vmatprep.mubr.bf16.mxu0 0
      %431 = vmatmul.mubr.bf16.gmra.mxu0 %v340
      %v432 = vpop.f32.mrf.mxu0
      %v433 = vadd.f32 0.0, %v432
      %v434 = vpop.f32.mrf.mxu0
      %v435 = vadd.f32 0.0, %v434
      %v436 = vpop.f32.mrf.mxu0
      %v437 = vadd.f32 0.0, %v436
      %v438 = vpop.f32.mrf.mxu0
      %v439 = vadd.f32 0.0, %v438
      %440 = vdwg.mxu0
      %v443 = vunpack.c.l.b16 %v313
      %v444 = vunpack.c.l.b16 %v314
      %v445 = vpack.c.b16 %v444, %v443
      %v447 = vsel %vm338, %v445, 0
      %v450 = vsel %vm342, %v295, 0
      %v453 = vsel %vm342, %v303, 0
      %v456 = vsel %vm342, %v302, 0
      %v459 = vsel %vm342, %v304, 0
      %461 = vmatprep.subr.bf16.mxu0 0
      %462 = vmatpush1.bf16.msra.mxu0 0
      %463 = vmatprep.subr.bf16.mxu0 0
      %464 = vmatpush1.bf16.msra.mxu0 0
      %465 = vmatprep.subr.bf16.mxu0 0
      %466 = vmatpush1.bf16.msra.mxu0 0
      %467 = vmatprep.subr.bf16.mxu0 0
      %468 = vmatpush1.bf16.msra.mxu0 0
      %469 = vmatprep.subr.bf16.mxu0 0
      %470 = vmatpush1.bf16.msra.mxu0 0
      %471 = vmatprep.subr.bf16.mxu0 0
      %472 = vmatpush1.bf16.msra.mxu0 0
      %473 = vmatprep.subr.bf16.mxu0 0
      %474 = vmatpush1.bf16.msra.mxu0 0
      %475 = vmatprep.subr.bf16.mxu0 %v453
      %476 = vmatpush1.bf16.msra.mxu0 %v450
      %477 = vmatprep.subr.bf16.mxu0 0
      %478 = vmatpush2.bf16.msra.mxu0 0
      %479 = vmatprep.subr.bf16.mxu0 0
      %480 = vmatpush2.bf16.msra.mxu0 0
      %481 = vmatprep.subr.bf16.mxu0 0
      %482 = vmatpush2.bf16.msra.mxu0 0
      %483 = vmatprep.subr.bf16.mxu0 0
      %484 = vmatpush2.bf16.msra.mxu0 0
      %485 = vmatprep.subr.bf16.mxu0 0
      %486 = vmatpush2.bf16.msra.mxu0 0
      %487 = vmatprep.subr.bf16.mxu0 0
      %488 = vmatpush2.bf16.msra.mxu0 0
      %489 = vmatprep.subr.bf16.mxu0 0
      %490 = vmatpush2.bf16.msra.mxu0 0
      %491 = vmatprep.subr.bf16.mxu0 0
      %492 = vmatpush2.bf16.msra.mxu0 0
      %493 = vmatprep.mubr.bf16.mxu0 0
      %494 = vmatmul.mubr.bf16.gmra.mxu0 %v447
      %v495 = vpop.f32.mrf.mxu0
      %v496 = vadd.f32 %v390, %v495
      %v497 = vpop.f32.mrf.mxu0
      %v498 = vadd.f32 %v392, %v497
      %v499 = vpop.f32.mrf.mxu0
      %v500 = vadd.f32 %v394, %v499
      %v501 = vpop.f32.mrf.mxu0
      %v502 = vadd.f32 %v396, %v501
      %503 = vdwg.mxu0
      %504 = vmatprep.subr.bf16.mxu0 0
      %505 = vmatpush1.bf16.msra.mxu0 0
      %506 = vmatprep.subr.bf16.mxu0 0
      %507 = vmatpush1.bf16.msra.mxu0 0
      %508 = vmatprep.subr.bf16.mxu0 0
      %509 = vmatpush1.bf16.msra.mxu0 0
      %510 = vmatprep.subr.bf16.mxu0 0
      %511 = vmatpush1.bf16.msra.mxu0 0
      %512 = vmatprep.subr.bf16.mxu0 0
      %513 = vmatpush1.bf16.msra.mxu0 0
      %514 = vmatprep.subr.bf16.mxu0 0
      %515 = vmatpush1.bf16.msra.mxu0 0
      %516 = vmatprep.subr.bf16.mxu0 0
      %517 = vmatpush1.bf16.msra.mxu0 0
      %518 = vmatprep.subr.bf16.mxu0 %v459
      %519 = vmatpush1.bf16.msra.mxu0 %v456
      %520 = vmatprep.subr.bf16.mxu0 0
      %521 = vmatpush2.bf16.msra.mxu0 0
      %522 = vmatprep.subr.bf16.mxu0 0
      %523 = vmatpush2.bf16.msra.mxu0 0
      %524 = vmatprep.subr.bf16.mxu0 0
      %525 = vmatpush2.bf16.msra.mxu0 0
      %526 = vmatprep.subr.bf16.mxu0 0
      %527 = vmatpush2.bf16.msra.mxu0 0
      %528 = vmatprep.subr.bf16.mxu0 0
      %529 = vmatpush2.bf16.msra.mxu0 0
      %530 = vmatprep.subr.bf16.mxu0 0
      %531 = vmatpush2.bf16.msra.mxu0 0
      %532 = vmatprep.subr.bf16.mxu0 0
      %533 = vmatpush2.bf16.msra.mxu0 0
      %534 = vmatprep.subr.bf16.mxu0 0
      %535 = vmatpush2.bf16.msra.mxu0 0
      %536 = vmatprep.mubr.bf16.mxu0 0
      %537 = vmatmul.mubr.bf16.gmra.mxu0 %v447
      %v538 = vpop.f32.mrf.mxu0
      %v539 = vadd.f32 %v433, %v538
      %v540 = vpop.f32.mrf.mxu0
      %v541 = vadd.f32 %v435, %v540
      %v542 = vpop.f32.mrf.mxu0
      %v543 = vadd.f32 %v437, %v542
      %v544 = vpop.f32.mrf.mxu0
      %v545 = vadd.f32 %v439, %v544
      %546 = vdwg.mxu0
      %s547 = scalar_lea.vmem %s2, 16
      %v548 = vld [vmem:[%s547] sm:$0xf]
      %v549 = vld [vmem:[%s547 + $0x4] sm:$0xf]
      %v552 = vunpack.c.l.b16 %v548
      %v553 = vunpack.c.l.b16 %v549
      %v554 = vpack.c.b16 %v553, %v552
      %555 = vrot.lane.b32.xlu0 %v295, 126
      %v556 = vpop.permute.xlu0 %555
      %557 = vrot.lane.b32.xlu0 %v303, 126
      %v558 = vpop.permute.xlu0 %557
      %559 = vrot.lane.b32.xlu0 %v302, 126
      %v560 = vpop.permute.xlu0 %559
      %561 = vrot.lane.b32.xlu0 %v304, 126
      %v562 = vpop.permute.xlu0 %561
      %563 = vrot.lane.b32.xlu0 %v312, 126
      %v564 = vpop.permute.xlu0 %563
      %vm565 = vcmask 1031168
      %v566 = vsel %vm565, %v556, %v558
      %v567 = vsel %vm565, %v558, %v560
      %v568 = vsel %vm565, %v560, %v562
      %v569 = vsel %vm565, %v562, %v564
      %v571 = vsel %vm338, %v554, 0
      %v574 = vsel %vm342, %v566, 0
      %v577 = vsel %vm342, %v567, 0
      %v580 = vsel %vm342, %v568, 0
      %v583 = vsel %vm342, %v569, 0
      %585 = vmatprep.subr.bf16.mxu0 0
      %586 = vmatpush1.bf16.msra.mxu0 0
      %587 = vmatprep.subr.bf16.mxu0 0
      %588 = vmatpush1.bf16.msra.mxu0 0
      %589 = vmatprep.subr.bf16.mxu0 0
      %590 = vmatpush1.bf16.msra.mxu0 0
      %591 = vmatprep.subr.bf16.mxu0 0
      %592 = vmatpush1.bf16.msra.mxu0 0
      %593 = vmatprep.subr.bf16.mxu0 0
      %594 = vmatpush1.bf16.msra.mxu0 0
      %595 = vmatprep.subr.bf16.mxu0 0
      %596 = vmatpush1.bf16.msra.mxu0 0
      %597 = vmatprep.subr.bf16.mxu0 0
      %598 = vmatpush1.bf16.msra.mxu0 0
      %599 = vmatprep.subr.bf16.mxu0 %v577
      %600 = vmatpush1.bf16.msra.mxu0 %v574
      %601 = vmatprep.subr.bf16.mxu0 0
      %602 = vmatpush2.bf16.msra.mxu0 0
      %603 = vmatprep.subr.bf16.mxu0 0
      %604 = vmatpush2.bf16.msra.mxu0 0
      %605 = vmatprep.subr.bf16.mxu0 0
      %606 = vmatpush2.bf16.msra.mxu0 0
      %607 = vmatprep.subr.bf16.mxu0 0
      %608 = vmatpush2.bf16.msra.mxu0 0
      %609 = vmatprep.subr.bf16.mxu0 0
      %610 = vmatpush2.bf16.msra.mxu0 0
      %611 = vmatprep.subr.bf16.mxu0 0
      %612 = vmatpush2.bf16.msra.mxu0 0
      %613 = vmatprep.subr.bf16.mxu0 0
      %614 = vmatpush2.bf16.msra.mxu0 0
      %615 = vmatprep.subr.bf16.mxu0 0
      %616 = vmatpush2.bf16.msra.mxu0 0
      %617 = vmatprep.mubr.bf16.mxu0 0
      %618 = vmatmul.mubr.bf16.gmra.mxu0 %v571
      %v619 = vpop.f32.mrf.mxu0
      %v620 = vadd.f32 0.0, %v619
      %v621 = vpop.f32.mrf.mxu0
      %v622 = vadd.f32 0.0, %v621
      %v623 = vpop.f32.mrf.mxu0
      %v624 = vadd.f32 0.0, %v623
      %v625 = vpop.f32.mrf.mxu0
      %v626 = vadd.f32 0.0, %v625
      %627 = vdwg.mxu0
      %628 = vmatprep.subr.bf16.mxu0 0
      %629 = vmatpush1.bf16.msra.mxu0 0
      %630 = vmatprep.subr.bf16.mxu0 0
      %631 = vmatpush1.bf16.msra.mxu0 0
      %632 = vmatprep.subr.bf16.mxu0 0
      %633 = vmatpush1.bf16.msra.mxu0 0
      %634 = vmatprep.subr.bf16.mxu0 0
      %635 = vmatpush1.bf16.msra.mxu0 0
      %636 = vmatprep.subr.bf16.mxu0 0
      %637 = vmatpush1.bf16.msra.mxu0 0
      %638 = vmatprep.subr.bf16.mxu0 0
      %639 = vmatpush1.bf16.msra.mxu0 0
      %640 = vmatprep.subr.bf16.mxu0 0
      %641 = vmatpush1.bf16.msra.mxu0 0
      %642 = vmatprep.subr.bf16.mxu0 %v583
      %643 = vmatpush1.bf16.msra.mxu0 %v580
      %644 = vmatprep.subr.bf16.mxu0 0
      %645 = vmatpush2.bf16.msra.mxu0 0
      %646 = vmatprep.subr.bf16.mxu0 0
      %647 = vmatpush2.bf16.msra.mxu0 0
      %648 = vmatprep.subr.bf16.mxu0 0
      %649 = vmatpush2.bf16.msra.mxu0 0
      %650 = vmatprep.subr.bf16.mxu0 0
      %651 = vmatpush2.bf16.msra.mxu0 0
      %652 = vmatprep.subr.bf16.mxu0 0
      %653 = vmatpush2.bf16.msra.mxu0 0
      %654 = vmatprep.subr.bf16.mxu0 0
      %655 = vmatpush2.bf16.msra.mxu0 0
      %656 = vmatprep.subr.bf16.mxu0 0
      %657 = vmatpush2.bf16.msra.mxu0 0
      %658 = vmatprep.subr.bf16.mxu0 0
      %659 = vmatpush2.bf16.msra.mxu0 0
      %660 = vmatprep.mubr.bf16.mxu0 0
      %661 = vmatmul.mubr.bf16.gmra.mxu0 %v571
      %v662 = vpop.f32.mrf.mxu0
      %v663 = vadd.f32 0.0, %v662
      %v664 = vpop.f32.mrf.mxu0
      %v665 = vadd.f32 0.0, %v664
      %v666 = vpop.f32.mrf.mxu0
      %v667 = vadd.f32 0.0, %v666
      %v668 = vpop.f32.mrf.mxu0
      %v669 = vadd.f32 0.0, %v668
      %670 = vdwg.mxu0
      %v671 = vadd.f32 %v496, %v620
      %v672 = vadd.f32 %v498, %v622
      %v673 = vadd.f32 %v539, %v663
      %v674 = vadd.f32 %v541, %v665
      %v675 = vadd.f32 %v500, %v624
      %v676 = vadd.f32 %v502, %v626
      %v677 = vadd.f32 %v543, %v667
      %v678 = vadd.f32 %v545, %v669
      %s679 = scalar_lea.vmem %s2, 24
      %v680 = vld [vmem:[%s679] sm:$0xf]
      %v681 = vld [vmem:[%s679 + $0x4] sm:$0xf]
      %v684 = vunpack.c.l.b16 %v680
      %v685 = vunpack.c.l.b16 %v681
      %v686 = vpack.c.b16 %v685, %v684
      %687 = vrot.lane.b32.xlu0 %v295, 110
      %v688 = vpop.permute.xlu0 %687
      %689 = vrot.lane.b32.xlu0 %v303, 110
      %v690 = vpop.permute.xlu0 %689
      %691 = vrot.lane.b32.xlu0 %v302, 110
      %v692 = vpop.permute.xlu0 %691
      %693 = vrot.lane.b32.xlu0 %v304, 110
      %v694 = vpop.permute.xlu0 %693
      %695 = vrot.lane.b32.xlu0 %v312, 110
      %v696 = vpop.permute.xlu0 %695
      %vm697 = vcmask 900096
      %v698 = vsel %vm697, %v688, %v690
      %v699 = vsel %vm697, %v690, %v692
      %v700 = vsel %vm697, %v692, %v694
      %v701 = vsel %vm697, %v694, %v696
      %v703 = vsel %vm338, %v686, 0
      %v706 = vsel %vm342, %v698, 0
      %v709 = vsel %vm342, %v699, 0
      %v712 = vsel %vm342, %v700, 0
      %v715 = vsel %vm342, %v701, 0
      %717 = vmatprep.subr.bf16.mxu0 0
      %718 = vmatpush1.bf16.msra.mxu0 0
      %719 = vmatprep.subr.bf16.mxu0 0
      %720 = vmatpush1.bf16.msra.mxu0 0
      %721 = vmatprep.subr.bf16.mxu0 0
      %722 = vmatpush1.bf16.msra.mxu0 0
      %723 = vmatprep.subr.bf16.mxu0 0
      %724 = vmatpush1.bf16.msra.mxu0 0
      %725 = vmatprep.subr.bf16.mxu0 0
      %726 = vmatpush1.bf16.msra.mxu0 0
      %727 = vmatprep.subr.bf16.mxu0 0
      %728 = vmatpush1.bf16.msra.mxu0 0
      %729 = vmatprep.subr.bf16.mxu0 0
      %730 = vmatpush1.bf16.msra.mxu0 0
      %731 = vmatprep.subr.bf16.mxu0 %v709
      %732 = vmatpush1.bf16.msra.mxu0 %v706
      %733 = vmatprep.subr.bf16.mxu0 0
      %734 = vmatpush2.bf16.msra.mxu0 0
      %735 = vmatprep.subr.bf16.mxu0 0
      %736 = vmatpush2.bf16.msra.mxu0 0
      %737 = vmatprep.subr.bf16.mxu0 0
      %738 = vmatpush2.bf16.msra.mxu0 0
      %739 = vmatprep.subr.bf16.mxu0 0
      %740 = vmatpush2.bf16.msra.mxu0 0
      %741 = vmatprep.subr.bf16.mxu0 0
      %742 = vmatpush2.bf16.msra.mxu0 0
      %743 = vmatprep.subr.bf16.mxu0 0
      %744 = vmatpush2.bf16.msra.mxu0 0
      %745 = vmatprep.subr.bf16.mxu0 0
      %746 = vmatpush2.bf16.msra.mxu0 0
      %747 = vmatprep.subr.bf16.mxu0 0
      %748 = vmatpush2.bf16.msra.mxu0 0
      %749 = vmatprep.mubr.bf16.mxu0 0
      %750 = vmatmul.mubr.bf16.gmra.mxu0 %v703
      %v751 = vpop.f32.mrf.mxu0
      %v752 = vadd.f32 0.0, %v751
      %v753 = vpop.f32.mrf.mxu0
      %v754 = vadd.f32 0.0, %v753
      %v755 = vpop.f32.mrf.mxu0
      %v756 = vadd.f32 0.0, %v755
      %v757 = vpop.f32.mrf.mxu0
      %v758 = vadd.f32 0.0, %v757
      %759 = vdwg.mxu0
      %760 = vmatprep.subr.bf16.mxu0 0
      %761 = vmatpush1.bf16.msra.mxu0 0
      %762 = vmatprep.subr.bf16.mxu0 0
      %763 = vmatpush1.bf16.msra.mxu0 0
      %764 = vmatprep.subr.bf16.mxu0 0
      %765 = vmatpush1.bf16.msra.mxu0 0
      %766 = vmatprep.subr.bf16.mxu0 0
      %767 = vmatpush1.bf16.msra.mxu0 0
      %768 = vmatprep.subr.bf16.mxu0 0
      %769 = vmatpush1.bf16.msra.mxu0 0
      %770 = vmatprep.subr.bf16.mxu0 0
      %771 = vmatpush1.bf16.msra.mxu0 0
      %772 = vmatprep.subr.bf16.mxu0 0
      %773 = vmatpush1.bf16.msra.mxu0 0
      %774 = vmatprep.subr.bf16.mxu0 %v715
      %775 = vmatpush1.bf16.msra.mxu0 %v712
      %776 = vmatprep.subr.bf16.mxu0 0
      %777 = vmatpush2.bf16.msra.mxu0 0
      %778 = vmatprep.subr.bf16.mxu0 0
      %779 = vmatpush2.bf16.msra.mxu0 0
      %780 = vmatprep.subr.bf16.mxu0 0
      %781 = vmatpush2.bf16.msra.mxu0 0
      %782 = vmatprep.subr.bf16.mxu0 0
      %783 = vmatpush2.bf16.msra.mxu0 0
      %784 = vmatprep.subr.bf16.mxu0 0
      %785 = vmatpush2.bf16.msra.mxu0 0
      %786 = vmatprep.subr.bf16.mxu0 0
      %787 = vmatpush2.bf16.msra.mxu0 0
      %788 = vmatprep.subr.bf16.mxu0 0
      %789 = vmatpush2.bf16.msra.mxu0 0
      %790 = vmatprep.subr.bf16.mxu0 0
      %791 = vmatpush2.bf16.msra.mxu0 0
      %792 = vmatprep.mubr.bf16.mxu0 0
      %793 = vmatmul.mubr.bf16.gmra.mxu0 %v703
      %v794 = vpop.f32.mrf.mxu0
      %v795 = vadd.f32 0.0, %v794
      %v796 = vpop.f32.mrf.mxu0
      %v797 = vadd.f32 0.0, %v796
      %v798 = vpop.f32.mrf.mxu0
      %v799 = vadd.f32 0.0, %v798
      %v800 = vpop.f32.mrf.mxu0
      %v801 = vadd.f32 0.0, %v800
      %802 = vdwg.mxu0
      %v803 = vadd.f32 %v671, %v752
      %v804 = vadd.f32 %v672, %v754
      %v805 = vadd.f32 %v673, %v795
      %v806 = vadd.f32 %v674, %v797
      %v807 = vadd.f32 %v675, %v756
      %v808 = vadd.f32 %v676, %v758
      %v809 = vadd.f32 %v677, %v799
      %v810 = vadd.f32 %v678, %v801
      %s811 = scalar_lea.vmem %s2, 32
      %v812 = vld [vmem:[%s811] sm:$0xf]
      %v813 = vld [vmem:[%s811 + $0x4] sm:$0xf]
      %v816 = vunpack.c.l.b16 %v812
      %v817 = vunpack.c.l.b16 %v813
      %v818 = vpack.c.b16 %v817, %v816
      %819 = vrot.lane.b32.xlu0 %v295, 109
      %v820 = vpop.permute.xlu0 %819
      %821 = vrot.lane.b32.xlu0 %v303, 109
      %v822 = vpop.permute.xlu0 %821
      %823 = vrot.lane.b32.xlu0 %v302, 109
      %v824 = vpop.permute.xlu0 %823
      %825 = vrot.lane.b32.xlu0 %v304, 109
      %v826 = vpop.permute.xlu0 %825
      %827 = vrot.lane.b32.xlu0 %v312, 109
      %v828 = vpop.permute.xlu0 %827
      %vm829 = vcmask 891904
      %v830 = vsel %vm829, %v820, %v822
      %v831 = vsel %vm829, %v822, %v824
      %v832 = vsel %vm829, %v824, %v826
      %v833 = vsel %vm829, %v826, %v828
      %v835 = vsel %vm338, %v818, 0
      %v838 = vsel %vm342, %v830, 0
      %v841 = vsel %vm342, %v831, 0
      %v844 = vsel %vm342, %v832, 0
      %v847 = vsel %vm342, %v833, 0
      %849 = vmatprep.subr.bf16.mxu0 0
      %850 = vmatpush1.bf16.msra.mxu0 0
      %851 = vmatprep.subr.bf16.mxu0 0
      %852 = vmatpush1.bf16.msra.mxu0 0
      %853 = vmatprep.subr.bf16.mxu0 0
      %854 = vmatpush1.bf16.msra.mxu0 0
      %855 = vmatprep.subr.bf16.mxu0 0
      %856 = vmatpush1.bf16.msra.mxu0 0
      %857 = vmatprep.subr.bf16.mxu0 0
      %858 = vmatpush1.bf16.msra.mxu0 0
      %859 = vmatprep.subr.bf16.mxu0 0
      %860 = vmatpush1.bf16.msra.mxu0 0
      %861 = vmatprep.subr.bf16.mxu0 0
      %862 = vmatpush1.bf16.msra.mxu0 0
      %863 = vmatprep.subr.bf16.mxu0 %v841
      %864 = vmatpush1.bf16.msra.mxu0 %v838
      %865 = vmatprep.subr.bf16.mxu0 0
      %866 = vmatpush2.bf16.msra.mxu0 0
      %867 = vmatprep.subr.bf16.mxu0 0
      %868 = vmatpush2.bf16.msra.mxu0 0
      %869 = vmatprep.subr.bf16.mxu0 0
      %870 = vmatpush2.bf16.msra.mxu0 0
      %871 = vmatprep.subr.bf16.mxu0 0
      %872 = vmatpush2.bf16.msra.mxu0 0
      %873 = vmatprep.subr.bf16.mxu0 0
      %874 = vmatpush2.bf16.msra.mxu0 0
      %875 = vmatprep.subr.bf16.mxu0 0
      %876 = vmatpush2.bf16.msra.mxu0 0
      %877 = vmatprep.subr.bf16.mxu0 0
      %878 = vmatpush2.bf16.msra.mxu0 0
      %879 = vmatprep.subr.bf16.mxu0 0
      %880 = vmatpush2.bf16.msra.mxu0 0
      %881 = vmatprep.mubr.bf16.mxu0 0
      %882 = vmatmul.mubr.bf16.gmra.mxu0 %v835
      %v883 = vpop.f32.mrf.mxu0
      %v884 = vadd.f32 0.0, %v883
      %v885 = vpop.f32.mrf.mxu0
      %v886 = vadd.f32 0.0, %v885
      %v887 = vpop.f32.mrf.mxu0
      %v888 = vadd.f32 0.0, %v887
      %v889 = vpop.f32.mrf.mxu0
      %v890 = vadd.f32 0.0, %v889
      %891 = vdwg.mxu0
      %892 = vmatprep.subr.bf16.mxu0 0
      %893 = vmatpush1.bf16.msra.mxu0 0
      %894 = vmatprep.subr.bf16.mxu0 0
      %895 = vmatpush1.bf16.msra.mxu0 0
      %896 = vmatprep.subr.bf16.mxu0 0
      %897 = vmatpush1.bf16.msra.mxu0 0
      %898 = vmatprep.subr.bf16.mxu0 0
      %899 = vmatpush1.bf16.msra.mxu0 0
      %900 = vmatprep.subr.bf16.mxu0 0
      %901 = vmatpush1.bf16.msra.mxu0 0
      %902 = vmatprep.subr.bf16.mxu0 0
      %903 = vmatpush1.bf16.msra.mxu0 0
      %904 = vmatprep.subr.bf16.mxu0 0
      %905 = vmatpush1.bf16.msra.mxu0 0
      %906 = vmatprep.subr.bf16.mxu0 %v847
      %907 = vmatpush1.bf16.msra.mxu0 %v844
      %908 = vmatprep.subr.bf16.mxu0 0
      %909 = vmatpush2.bf16.msra.mxu0 0
      %910 = vmatprep.subr.bf16.mxu0 0
      %911 = vmatpush2.bf16.msra.mxu0 0
      %912 = vmatprep.subr.bf16.mxu0 0
      %913 = vmatpush2.bf16.msra.mxu0 0
      %914 = vmatprep.subr.bf16.mxu0 0
      %915 = vmatpush2.bf16.msra.mxu0 0
      %916 = vmatprep.subr.bf16.mxu0 0
      %917 = vmatpush2.bf16.msra.mxu0 0
      %918 = vmatprep.subr.bf16.mxu0 0
      %919 = vmatpush2.bf16.msra.mxu0 0
      %920 = vmatprep.subr.bf16.mxu0 0
      %921 = vmatpush2.bf16.msra.mxu0 0
      %922 = vmatprep.subr.bf16.mxu0 0
      %923 = vmatpush2.bf16.msra.mxu0 0
      %924 = vmatprep.mubr.bf16.mxu0 0
      %925 = vmatmul.mubr.bf16.gmra.mxu0 %v835
      %v926 = vpop.f32.mrf.mxu0
      %v927 = vadd.f32 0.0, %v926
      %v928 = vpop.f32.mrf.mxu0
      %v929 = vadd.f32 0.0, %v928
      %v930 = vpop.f32.mrf.mxu0
      %v931 = vadd.f32 0.0, %v930
      %v932 = vpop.f32.mrf.mxu0
      %v933 = vadd.f32 0.0, %v932
      %934 = vdwg.mxu0
      %v935 = vadd.f32 %v803, %v884
      %v936 = vadd.f32 %v804, %v886
      %v937 = vadd.f32 %v805, %v927
      %v938 = vadd.f32 %v806, %v929
      %v939 = vadd.f32 %v807, %v888
      %v940 = vadd.f32 %v808, %v890
      %v941 = vadd.f32 %v809, %v931
      %v942 = vadd.f32 %v810, %v933
      %s943 = scalar_lea.vmem %s2, 40
      %v944 = vld [vmem:[%s943] sm:$0xf]
      %v945 = vld [vmem:[%s943 + $0x4] sm:$0xf]
      %v948 = vunpack.c.l.b16 %v944
      %v949 = vunpack.c.l.b16 %v945
      %v950 = vpack.c.b16 %v949, %v948
      %951 = vrot.lane.b32.xlu0 %v295, 108
      %v952 = vpop.permute.xlu0 %951
      %953 = vrot.lane.b32.xlu0 %v303, 108
      %v954 = vpop.permute.xlu0 %953
      %955 = vrot.lane.b32.xlu0 %v302, 108
      %v956 = vpop.permute.xlu0 %955
      %957 = vrot.lane.b32.xlu0 %v304, 108
      %v958 = vpop.permute.xlu0 %957
      %959 = vrot.lane.b32.xlu0 %v312, 108
      %v960 = vpop.permute.xlu0 %959
      %vm961 = vcmask 883712
      %v962 = vsel %vm961, %v952, %v954
      %v963 = vsel %vm961, %v954, %v956
      %v964 = vsel %vm961, %v956, %v958
      %v965 = vsel %vm961, %v958, %v960
      %v967 = vsel %vm338, %v950, 0
      %v970 = vsel %vm342, %v962, 0
      %v973 = vsel %vm342, %v963, 0
      %v976 = vsel %vm342, %v964, 0
      %v979 = vsel %vm342, %v965, 0
      %981 = vmatprep.subr.bf16.mxu0 0
      %982 = vmatpush1.bf16.msra.mxu0 0
      %983 = vmatprep.subr.bf16.mxu0 0
      %984 = vmatpush1.bf16.msra.mxu0 0
      %985 = vmatprep.subr.bf16.mxu0 0
      %986 = vmatpush1.bf16.msra.mxu0 0
      %987 = vmatprep.subr.bf16.mxu0 0
      %988 = vmatpush1.bf16.msra.mxu0 0
      %989 = vmatprep.subr.bf16.mxu0 0
      %990 = vmatpush1.bf16.msra.mxu0 0
      %991 = vmatprep.subr.bf16.mxu0 0
      %992 = vmatpush1.bf16.msra.mxu0 0
      %993 = vmatprep.subr.bf16.mxu0 0
      %994 = vmatpush1.bf16.msra.mxu0 0
      %995 = vmatprep.subr.bf16.mxu0 %v973
      %996 = vmatpush1.bf16.msra.mxu0 %v970
      %997 = vmatprep.subr.bf16.mxu0 0
      %998 = vmatpush2.bf16.msra.mxu0 0
      %999 = vmatprep.subr.bf16.mxu0 0
      %1000 = vmatpush2.bf16.msra.mxu0 0
      %1001 = vmatprep.subr.bf16.mxu0 0
      %1002 = vmatpush2.bf16.msra.mxu0 0
      %1003 = vmatprep.subr.bf16.mxu0 0
      %1004 = vmatpush2.bf16.msra.mxu0 0
      %1005 = vmatprep.subr.bf16.mxu0 0
      %1006 = vmatpush2.bf16.msra.mxu0 0
      %1007 = vmatprep.subr.bf16.mxu0 0
      %1008 = vmatpush2.bf16.msra.mxu0 0
      %1009 = vmatprep.subr.bf16.mxu0 0
      %1010 = vmatpush2.bf16.msra.mxu0 0
      %1011 = vmatprep.subr.bf16.mxu0 0
      %1012 = vmatpush2.bf16.msra.mxu0 0
      %1013 = vmatprep.mubr.bf16.mxu0 0
      %1014 = vmatmul.mubr.bf16.gmra.mxu0 %v967
      %v1015 = vpop.f32.mrf.mxu0
      %v1016 = vadd.f32 0.0, %v1015
      %v1017 = vpop.f32.mrf.mxu0
      %v1018 = vadd.f32 0.0, %v1017
      %v1019 = vpop.f32.mrf.mxu0
      %v1020 = vadd.f32 0.0, %v1019
      %v1021 = vpop.f32.mrf.mxu0
      %v1022 = vadd.f32 0.0, %v1021
      %1023 = vdwg.mxu0
      %1024 = vmatprep.subr.bf16.mxu0 0
      %1025 = vmatpush1.bf16.msra.mxu0 0
      %1026 = vmatprep.subr.bf16.mxu0 0
      %1027 = vmatpush1.bf16.msra.mxu0 0
      %1028 = vmatprep.subr.bf16.mxu0 0
      %1029 = vmatpush1.bf16.msra.mxu0 0
      %1030 = vmatprep.subr.bf16.mxu0 0
      %1031 = vmatpush1.bf16.msra.mxu0 0
      %1032 = vmatprep.subr.bf16.mxu0 0
      %1033 = vmatpush1.bf16.msra.mxu0 0
      %1034 = vmatprep.subr.bf16.mxu0 0
      %1035 = vmatpush1.bf16.msra.mxu0 0
      %1036 = vmatprep.subr.bf16.mxu0 0
      %1037 = vmatpush1.bf16.msra.mxu0 0
      %1038 = vmatprep.subr.bf16.mxu0 %v979
      %1039 = vmatpush1.bf16.msra.mxu0 %v976
      %1040 = vmatprep.subr.bf16.mxu0 0
      %1041 = vmatpush2.bf16.msra.mxu0 0
      %1042 = vmatprep.subr.bf16.mxu0 0
      %1043 = vmatpush2.bf16.msra.mxu0 0
      %1044 = vmatprep.subr.bf16.mxu0 0
      %1045 = vmatpush2.bf16.msra.mxu0 0
      %1046 = vmatprep.subr.bf16.mxu0 0
      %1047 = vmatpush2.bf16.msra.mxu0 0
      %1048 = vmatprep.subr.bf16.mxu0 0
      %1049 = vmatpush2.bf16.msra.mxu0 0
      %1050 = vmatprep.subr.bf16.mxu0 0
      %1051 = vmatpush2.bf16.msra.mxu0 0
      %1052 = vmatprep.subr.bf16.mxu0 0
      %1053 = vmatpush2.bf16.msra.mxu0 0
      %1054 = vmatprep.subr.bf16.mxu0 0
      %1055 = vmatpush2.bf16.msra.mxu0 0
      %1056 = vmatprep.mubr.bf16.mxu0 0
      %1057 = vmatmul.mubr.bf16.gmra.mxu0 %v967
      %v1058 = vpop.f32.mrf.mxu0
      %v1059 = vadd.f32 0.0, %v1058
      %v1060 = vpop.f32.mrf.mxu0
      %v1061 = vadd.f32 0.0, %v1060
      %v1062 = vpop.f32.mrf.mxu0
      %v1063 = vadd.f32 0.0, %v1062
      %v1064 = vpop.f32.mrf.mxu0
      %v1065 = vadd.f32 0.0, %v1064
      %1066 = vdwg.mxu0
      %v1067 = vadd.f32 %v935, %v1016
      %v1068 = vadd.f32 %v936, %v1018
      %v1069 = vadd.f32 %v937, %v1059
      %v1070 = vadd.f32 %v938, %v1061
      %v1071 = vadd.f32 %v939, %v1020
      %v1072 = vadd.f32 %v940, %v1022
      %v1073 = vadd.f32 %v941, %v1063
      %v1074 = vadd.f32 %v942, %v1065
      %s1075 = scalar_lea.vmem %s2, 48
      %v1076 = vld [vmem:[%s1075] sm:$0xf]
      %v1077 = vld [vmem:[%s1075 + $0x4] sm:$0xf]
      %v1080 = vunpack.c.l.b16 %v1076
      %v1081 = vunpack.c.l.b16 %v1077
      %v1082 = vpack.c.b16 %v1081, %v1080
      %1083 = vrot.lane.b32.xlu0 %v295, 92
      %v1084 = vpop.permute.xlu0 %1083
      %1085 = vrot.lane.b32.xlu0 %v303, 92
      %v1086 = vpop.permute.xlu0 %1085
      %1087 = vrot.lane.b32.xlu0 %v302, 92
      %v1088 = vpop.permute.xlu0 %1087
      %1089 = vrot.lane.b32.xlu0 %v304, 92
      %v1090 = vpop.permute.xlu0 %1089
      %1091 = vrot.lane.b32.xlu0 %v312, 92
      %v1092 = vpop.permute.xlu0 %1091
      %vm1093 = vcmask 752640
      %v1094 = vsel %vm1093, %v1084, %v1086
      %v1095 = vsel %vm1093, %v1086, %v1088
      %v1096 = vsel %vm1093, %v1088, %v1090
      %v1097 = vsel %vm1093, %v1090, %v1092
      %v1099 = vsel %vm338, %v1082, 0
      %v1102 = vsel %vm342, %v1094, 0
      %v1105 = vsel %vm342, %v1095, 0
      %v1108 = vsel %vm342, %v1096, 0
      %v1111 = vsel %vm342, %v1097, 0
      %1113 = vmatprep.subr.bf16.mxu0 0
      %1114 = vmatpush1.bf16.msra.mxu0 0
      %1115 = vmatprep.subr.bf16.mxu0 0
      %1116 = vmatpush1.bf16.msra.mxu0 0
      %1117 = vmatprep.subr.bf16.mxu0 0
      %1118 = vmatpush1.bf16.msra.mxu0 0
      %1119 = vmatprep.subr.bf16.mxu0 0
      %1120 = vmatpush1.bf16.msra.mxu0 0
      %1121 = vmatprep.subr.bf16.mxu0 0
      %1122 = vmatpush1.bf16.msra.mxu0 0
      %1123 = vmatprep.subr.bf16.mxu0 0
      %1124 = vmatpush1.bf16.msra.mxu0 0
      %1125 = vmatprep.subr.bf16.mxu0 0
      %1126 = vmatpush1.bf16.msra.mxu0 0
      %1127 = vmatprep.subr.bf16.mxu0 %v1105
      %1128 = vmatpush1.bf16.msra.mxu0 %v1102
      %1129 = vmatprep.subr.bf16.mxu0 0
      %1130 = vmatpush2.bf16.msra.mxu0 0
      %1131 = vmatprep.subr.bf16.mxu0 0
      %1132 = vmatpush2.bf16.msra.mxu0 0
      %1133 = vmatprep.subr.bf16.mxu0 0
      %1134 = vmatpush2.bf16.msra.mxu0 0
      %1135 = vmatprep.subr.bf16.mxu0 0
      %1136 = vmatpush2.bf16.msra.mxu0 0
      %1137 = vmatprep.subr.bf16.mxu0 0
      %1138 = vmatpush2.bf16.msra.mxu0 0
      %1139 = vmatprep.subr.bf16.mxu0 0
      %1140 = vmatpush2.bf16.msra.mxu0 0
      %1141 = vmatprep.subr.bf16.mxu0 0
      %1142 = vmatpush2.bf16.msra.mxu0 0
      %1143 = vmatprep.subr.bf16.mxu0 0
      %1144 = vmatpush2.bf16.msra.mxu0 0
      %1145 = vmatprep.mubr.bf16.mxu0 0
      %1146 = vmatmul.mubr.bf16.gmra.mxu0 %v1099
      %v1147 = vpop.f32.mrf.mxu0
      %v1148 = vadd.f32 0.0, %v1147
      %v1149 = vpop.f32.mrf.mxu0
      %v1150 = vadd.f32 0.0, %v1149
      %v1151 = vpop.f32.mrf.mxu0
      %v1152 = vadd.f32 0.0, %v1151
      %v1153 = vpop.f32.mrf.mxu0
      %v1154 = vadd.f32 0.0, %v1153
      %1155 = vdwg.mxu0
      %1156 = vmatprep.subr.bf16.mxu0 0
      %1157 = vmatpush1.bf16.msra.mxu0 0
      %1158 = vmatprep.subr.bf16.mxu0 0
      %1159 = vmatpush1.bf16.msra.mxu0 0
      %1160 = vmatprep.subr.bf16.mxu0 0
      %1161 = vmatpush1.bf16.msra.mxu0 0
      %1162 = vmatprep.subr.bf16.mxu0 0
      %1163 = vmatpush1.bf16.msra.mxu0 0
      %1164 = vmatprep.subr.bf16.mxu0 0
      %1165 = vmatpush1.bf16.msra.mxu0 0
      %1166 = vmatprep.subr.bf16.mxu0 0
      %1167 = vmatpush1.bf16.msra.mxu0 0
      %1168 = vmatprep.subr.bf16.mxu0 0
      %1169 = vmatpush1.bf16.msra.mxu0 0
      %1170 = vmatprep.subr.bf16.mxu0 %v1111
      %1171 = vmatpush1.bf16.msra.mxu0 %v1108
      %1172 = vmatprep.subr.bf16.mxu0 0
      %1173 = vmatpush2.bf16.msra.mxu0 0
      %1174 = vmatprep.subr.bf16.mxu0 0
      %1175 = vmatpush2.bf16.msra.mxu0 0
      %1176 = vmatprep.subr.bf16.mxu0 0
      %1177 = vmatpush2.bf16.msra.mxu0 0
      %1178 = vmatprep.subr.bf16.mxu0 0
      %1179 = vmatpush2.bf16.msra.mxu0 0
      %1180 = vmatprep.subr.bf16.mxu0 0
      %1181 = vmatpush2.bf16.msra.mxu0 0
      %1182 = vmatprep.subr.bf16.mxu0 0
      %1183 = vmatpush2.bf16.msra.mxu0 0
      %1184 = vmatprep.subr.bf16.mxu0 0
      %1185 = vmatpush2.bf16.msra.mxu0 0
      %1186 = vmatprep.subr.bf16.mxu0 0
      %1187 = vmatpush2.bf16.msra.mxu0 0
      %1188 = vmatprep.mubr.bf16.mxu0 0
      %1189 = vmatmul.mubr.bf16.gmra.mxu0 %v1099
      %v1190 = vpop.f32.mrf.mxu0
      %v1191 = vadd.f32 0.0, %v1190
      %v1192 = vpop.f32.mrf.mxu0
      %v1193 = vadd.f32 0.0, %v1192
      %v1194 = vpop.f32.mrf.mxu0
      %v1195 = vadd.f32 0.0, %v1194
      %v1196 = vpop.f32.mrf.mxu0
      %v1197 = vadd.f32 0.0, %v1196
      %1198 = vdwg.mxu0
      %v1199 = vadd.f32 %v1067, %v1148
      %v1200 = vadd.f32 %v1068, %v1150
      %v1201 = vadd.f32 %v1069, %v1191
      %v1202 = vadd.f32 %v1070, %v1193
      %v1203 = vadd.f32 %v1071, %v1152
      %v1204 = vadd.f32 %v1072, %v1154
      %v1205 = vadd.f32 %v1073, %v1195
      %v1206 = vadd.f32 %v1074, %v1197
      %s1207 = scalar_lea.vmem %s2, 56
      %v1208 = vld [vmem:[%s1207] sm:$0xf]
      %v1209 = vld [vmem:[%s1207 + $0x4] sm:$0xf]
      %v1212 = vunpack.c.l.b16 %v1208
      %v1213 = vunpack.c.l.b16 %v1209
      %v1214 = vpack.c.b16 %v1213, %v1212
      %1215 = vrot.lane.b32.xlu0 %v295, 91
      %v1216 = vpop.permute.xlu0 %1215
      %1217 = vrot.lane.b32.xlu0 %v303, 91
      %v1218 = vpop.permute.xlu0 %1217
      %1219 = vrot.lane.b32.xlu0 %v302, 91
      %v1220 = vpop.permute.xlu0 %1219
      %1221 = vrot.lane.b32.xlu0 %v304, 91
      %v1222 = vpop.permute.xlu0 %1221
      %1223 = vrot.lane.b32.xlu0 %v312, 91
      %v1224 = vpop.permute.xlu0 %1223
      %vm1225 = vcmask 744448
      %v1226 = vsel %vm1225, %v1216, %v1218
      %v1227 = vsel %vm1225, %v1218, %v1220
      %v1228 = vsel %vm1225, %v1220, %v1222
      %v1229 = vsel %vm1225, %v1222, %v1224
      %v1231 = vsel %vm338, %v1214, 0
      %v1234 = vsel %vm342, %v1226, 0
      %v1237 = vsel %vm342, %v1227, 0
      %v1240 = vsel %vm342, %v1228, 0
      %v1243 = vsel %vm342, %v1229, 0
      %1245 = vmatprep.subr.bf16.mxu0 0
      %1246 = vmatpush1.bf16.msra.mxu0 0
      %1247 = vmatprep.subr.bf16.mxu0 0
      %1248 = vmatpush1.bf16.msra.mxu0 0
      %1249 = vmatprep.subr.bf16.mxu0 0
      %1250 = vmatpush1.bf16.msra.mxu0 0
      %1251 = vmatprep.subr.bf16.mxu0 0
      %1252 = vmatpush1.bf16.msra.mxu0 0
      %1253 = vmatprep.subr.bf16.mxu0 0
      %1254 = vmatpush1.bf16.msra.mxu0 0
      %1255 = vmatprep.subr.bf16.mxu0 0
      %1256 = vmatpush1.bf16.msra.mxu0 0
      %1257 = vmatprep.subr.bf16.mxu0 0
      %1258 = vmatpush1.bf16.msra.mxu0 0
      %1259 = vmatprep.subr.bf16.mxu0 %v1237
      %1260 = vmatpush1.bf16.msra.mxu0 %v1234
      %1261 = vmatprep.subr.bf16.mxu0 0
      %1262 = vmatpush2.bf16.msra.mxu0 0
      %1263 = vmatprep.subr.bf16.mxu0 0
      %1264 = vmatpush2.bf16.msra.mxu0 0
      %1265 = vmatprep.subr.bf16.mxu0 0
      %1266 = vmatpush2.bf16.msra.mxu0 0
      %1267 = vmatprep.subr.bf16.mxu0 0
      %1268 = vmatpush2.bf16.msra.mxu0 0
      %1269 = vmatprep.subr.bf16.mxu0 0
      %1270 = vmatpush2.bf16.msra.mxu0 0
      %1271 = vmatprep.subr.bf16.mxu0 0
      %1272 = vmatpush2.bf16.msra.mxu0 0
      %1273 = vmatprep.subr.bf16.mxu0 0
      %1274 = vmatpush2.bf16.msra.mxu0 0
      %1275 = vmatprep.subr.bf16.mxu0 0
      %1276 = vmatpush2.bf16.msra.mxu0 0
      %1277 = vmatprep.mubr.bf16.mxu0 0
      %1278 = vmatmul.mubr.bf16.gmra.mxu0 %v1231
      %v1279 = vpop.f32.mrf.mxu0
      %v1280 = vadd.f32 0.0, %v1279
      %v1281 = vpop.f32.mrf.mxu0
      %v1282 = vadd.f32 0.0, %v1281
      %v1283 = vpop.f32.mrf.mxu0
      %v1284 = vadd.f32 0.0, %v1283
      %v1285 = vpop.f32.mrf.mxu0
      %v1286 = vadd.f32 0.0, %v1285
      %1287 = vdwg.mxu0
      %1288 = vmatprep.subr.bf16.mxu0 0
      %1289 = vmatpush1.bf16.msra.mxu0 0
      %1290 = vmatprep.subr.bf16.mxu0 0
      %1291 = vmatpush1.bf16.msra.mxu0 0
      %1292 = vmatprep.subr.bf16.mxu0 0
      %1293 = vmatpush1.bf16.msra.mxu0 0
      %1294 = vmatprep.subr.bf16.mxu0 0
      %1295 = vmatpush1.bf16.msra.mxu0 0
      %1296 = vmatprep.subr.bf16.mxu0 0
      %1297 = vmatpush1.bf16.msra.mxu0 0
      %1298 = vmatprep.subr.bf16.mxu0 0
      %1299 = vmatpush1.bf16.msra.mxu0 0
      %1300 = vmatprep.subr.bf16.mxu0 0
      %1301 = vmatpush1.bf16.msra.mxu0 0
      %1302 = vmatprep.subr.bf16.mxu0 %v1243
      %1303 = vmatpush1.bf16.msra.mxu0 %v1240
      %1304 = vmatprep.subr.bf16.mxu0 0
      %1305 = vmatpush2.bf16.msra.mxu0 0
      %1306 = vmatprep.subr.bf16.mxu0 0
      %1307 = vmatpush2.bf16.msra.mxu0 0
      %1308 = vmatprep.subr.bf16.mxu0 0
      %1309 = vmatpush2.bf16.msra.mxu0 0
      %1310 = vmatprep.subr.bf16.mxu0 0
      %1311 = vmatpush2.bf16.msra.mxu0 0
      %1312 = vmatprep.subr.bf16.mxu0 0
      %1313 = vmatpush2.bf16.msra.mxu0 0
      %1314 = vmatprep.subr.bf16.mxu0 0
      %1315 = vmatpush2.bf16.msra.mxu0 0
      %1316 = vmatprep.subr.bf16.mxu0 0
      %1317 = vmatpush2.bf16.msra.mxu0 0
      %1318 = vmatprep.subr.bf16.mxu0 0
      %1319 = vmatpush2.bf16.msra.mxu0 0
      %1320 = vmatprep.mubr.bf16.mxu0 0
      %1321 = vmatmul.mubr.bf16.gmra.mxu0 %v1231
      %v1322 = vpop.f32.mrf.mxu0
      %v1323 = vadd.f32 0.0, %v1322
      %v1324 = vpop.f32.mrf.mxu0
      %v1325 = vadd.f32 0.0, %v1324
      %v1326 = vpop.f32.mrf.mxu0
      %v1327 = vadd.f32 0.0, %v1326
      %v1328 = vpop.f32.mrf.mxu0
      %v1329 = vadd.f32 0.0, %v1328
      %1330 = vdwg.mxu0
      %v1331 = vadd.f32 %v1199, %v1280
      %v1332 = vadd.f32 %v1200, %v1282
      %v1333 = vadd.f32 %v1201, %v1323
      %v1334 = vadd.f32 %v1202, %v1325
      %v1335 = vadd.f32 %v1203, %v1284
      %v1336 = vadd.f32 %v1204, %v1286
      %v1337 = vadd.f32 %v1205, %v1327
      %v1338 = vadd.f32 %v1206, %v1329
      %s1339 = scalar_lea.vmem %s2, 64
      %v1340 = vld [vmem:[%s1339] sm:$0xf]
      %v1341 = vld [vmem:[%s1339 + $0x4] sm:$0xf]
      %v1344 = vunpack.c.l.b16 %v1340
      %v1345 = vunpack.c.l.b16 %v1341
      %v1346 = vpack.c.b16 %v1345, %v1344
      %1347 = vrot.lane.b32.xlu0 %v295, 90
      %v1348 = vpop.permute.xlu0 %1347
      %1349 = vrot.lane.b32.xlu0 %v303, 90
      %v1350 = vpop.permute.xlu0 %1349
      %1351 = vrot.lane.b32.xlu0 %v302, 90
      %v1352 = vpop.permute.xlu0 %1351
      %1353 = vrot.lane.b32.xlu0 %v304, 90
      %v1354 = vpop.permute.xlu0 %1353
      %1355 = vrot.lane.b32.xlu0 %v312, 90
      %v1356 = vpop.permute.xlu0 %1355
      %vm1357 = vcmask 736256
      %v1358 = vsel %vm1357, %v1348, %v1350
      %v1359 = vsel %vm1357, %v1350, %v1352
      %v1360 = vsel %vm1357, %v1352, %v1354
      %v1361 = vsel %vm1357, %v1354, %v1356
      %v1363 = vsel %vm338, %v1346, 0
      %v1366 = vsel %vm342, %v1358, 0
      %v1369 = vsel %vm342, %v1359, 0
      %v1372 = vsel %vm342, %v1360, 0
      %v1375 = vsel %vm342, %v1361, 0
      %1377 = vmatprep.subr.bf16.mxu0 0
      %1378 = vmatpush1.bf16.msra.mxu0 0
      %1379 = vmatprep.subr.bf16.mxu0 0
      %1380 = vmatpush1.bf16.msra.mxu0 0
      %1381 = vmatprep.subr.bf16.mxu0 0
      %1382 = vmatpush1.bf16.msra.mxu0 0
      %1383 = vmatprep.subr.bf16.mxu0 0
      %1384 = vmatpush1.bf16.msra.mxu0 0
      %1385 = vmatprep.subr.bf16.mxu0 0
      %1386 = vmatpush1.bf16.msra.mxu0 0
      %1387 = vmatprep.subr.bf16.mxu0 0
      %1388 = vmatpush1.bf16.msra.mxu0 0
      %1389 = vmatprep.subr.bf16.mxu0 0
      %1390 = vmatpush1.bf16.msra.mxu0 0
      %1391 = vmatprep.subr.bf16.mxu0 %v1369
      %1392 = vmatpush1.bf16.msra.mxu0 %v1366
      %1393 = vmatprep.subr.bf16.mxu0 0
      %1394 = vmatpush2.bf16.msra.mxu0 0
      %1395 = vmatprep.subr.bf16.mxu0 0
      %1396 = vmatpush2.bf16.msra.mxu0 0
      %1397 = vmatprep.subr.bf16.mxu0 0
      %1398 = vmatpush2.bf16.msra.mxu0 0
      %1399 = vmatprep.subr.bf16.mxu0 0
      %1400 = vmatpush2.bf16.msra.mxu0 0
      %1401 = vmatprep.subr.bf16.mxu0 0
      %1402 = vmatpush2.bf16.msra.mxu0 0
      %1403 = vmatprep.subr.bf16.mxu0 0
      %1404 = vmatpush2.bf16.msra.mxu0 0
      %1405 = vmatprep.subr.bf16.mxu0 0
      %1406 = vmatpush2.bf16.msra.mxu0 0
      %1407 = vmatprep.subr.bf16.mxu0 0
      %1408 = vmatpush2.bf16.msra.mxu0 0
      %1409 = vmatprep.mubr.bf16.mxu0 0
      %1410 = vmatmul.mubr.bf16.gmra.mxu0 %v1363
      %v1411 = vpop.f32.mrf.mxu0
      %v1412 = vadd.f32 0.0, %v1411
      %v1413 = vpop.f32.mrf.mxu0
      %v1414 = vadd.f32 0.0, %v1413
      %v1415 = vpop.f32.mrf.mxu0
      %v1416 = vadd.f32 0.0, %v1415
      %v1417 = vpop.f32.mrf.mxu0
      %v1418 = vadd.f32 0.0, %v1417
      %1419 = vdwg.mxu0
      %1420 = vmatprep.subr.bf16.mxu0 0
      %1421 = vmatpush1.bf16.msra.mxu0 0
      %1422 = vmatprep.subr.bf16.mxu0 0
      %1423 = vmatpush1.bf16.msra.mxu0 0
      %1424 = vmatprep.subr.bf16.mxu0 0
      %1425 = vmatpush1.bf16.msra.mxu0 0
      %1426 = vmatprep.subr.bf16.mxu0 0
      %1427 = vmatpush1.bf16.msra.mxu0 0
      %1428 = vmatprep.subr.bf16.mxu0 0
      %1429 = vmatpush1.bf16.msra.mxu0 0
      %1430 = vmatprep.subr.bf16.mxu0 0
      %1431 = vmatpush1.bf16.msra.mxu0 0
      %1432 = vmatprep.subr.bf16.mxu0 0
      %1433 = vmatpush1.bf16.msra.mxu0 0
      %1434 = vmatprep.subr.bf16.mxu0 %v1375
      %1435 = vmatpush1.bf16.msra.mxu0 %v1372
      %1436 = vmatprep.subr.bf16.mxu0 0
      %1437 = vmatpush2.bf16.msra.mxu0 0
      %1438 = vmatprep.subr.bf16.mxu0 0
      %1439 = vmatpush2.bf16.msra.mxu0 0
      %1440 = vmatprep.subr.bf16.mxu0 0
      %1441 = vmatpush2.bf16.msra.mxu0 0
      %1442 = vmatprep.subr.bf16.mxu0 0
      %1443 = vmatpush2.bf16.msra.mxu0 0
      %1444 = vmatprep.subr.bf16.mxu0 0
      %1445 = vmatpush2.bf16.msra.mxu0 0
      %1446 = vmatprep.subr.bf16.mxu0 0
      %1447 = vmatpush2.bf16.msra.mxu0 0
      %1448 = vmatprep.subr.bf16.mxu0 0
      %1449 = vmatpush2.bf16.msra.mxu0 0
      %1450 = vmatprep.subr.bf16.mxu0 0
      %1451 = vmatpush2.bf16.msra.mxu0 0
      %1452 = vmatprep.mubr.bf16.mxu0 0
      %1453 = vmatmul.mubr.bf16.gmra.mxu0 %v1363
      %v1454 = vpop.f32.mrf.mxu0
      %v1455 = vadd.f32 0.0, %v1454
      %v1456 = vpop.f32.mrf.mxu0
      %v1457 = vadd.f32 0.0, %v1456
      %v1458 = vpop.f32.mrf.mxu0
      %v1459 = vadd.f32 0.0, %v1458
      %v1460 = vpop.f32.mrf.mxu0
      %v1461 = vadd.f32 0.0, %v1460
      %1462 = vdwg.mxu0
      %v1463 = vadd.f32 %v1331, %v1412
      %v1464 = vadd.f32 %v1332, %v1414
      %v1465 = vadd.f32 %v1333, %v1455
      %v1466 = vadd.f32 %v1334, %v1457
      %v1467 = vadd.f32 %v1335, %v1416
      %v1468 = vadd.f32 %v1336, %v1418
      %v1469 = vadd.f32 %v1337, %v1459
      %v1470 = vadd.f32 %v1338, %v1461
      %v1471 = vld [vmem:[%s3] sm:$0xff]
      %v1472 = vld [vmem:[%s3 + $0x8] sm:$0xff]
      %1474 = vset.pattern.permute.xlu0 0
      %1475 = vperm.xlu0 %1474, %v1471
      %v1476 = vpop.permute.xlu0 %1475
      %1479 = vset.pattern.permute.xlu0 0
      %1480 = vperm.xlu0 %1479, %v1472
      %v1481 = vpop.permute.xlu0 %1480
      %v1483 = vadd.f32 %v1463, %v1476
      %v1484 = vadd.f32 %v1464, %v1476
      %v1485 = vadd.f32 %v1465, %v1476
      %v1486 = vadd.f32 %v1466, %v1476
      %v1487 = vadd.f32 %v1467, %v1481
      %v1488 = vadd.f32 %v1468, %v1481
      %v1489 = vadd.f32 %v1469, %v1481
      %v1490 = vadd.f32 %v1470, %v1481
      %vm1491 = vcmp.ge.f32.partialorder %v1483, 0.0
      %vm1492 = vcmp.ge.f32.partialorder %v1484, 0.0
      %vm1493 = vcmp.ge.f32.partialorder %v1485, 0.0
      %vm1494 = vcmp.ge.f32.partialorder %v1486, 0.0
      %v1495 = vmul.f32 %v1483, 0.2
      %v1496 = vmul.f32 %v1484, 0.2
      %v1497 = vmul.f32 %v1485, 0.2
      %v1498 = vmul.f32 %v1486, 0.2
      %v1499 = vsel %vm1491, %v1483, %v1495
      %v1500 = vsel %vm1492, %v1484, %v1496
      %v1501 = vsel %vm1493, %v1485, %v1497
      %v1502 = vsel %vm1494, %v1486, %v1498
      %v1503 = vxor.u32 %v1487, 2147483648
      %v1504 = vxor.u32 %v1488, 2147483648
      %v1505 = vxor.u32 %v1489, 2147483648
      %v1506 = vxor.u32 %v1490, 2147483648
      %v1507 = vmul.f32 %v1503, 1.442695
      %v1508 = vpow.pop %v1507
      %v1509 = vmul.f32 %v1504, 1.442695
      %v1510 = vpow.pop %v1509
      %v1511 = vmul.f32 %v1505, 1.442695
      %v1512 = vpow.pop %v1511
      %v1513 = vmul.f32 %v1506, 1.442695
      %v1514 = vpow.pop %v1513
      %v1515 = vadd.f32 %v1508, 1.0
      %v1516 = vadd.f32 %v1510, 1.0
      %v1517 = vadd.f32 %v1512, 1.0
      %v1518 = vadd.f32 %v1514, 1.0
      %v1519 = vrcp.pop %v1515
      %v1520 = vmul.f32 1.0, %v1519
      %v1521 = vrcp.pop %v1516
      %v1522 = vmul.f32 1.0, %v1521
      %v1523 = vrcp.pop %v1517
      %v1524 = vmul.f32 1.0, %v1523
      %v1525 = vrcp.pop %v1518
      %v1526 = vmul.f32 1.0, %v1525
      %v1527 = vmul.f32 %v1499, %v1520
      %v1528 = vmul.f32 %v1500, %v1522
      %v1529 = vmul.f32 %v1501, %v1524
      %v1530 = vmul.f32 %v1502, %v1526
      %v1531 = vld [vmem:[%s4] sm:$0xff]
      %1533 = vset.pattern.permute.xlu0 0
      %1534 = vperm.xlu0 %1533, %v1531
      %v1535 = vpop.permute.xlu0 %1534
      %v1537 = vmul.f32 %v1527, %v1535
      %v1538 = vmul.f32 %v1528, %v1535
      %v1539 = vmul.f32 %v1529, %v1535
      %v1540 = vmul.f32 %v1530, %v1535
      %v1541 = vld [vmem:[%s5] sm:$0xff]
      %1543 = vset.pattern.permute.xlu0 0
      %1544 = vperm.xlu0 %1543, %v1541
      %v1545 = vpop.permute.xlu0 %1544
      %v1547 = vadd.f32 %v1537, %v1545
      %v1548 = vadd.f32 %v1538, %v1545
      %v1549 = vadd.f32 %v1539, %v1545
      %v1550 = vadd.f32 %v1540, %v1545
      %1551 = vst [vmem:[%s282] sm:$0xff] %v1547
      %1552 = vst [vmem:[%s282 + $0x8] sm:$0xff] %v1548
      %1553 = vst [vmem:[%s282 + $0x10] sm:$0xff] %v1549
      %1554 = vst [vmem:[%s282 + $0x18] sm:$0xff] %v1550
      %s1555 = smul.u32 4, %s17
      %p1556 = scmp.lt.s32.totalorder %s1555, 7
      %s1557 = scalar_select %p1556, %s1555, 7
      %s1558 = smul.addr %s1557, 8
      %s1559 = scalar_lea.vmem %s6, %s1558
      // Predicated region
      $region45: #{gated_conv2d_with_activation.3} parent=43 // pred_check
        %p1560 = pneg %p173
      $region46: #{gated_conv2d_with_activation.3} parent=43 // pred_check_branch
        %1562 = sbr.rel (%p1560) target = $region48
      $region47: #{gated_conv2d_with_activation.3} parent=43 // pred_region
        %s1563 = smul.u32 4, %s17
      $region48: #{gated_conv2d_with_activation.3} parent=43 // pred_fallthru
        _
    $region44: #{gated_conv2d_with_activation.3} parent=5 // pred_fallthru
      _
    %p1564 = scmp.le.s32.totalorder 2, %s12
    // Predicated region
    $region49: #{gated_conv2d_with_activation.3} parent=5 // pred_check
      %p1565 = pneg %p1564
    $region50: #{gated_conv2d_with_activation.3} parent=5 // pred_check_branch
      %1567 = sbr.rel (%p1565) target = $region52
    $region51: #{gated_conv2d_with_activation.3} parent=5 // pred_region
      %s1568 = ssub.s32 %s12, 2
      // Predicated region
      $region53: #{gated_conv2d_with_activation.3} parent=51 // pred_check
        %p1569 = pneg %p179
      $region54: #{gated_conv2d_with_activation.3} parent=51 // pred_check_branch
        %1571 = sbr.rel (%p1569) target = $region56
      $region55: #{gated_conv2d_with_activation.3} parent=51 // pred_region
        %s1572 = smul.u32 4, %s18
        %p1573 = scmp.lt.s32.totalorder %s1572, 7
        %s1574 = scalar_select %p1573, %s1572, 7
        %s1575 = smul.addr %s1574, 8
        %s1576 = scalar_lea.vmem %s6, %s1575
      $region56: #{gated_conv2d_with_activation.3} parent=51 // pred_fallthru
        _
    $region52: #{gated_conv2d_with_activation.3} parent=5 // pred_fallthru
      _
  $region6: #{gated_conv2d_with_activation.3} parent=0 // loop_footer
    %s16 = sadd.s32 1, %s12
  $region7: #{gated_conv2d_with_activation.3} parent=0 // loop_footer_branch
    %11 = sbr.rel target = $region3
  $region8: #{gated_conv2d_with_activation.3} parent=0 // loop_exit
    _

</llo_original>
